<compile_context>
chip_gen: v7x
topology: tpu7x:2x2x1
jax: 0.10.0
libtpu: 0.0.40
codegen_flags: <defaults>
</compile_context>

<pallas_src>
import jax
import jax.numpy as jnp
import numpy as np
from jax.experimental import pallas as pl
from jax.experimental.pallas import tpu as pltpu

BN_EPS = 1e-5
LANE = 128
PAD_OFF = 16   # sublane-aligned column offset of the strip interior inside the
               # halo'd pad scratch (16 = bf16 sublane tile)


def _round_up(x, m):
    return (x + m - 1) // m * m


# ------------------------------ in-kernel helpers ------------------------------

def _conv3x3_strip(act, halo_top, halo_bot, w_ref, pad_ref, patch_ref):
    """3x3 'SAME' conv of one (R, W, Ck) bf16 activation strip.

    halo_top / halo_bot are the single rows just above / below the strip
    (already zero where they fall outside the image).  Only the 1-pixel
    border of `pad_ref` is zeroed; the interior store lands at the
    sublane-aligned column PAD_OFF.  The (R, W, 9*Ck) im2col patch is built
    with 9 plain slab copies (no per-tap reshape) and contracted against the
    K-folded weights in a single MXU matmul.  Returns (R*W, Cp) float32.
    """
    R, W, Ck = act.shape
    zcol = jnp.zeros((R + 2, 1, Ck), act.dtype)
    pad_ref[:, PAD_OFF - 1:PAD_OFF, :] = zcol                  # left zero col
    pad_ref[:, PAD_OFF + W:PAD_OFF + W + 1, :] = zcol          # right zero col
    pad_ref[0:1, PAD_OFF:PAD_OFF + W, :] = halo_top            # row above
    pad_ref[R + 1:R + 2, PAD_OFF:PAD_OFF + W, :] = halo_bot    # row below
    pad_ref[1:R + 1, PAD_OFF:PAD_OFF + W, :] = act             # aligned interior

    for t in range(9):                        # static unroll, slab copies only
        dy, dx = t // 3, t % 3
        c0 = PAD_OFF - 1 + dx
        patch_ref[:, :, t * Ck:(t + 1) * Ck] = pad_ref[dy:dy + R, c0:c0 + W, :]

    lhs = patch_ref[...].reshape(R * W, 9 * Ck)
    return jnp.dot(lhs, w_ref[...], preferred_element_type=jnp.float32)


def _emit_stats(h, st_ref):
    """Per-channel (sum, sum of squares) partials of this strip, in f32."""
    cp = h.shape[-1]
    st_ref[0:1, 0:1, 0:1, :] = jnp.sum(h, axis=0).reshape(1, 1, 1, cp)
    st_ref[0:1, 0:1, 1:2, :] = jnp.sum(h * h, axis=0).reshape(1, 1, 1, cp)


# ----------------------------------- kernels -----------------------------------

def _conv1_kernel(x_ref, halo_ref, w_ref, h_ref, st_ref, pad_ref, patch_ref):
    # x_ref: (1, R, W, Ck1) bf16 strip; halo_ref: (1, 1, 2, W, Ck1) bf16.
    _, R, W, _ = x_ref.shape
    cp = h_ref.shape[-1]
    halo = halo_ref[0][0]                                        # (2, W, Ck1)
    h = _conv3x3_strip(x_ref[0], halo[0:1], halo[1:2], w_ref, pad_ref, patch_ref)
    h_ref[0] = h.reshape(R, W, cp).astype(h_ref.dtype)           # bf16 pre-BN out
    _emit_stats(h, st_ref)


def _conv2_kernel(h1_ref, halo_ref, s_ref, t_ref, w_ref,
                  h2_ref, st_ref, pad_ref, patch_ref):
    # BN1 (fused scale/shift) + ReLU + conv2, all on one strip.
    _, R, W, cp = h1_ref.shape
    sid, last = pl.program_id(1), pl.num_programs(1) - 1
    sc, sh = s_ref[...], t_ref[...]                              # (1, Cp) f32
    y = jnp.maximum(h1_ref[0].astype(jnp.float32) * sc + sh, 0.0)
    hl = halo_ref[0][0].astype(jnp.float32) * sc + sh            # (2, W, Cp)
    # Halo rows outside the image are conv2's zero padding, NOT BN(0):
    top = jnp.where(sid > 0, jnp.maximum(hl[0:1], 0.0), 0.0)
    bot = jnp.where(sid < last, jnp.maximum(hl[1:2], 0.0), 0.0)
    h = _conv3x3_strip(y.astype(jnp.bfloat16), top.astype(jnp.bfloat16),
                       bot.astype(jnp.bfloat16), w_ref, pad_ref, patch_ref)
    h2_ref[0] = h.reshape(R, W, cp).astype(h2_ref.dtype)
    _emit_stats(h, st_ref)


def _bn_relu_out_kernel(h_ref, s_ref, t_ref, o_ref):
    # BN2 + ReLU; only the Cout real channels are written back.
    cout = o_ref.shape[-1]
    y = h_ref[0].astype(jnp.float32) * s_ref[...] + t_ref[...]
    o_ref[0] = jnp.maximum(y, 0.0)[..., :cout].astype(o_ref.dtype)


# --------------------------------- wrapper glue ---------------------------------

def _fold_w(w, ck, cp):
    """torch (Cout, Cin, 3, 3) -> K-folded (9*ck, cp) bf16, zero padded."""
    cout, cin = w.shape[0], w.shape[1]
    wk = jnp.transpose(w, (2, 3, 1, 0))                          # (3, 3, Cin, Cout)
    wk = jnp.pad(wk, ((0, 0), (0, 0), (0, ck - cin), (0, cp - cout)))
    return wk.reshape(9 * ck, cp).astype(jnp.bfloat16)


def _pad_row(v, cp):
    return jnp.pad(v.astype(jnp.float32), (0, cp - v.shape[0])).reshape(1, cp)


def _strip_halo(a, r):
    """(N, H, W, C) -> (N, S, 2, W, C): the rows just above / below each r-row
    strip, zero where they fall outside the image."""
    n, h, w, c = a.shape
    ap = jnp.pad(a, ((0, 0), (1, 1), (0, 0), (0, 0)))
    above = ap[:, 0:h:r]                     # original row s*r - 1
    below = ap[:, r + 1:h + 2:r]             # original row s*r + r
    return jnp.stack([above, below], axis=2)


def _fused_affine(stats, gamma, beta, m):
    """Global (biased) batch statistics -> fused BN scale/shift, f32."""
    s = jnp.sum(stats, axis=(0, 1))                              # (2, Cp)
    mean = s[0:1] / m
    var = jnp.maximum(s[1:2] / m - mean * mean, 0.0)
    scale = gamma * jax.lax.rsqrt(var + BN_EPS)
    return scale, beta - mean * scale


def _vmem_limit_bytes():
    """Per-generation scoped-VMEM limit: ~3/4 of physical VMEM, capped at
    100 MiB (v5e/v6e -> 96 MiB; v7x's 64 MiB physical -> 48 MiB fallback)."""
    cap = 64 * 1024 * 1024
    try:
        cap = int(pltpu.get_tpu_info().vmem_capacity_bytes)
    except Exception:
        pass
    return min(cap * 3 // 4, 100 * 1024 * 1024)


def _pick_strip_rows(h, w, cp, budget):
    """Largest divisor R of H whose pass-2 (the bigger conv pass) per-strip
    working set fits `budget`; prefers >= 2 strips so the BlockSpec pipeline
    has steps to overlap DMA with MXU work and both TensorCores get work."""
    def est(r):
        blk = r * w * cp * 2                        # one bf16 strip block
        pad = (r + 2) * (w + PAD_OFF + 2) * cp * 2
        patch = r * w * 9 * cp * 2
        return 4 * blk + pad + patch                # 2x in + 2x out (dbl-buffered)
    fits = [r for r in range(1, h + 1) if h % r == 0 and est(r) <= budget]
    if not fits:
        return 1
    r = max(fits)
    if r == h:
        halved = [d for d in fits if d <= h // 2]
        if halved:
            r = max(halved)
    return r


def double_conv(x_nchw, params):
    """Pallas DoubleConv forward. (N, Cin, H, W) f32 -> (N, Cout, H, W) f32."""
    N, Cin, H, W = x_nchw.shape
    Cout = params["w1"].shape[0]
    Cp = _round_up(Cout, LANE)                 # lane-dense working channels
    # Small-Cin stem: keep K1 = 9*Cin instead of 9*round_up(Cin, 128).
    Ck1 = Cin if Cin < LANE else _round_up(Cin, LANE)
    K1, K2 = 9 * Ck1, 9 * Cp
    M = N * H * W                              # BatchNorm reduction size

    vmem_limit = _vmem_limit_bytes()
    R = _pick_strip_rows(H, W, Cp, vmem_limit // 2)
    S = H // R
    # TODO(synk): Cp > 512 needs K / output-channel tiling of the matmul (w2 no
    # longer fits VMEM double-buffered); not needed for this module's sizes.

    # NCHW -> NHWC (channels on lanes), bf16 operands for the MXU.
    x = jnp.transpose(x_nchw, (0, 2, 3, 1))
    if Ck1 != Cin:
        x = jnp.pad(x, ((0, 0), (0, 0), (0, 0), (0, Ck1 - Cin)))
    x = x.astype(jnp.bfloat16)
    x_halo = _strip_halo(x, R)                 # (N, S, 2, W, Ck1)

    w1 = _fold_w(params["w1"], Ck1, Cp)
    w2 = _fold_w(params["w2"], Cp, Cp)
    g1, be1 = _pad_row(params["gamma1"], Cp), _pad_row(params["beta1"], Cp)
    g2, be2 = _pad_row(params["gamma2"], Cp), _pad_row(params["beta2"], Cp)
    # Conv biases (params["b1"], params["b2"]) are intentionally unused: a
    # per-channel bias followed by training-mode BatchNorm cancels exactly.

    cparams = pltpu.CompilerParams(dimension_semantics=("parallel", "parallel"),
                                   vmem_limit_bytes=vmem_limit)

    def strip_spec(c):
        return pl.BlockSpec((1, R, W, c), lambda n, s: (n, s, 0, 0))

    def halo_spec(c):
        return pl.BlockSpec((1, 1, 2, W, c), lambda n, s: (n, s, 0, 0, 0))

    def full_spec(shape):
        return pl.BlockSpec(shape, lambda n, s: (0,) * len(shape))

    row_spec = full_spec((1, Cp))
    stats_spec = pl.BlockSpec((1, 1, 2, Cp), lambda n, s: (n, s, 0, 0))

    # ---- pass 1: conv1 (pre-BN, bf16) + per-strip BN1 partial statistics ----
    h1, st1 = pl.pallas_call(
        _conv1_kernel,
        grid=(N, S),
        in_specs=[strip_spec(Ck1), halo_spec(Ck1), full_spec((K1, Cp))],
        out_specs=[strip_spec(Cp), stats_spec],
        out_shape=[jax.ShapeDtypeStruct((N, H, W, Cp), jnp.bfloat16),
                   jax.ShapeDtypeStruct((N, S, 2, Cp), jnp.float32)],
        scratch_shapes=[pltpu.VMEM((R + 2, W + PAD_OFF + 2, Ck1), jnp.bfloat16),
                        pltpu.VMEM((R, W, K1), jnp.bfloat16)],
        compiler_params=cparams,
    )(x, x_halo, w1)

    s1, t1 = _fused_affine(st1, g1, be1, M)
    h1_halo = _strip_halo(h1, R)               # pre-BN halo rows (bf16)

    # ---- pass 2: BN1 + ReLU + conv2 (pre-BN, bf16) + BN2 partial statistics ----
    h2, st2 = pl.pallas_call(
        _conv2_kernel,
        grid=(N, S),
        in_specs=[strip_spec(Cp), halo_spec(Cp), row_spec, row_spec,
                  full_spec((K2, Cp))],
        out_specs=[strip_spec(Cp), stats_spec],
        out_shape=[jax.ShapeDtypeStruct((N, H, W, Cp), jnp.bfloat16),
                   jax.ShapeDtypeStruct((N, S, 2, Cp), jnp.float32)],
        scratch_shapes=[pltpu.VMEM((R + 2, W + PAD_OFF + 2, Cp), jnp.bfloat16),
                        pltpu.VMEM((R, W, K2), jnp.bfloat16)],
        compiler_params=cparams,
    )(h1, h1_halo, s1, t1, w2)

    s2, t2 = _fused_affine(st2, g2, be2, M)

    # ---- pass 3: BN2 + ReLU, writing only the Cout real channels ----
    out = pl.pallas_call(
        _bn_relu_out_kernel,
        grid=(N, S),
        in_specs=[strip_spec(Cp), row_spec, row_spec],
        out_specs=pl.BlockSpec((1, R, W, Cout), lambda n, s: (n, s, 0, 0)),
        out_shape=jax.ShapeDtypeStruct((N, H, W, Cout), jnp.float32),
        compiler_params=cparams,
    )(h2, s2, t2)

    return jnp.transpose(out, (0, 3, 1, 2))    # NHWC -> NCHW


# ---------------------------------- reference -----------------------------------

def _reference(x_nchw, params):
    """Independent JAX (lax.conv) reference with the kernel's precision policy:
    bf16 conv operands, f32 accumulation, BN statistics from the f32 conv
    output, BN affine applied to the bf16-rounded (as-stored) values.  The conv
    biases are omitted in both implementations because a per-channel bias
    immediately followed by training-mode BatchNorm cancels exactly."""
    x = jnp.transpose(x_nchw, (0, 2, 3, 1)).astype(jnp.bfloat16)
    dn = ("NHWC", "HWIO", "NHWC")

    def conv(h, w):
        wk = jnp.transpose(w, (2, 3, 1, 0)).astype(jnp.bfloat16)
        return jax.lax.conv_general_dilated(h, wk, (1, 1), "SAME",
                                            dimension_numbers=dn,
                                            preferred_element_type=jnp.float32)

    def bn_relu(hf32, g, be):
        mean = jnp.mean(hf32, axis=(0, 1, 2), keepdims=True)
        var = jnp.mean((hf32 - mean) ** 2, axis=(0, 1, 2), keepdims=True)
        scale = g * jax.lax.rsqrt(var + BN_EPS)
        shift = be - mean * scale
        h = hf32.astype(jnp.bfloat16).astype(jnp.float32)   # pre-BN stored as bf16
        return jnp.maximum(h * scale + shift, 0.0)

    h = bn_relu(conv(x, params["w1"]), params["gamma1"], params["beta1"])
    h = bn_relu(conv(h.astype(jnp.bfloat16), params["w2"]),
                params["gamma2"], params["beta2"])
    return jnp.transpose(h, (0, 3, 1, 2))


def _init_params(key, in_ch, out_ch):
    ks = jax.random.split(key, 6)
    s1 = 1.0 / np.sqrt(in_ch * 9)
    s2 = 1.0 / np.sqrt(out_ch * 9)
    return {
        # conv biases are kept to mirror the torch module's parameters, but are
        # mathematically cancelled by the training-mode BatchNorm that follows.
        "w1": jax.random.uniform(ks[0], (out_ch, in_ch, 3, 3), jnp.float32, -s1, s1),
        "b1": jax.random.uniform(ks[1], (out_ch,), jnp.float32, -s1, s1),
        "w2": jax.random.uniform(ks[2], (out_ch, out_ch, 3, 3), jnp.float32, -s2, s2),
        "b2": jax.random.uniform(ks[3], (out_ch,), jnp.float32, -s2, s2),
        "gamma1": 1.0 + 0.1 * jax.random.normal(ks[4], (out_ch,), jnp.float32),
        "beta1": 0.05 * jnp.arange(out_ch, dtype=jnp.float32),
        "gamma2": 1.0 + 0.1 * jax.random.normal(ks[5], (out_ch,), jnp.float32),
        "beta2": -0.05 * jnp.arange(out_ch, dtype=jnp.float32),
    }


if __name__ == "__main__":
    key = jax.random.PRNGKey(0)
    kx, kp = jax.random.split(key)

    N, Cin, Cout, H, W = 2, 4, 8, 16, 16
    x = jax.random.normal(kx, (N, Cin, H, W), jnp.float32)
    params = _init_params(kp, Cin, Cout)

    out = jax.block_until_ready(jax.jit(double_conv)(x, params))
    ref = jax.block_until_ready(_reference(x, params))

    assert out.shape == (N, Cout, H, W)
    # Both paths share the same bf16 rounding points and f32 BN math; remaining
    # differences are MXU-vs-XLA accumulation order, one-pass vs two-pass
    # variance, and rare bf16 rounding flips — all far inside 1e-2.
    np.testing.assert_allclose(np.asarray(out), np.asarray(ref),
                               rtol=1e-2, atol=1e-2)
    print("KERNEL_OK")
</pallas_src>

<mosaic_0001>
module attributes {stable_mosaic.version = 11 : i64} {
  func.func @_conv1_kernel(%arg0: i32, %arg1: i32, %arg2: memref<1x8x16x4xbf16, #tpu.memory_space<vmem>>, %arg3: memref<1x1x2x16x4xbf16, #tpu.memory_space<vmem>>, %arg4: memref<36x128xbf16, #tpu.memory_space<vmem>>, %arg5: memref<1x8x16x128xbf16, #tpu.memory_space<vmem>>, %arg6: memref<1x1x2x128xf32, #tpu.memory_space<vmem>>, %arg7: memref<10x34x4xbf16, #tpu.memory_space<vmem>>, %arg8: memref<8x16x36xbf16, #tpu.memory_space<vmem>>) attributes {dimension_semantics = [#tpu.dimension_semantics<parallel>, #tpu.dimension_semantics<parallel>], iteration_bounds = array<i64: 2, 2>, scalar_prefetch = 0 : i64, scratch_operands = 2 : i64, tpu.core_type = #tpu.core_type<tc>, window_params = [{transform_indices = @transform_0, window_bounds = array<i64: 1, 8, 16, 4>}, {transform_indices = @transform_1, window_bounds = array<i64: 1, 1, 2, 16, 4>}, {pipeline_mode = #tpu.pipeline_mode<synchronous>, transform_indices = @transform_2, window_bounds = array<i64: 36, 128>}, {transform_indices = @transform_3, window_bounds = array<i64: 1, 8, 16, 128>}, {transform_indices = @transform_4, window_bounds = array<i64: 1, 1, 2, 128>}]} {
    %c0 = arith.constant 0 : index
    %c0_0 = arith.constant 0 : index
    %c0_1 = arith.constant 0 : index
    %c0_2 = arith.constant 0 : index
    %c0_3 = arith.constant 0 : index
    %0 = vector.load %arg3[%c0, %c0_0, %c0_1, %c0_2, %c0_3] : memref<1x1x2x16x4xbf16, #tpu.memory_space<vmem>>, vector<1x1x2x16x4xbf16>
    %1 = vector.shape_cast %0 : vector<1x1x2x16x4xbf16> to vector<1x2x16x4xbf16>
    %2 = vector.shape_cast %1 : vector<1x2x16x4xbf16> to vector<2x16x4xbf16>
    %c0_4 = arith.constant 0 : index
    %c0_5 = arith.constant 0 : index
    %c0_6 = arith.constant 0 : index
    %c0_7 = arith.constant 0 : index
    %3 = vector.load %arg2[%c0_4, %c0_5, %c0_6, %c0_7] : memref<1x8x16x4xbf16, #tpu.memory_space<vmem>>, vector<1x8x16x4xbf16>
    %4 = vector.shape_cast %3 : vector<1x8x16x4xbf16> to vector<8x16x4xbf16>
    %5 = vector.extract_strided_slice %2 {offsets = [0, 0, 0], sizes = [1, 16, 4], strides = [1, 1, 1]} : vector<2x16x4xbf16> to vector<1x16x4xbf16>
    %6 = vector.extract_strided_slice %2 {offsets = [1, 0, 0], sizes = [1, 16, 4], strides = [1, 1, 1]} : vector<2x16x4xbf16> to vector<1x16x4xbf16>
    %cst = arith.constant 0.000000e+00 : bf16
    %7 = vector.broadcast %cst : bf16 to vector<10x1x4xbf16>
    %c0_8 = arith.constant 0 : index
    %c15 = arith.constant 15 : index
    %c0_9 = arith.constant 0 : index
    %8 = vector.load %arg7[%c0_8, %c15, %c0_9] : memref<10x34x4xbf16, #tpu.memory_space<vmem>>, vector<10x1x4xbf16>
    tpu.vector_store %arg7[%c0_8, %c15, %c0_9], %7 {strides = array<i32>} : memref<10x34x4xbf16, #tpu.memory_space<vmem>>, vector<10x1x4xbf16>,
    %c0_10 = arith.constant 0 : index
    %c32 = arith.constant 32 : index
    %c0_11 = arith.constant 0 : index
    %9 = vector.load %arg7[%c0_10, %c32, %c0_11] : memref<10x34x4xbf16, #tpu.memory_space<vmem>>, vector<10x1x4xbf16>
    tpu.vector_store %arg7[%c0_10, %c32, %c0_11], %7 {strides = array<i32>} : memref<10x34x4xbf16, #tpu.memory_space<vmem>>, vector<10x1x4xbf16>,
    %c0_12 = arith.constant 0 : index
    %c16 = arith.constant 16 : index
    %c0_13 = arith.constant 0 : index
    %10 = vector.load %arg7[%c0_12, %c16, %c0_13] : memref<10x34x4xbf16, #tpu.memory_space<vmem>>, vector<1x16x4xbf16>
    tpu.vector_store %arg7[%c0_12, %c16, %c0_13], %5 {strides = array<i32>} : memref<10x34x4xbf16, #tpu.memory_space<vmem>>, vector<1x16x4xbf16>,
    %c9 = arith.constant 9 : index
    %c16_14 = arith.constant 16 : index
    %c0_15 = arith.constant 0 : index
    %11 = vector.load %arg7[%c9, %c16_14, %c0_15] : memref<10x34x4xbf16, #tpu.memory_space<vmem>>, vector<1x16x4xbf16>
    tpu.vector_store %arg7[%c9, %c16_14, %c0_15], %6 {strides = array<i32>} : memref<10x34x4xbf16, #tpu.memory_space<vmem>>, vector<1x16x4xbf16>,
    %c1 = arith.constant 1 : index
    %c16_16 = arith.constant 16 : index
    %c0_17 = arith.constant 0 : index
    %12 = vector.load %arg7[%c1, %c16_16, %c0_17] : memref<10x34x4xbf16, #tpu.memory_space<vmem>>, vector<8x16x4xbf16>
    tpu.vector_store %arg7[%c1, %c16_16, %c0_17], %4 {strides = array<i32>} : memref<10x34x4xbf16, #tpu.memory_space<vmem>>, vector<8x16x4xbf16>,
    %c0_18 = arith.constant 0 : index
    %c15_19 = arith.constant 15 : index
    %c0_20 = arith.constant 0 : index
    %13 = vector.load %arg7[%c0_18, %c15_19, %c0_20] : memref<10x34x4xbf16, #tpu.memory_space<vmem>>, vector<8x16x4xbf16>
    %c0_21 = arith.constant 0 : index
    %c0_22 = arith.constant 0 : index
    %c0_23 = arith.constant 0 : index
    %14 = vector.load %arg8[%c0_21, %c0_22, %c0_23] : memref<8x16x36xbf16, #tpu.memory_space<vmem>>, vector<8x16x4xbf16>
    tpu.vector_store %arg8[%c0_21, %c0_22, %c0_23], %13 {strides = array<i32>} : memref<8x16x36xbf16, #tpu.memory_space<vmem>>, vector<8x16x4xbf16>,
    %c0_24 = arith.constant 0 : index
    %c16_25 = arith.constant 16 : index
    %c0_26 = arith.constant 0 : index
    %15 = vector.load %arg7[%c0_24, %c16_25, %c0_26] : memref<10x34x4xbf16, #tpu.memory_space<vmem>>, vector<8x16x4xbf16>
    %c0_27 = arith.constant 0 : index
    %c0_28 = arith.constant 0 : index
    %c4 = arith.constant 4 : index
    %16 = vector.load %arg8[%c0_27, %c0_28, %c4] : memref<8x16x36xbf16, #tpu.memory_space<vmem>>, vector<8x16x4xbf16>
    tpu.vector_store %arg8[%c0_27, %c0_28, %c4], %15 {strides = array<i32>} : memref<8x16x36xbf16, #tpu.memory_space<vmem>>, vector<8x16x4xbf16>,
    %c0_29 = arith.constant 0 : index
    %c17 = arith.constant 17 : index
    %c0_30 = arith.constant 0 : index
    %17 = vector.load %arg7[%c0_29, %c17, %c0_30] : memref<10x34x4xbf16, #tpu.memory_space<vmem>>, vector<8x16x4xbf16>
    %c0_31 = arith.constant 0 : index
    %c0_32 = arith.constant 0 : index
    %c8 = arith.constant 8 : index
    %18 = vector.load %arg8[%c0_31, %c0_32, %c8] : memref<8x16x36xbf16, #tpu.memory_space<vmem>>, vector<8x16x4xbf16>
    tpu.vector_store %arg8[%c0_31, %c0_32, %c8], %17 {strides = array<i32>} : memref<8x16x36xbf16, #tpu.memory_space<vmem>>, vector<8x16x4xbf16>,
    %c1_33 = arith.constant 1 : index
    %c15_34 = arith.constant 15 : index
    %c0_35 = arith.constant 0 : index
    %19 = vector.load %arg7[%c1_33, %c15_34, %c0_35] : memref<10x34x4xbf16, #tpu.memory_space<vmem>>, vector<8x16x4xbf16>
    %c0_36 = arith.constant 0 : index
    %c0_37 = arith.constant 0 : index
    %c12 = arith.constant 12 : index
    %20 = vector.load %arg8[%c0_36, %c0_37, %c12] : memref<8x16x36xbf16, #tpu.memory_space<vmem>>, vector<8x16x4xbf16>
    tpu.vector_store %arg8[%c0_36, %c0_37, %c12], %19 {strides = array<i32>} : memref<8x16x36xbf16, #tpu.memory_space<vmem>>, vector<8x16x4xbf16>,
    %c1_38 = arith.constant 1 : index
    %c16_39 = arith.constant 16 : index
    %c0_40 = arith.constant 0 : index
    %21 = vector.load %arg7[%c1_38, %c16_39, %c0_40] : memref<10x34x4xbf16, #tpu.memory_space<vmem>>, vector<8x16x4xbf16>
    %c0_41 = arith.constant 0 : index
    %c0_42 = arith.constant 0 : index
    %c16_43 = arith.constant 16 : index
    %22 = vector.load %arg8[%c0_41, %c0_42, %c16_43] : memref<8x16x36xbf16, #tpu.memory_space<vmem>>, vector<8x16x4xbf16>
    tpu.vector_store %arg8[%c0_41, %c0_42, %c16_43], %21 {strides = array<i32>} : memref<8x16x36xbf16, #tpu.memory_space<vmem>>, vector<8x16x4xbf16>,
    %c1_44 = arith.constant 1 : index
    %c17_45 = arith.constant 17 : index
    %c0_46 = arith.constant 0 : index
    %23 = vector.load %arg7[%c1_44, %c17_45, %c0_46] : memref<10x34x4xbf16, #tpu.memory_space<vmem>>, vector<8x16x4xbf16>
    %c0_47 = arith.constant 0 : index
    %c0_48 = arith.constant 0 : index
    %c20 = arith.constant 20 : index
    %24 = vector.load %arg8[%c0_47, %c0_48, %c20] : memref<8x16x36xbf16, #tpu.memory_space<vmem>>, vector<8x16x4xbf16>
    tpu.vector_store %arg8[%c0_47, %c0_48, %c20], %23 {strides = array<i32>} : memref<8x16x36xbf16, #tpu.memory_space<vmem>>, vector<8x16x4xbf16>,
    %c2 = arith.constant 2 : index
    %c15_49 = arith.constant 15 : index
    %c0_50 = arith.constant 0 : index
    %25 = vector.load %arg7[%c2, %c15_49, %c0_50] : memref<10x34x4xbf16, #tpu.memory_space<vmem>>, vector<8x16x4xbf16>
    %c0_51 = arith.constant 0 : index
    %c0_52 = arith.constant 0 : index
    %c24 = arith.constant 24 : index
    %26 = vector.load %arg8[%c0_51, %c0_52, %c24] : memref<8x16x36xbf16, #tpu.memory_space<vmem>>, vector<8x16x4xbf16>
    tpu.vector_store %arg8[%c0_51, %c0_52, %c24], %25 {strides = array<i32>} : memref<8x16x36xbf16, #tpu.memory_space<vmem>>, vector<8x16x4xbf16>,
    %c2_53 = arith.constant 2 : index
    %c16_54 = arith.constant 16 : index
    %c0_55 = arith.constant 0 : index
    %27 = vector.load %arg7[%c2_53, %c16_54, %c0_55] : memref<10x34x4xbf16, #tpu.memory_space<vmem>>, vector<8x16x4xbf16>
    %c0_56 = arith.constant 0 : index
    %c0_57 = arith.constant 0 : index
    %c28 = arith.constant 28 : index
    %28 = vector.load %arg8[%c0_56, %c0_57, %c28] : memref<8x16x36xbf16, #tpu.memory_space<vmem>>, vector<8x16x4xbf16>
    tpu.vector_store %arg8[%c0_56, %c0_57, %c28], %27 {strides = array<i32>} : memref<8x16x36xbf16, #tpu.memory_space<vmem>>, vector<8x16x4xbf16>,
    %c2_58 = arith.constant 2 : index
    %c17_59 = arith.constant 17 : index
    %c0_60 = arith.constant 0 : index
    %29 = vector.load %arg7[%c2_58, %c17_59, %c0_60] : memref<10x34x4xbf16, #tpu.memory_space<vmem>>, vector<8x16x4xbf16>
    %c0_61 = arith.constant 0 : index
    %c0_62 = arith.constant 0 : index
    %c32_63 = arith.constant 32 : index
    %30 = vector.load %arg8[%c0_61, %c0_62, %c32_63] : memref<8x16x36xbf16, #tpu.memory_space<vmem>>, vector<8x16x4xbf16>
    tpu.vector_store %arg8[%c0_61, %c0_62, %c32_63], %29 {strides = array<i32>} : memref<8x16x36xbf16, #tpu.memory_space<vmem>>, vector<8x16x4xbf16>,
    %c0_64 = arith.constant 0 : index
    %c0_65 = arith.constant 0 : index
    %c0_66 = arith.constant 0 : index
    %31 = vector.load %arg8[%c0_64, %c0_65, %c0_66] : memref<8x16x36xbf16, #tpu.memory_space<vmem>>, vector<8x16x36xbf16>
    %32 = vector.shape_cast %31 : vector<8x16x36xbf16> to vector<128x36xbf16>
    %c0_67 = arith.constant 0 : index
    %c0_68 = arith.constant 0 : index
    %33 = vector.load %arg4[%c0_67, %c0_68] : memref<36x128xbf16, #tpu.memory_space<vmem>>, vector<36x128xbf16>
    %cst_69 = arith.constant dense<0.000000e+00> : vector<128x128xf32>
    %34 = tpu.matmul %32, %33, %cst_69 {dimension_numbers = #tpu.dot_dimension_numbers<[1], [0], [0], [1], [0, 0, 1, 1], [], []>} : vector<128x36xbf16>, vector<36x128xbf16>, vector<128x128xf32> -> vector<128x128xf32>
    %35 = vector.shape_cast %34 : vector<128x128xf32> to vector<8x16x128xf32>
    %36 = arith.truncf %35 : vector<8x16x128xf32> to vector<8x16x128xbf16>
    %c0_70 = arith.constant 0 : index
    %c0_71 = arith.constant 0 : index
    %c0_72 = arith.constant 0 : index
    %c0_73 = arith.constant 0 : index
    %37 = vector.load %arg5[%c0_70, %c0_71, %c0_72, %c0_73] : memref<1x8x16x128xbf16, #tpu.memory_space<vmem>>, vector<1x8x16x128xbf16>
    %38 = vector.shape_cast %37 : vector<1x8x16x128xbf16> to vector<8x16x128xbf16>
    %39 = vector.shape_cast %36 : vector<8x16x128xbf16> to vector<1x8x16x128xbf16>
    tpu.vector_store %arg5[%c0_70, %c0_71, %c0_72, %c0_73], %39 {strides = array<i32>} : memref<1x8x16x128xbf16, #tpu.memory_space<vmem>>, vector<1x8x16x128xbf16>,
    %cst_74 = arith.constant dense<0.000000e+00> : vector<128xf32>
    %40 = vector.multi_reduction <add>, %34, %cst_74 [0] : vector<128x128xf32> to vector<128xf32>
    %41 = vector.shape_cast %40 : vector<128xf32> to vector<1x1x1x128xf32>
    %c0_75 = arith.constant 0 : index
    %c0_76 = arith.constant 0 : index
    %c0_77 = arith.constant 0 : index
    %c0_78 = arith.constant 0 : index
    %42 = vector.load %arg6[%c0_75, %c0_76, %c0_77, %c0_78] : memref<1x1x2x128xf32, #tpu.memory_space<vmem>>, vector<1x1x1x128xf32>
    tpu.vector_store %arg6[%c0_75, %c0_76, %c0_77, %c0_78], %41 {strides = array<i32>} : memref<1x1x2x128xf32, #tpu.memory_space<vmem>>, vector<1x1x1x128xf32>,
    %43 = arith.mulf %34, %34 : vector<128x128xf32>
    %cst_79 = arith.constant dense<0.000000e+00> : vector<128xf32>
    %44 = vector.multi_reduction <add>, %43, %cst_79 [0] : vector<128x128xf32> to vector<128xf32>
    %45 = vector.shape_cast %44 : vector<128xf32> to vector<1x1x1x128xf32>
    %c0_80 = arith.constant 0 : index
    %c0_81 = arith.constant 0 : index
    %c1_82 = arith.constant 1 : index
    %c0_83 = arith.constant 0 : index
    %46 = vector.load %arg6[%c0_80, %c0_81, %c1_82, %c0_83] : memref<1x1x2x128xf32, #tpu.memory_space<vmem>>, vector<1x1x1x128xf32>
    tpu.vector_store %arg6[%c0_80, %c0_81, %c1_82, %c0_83], %45 {strides = array<i32>} : memref<1x1x2x128xf32, #tpu.memory_space<vmem>>, vector<1x1x1x128xf32>,
    return
  }
  func.func @transform_0(%arg0: i32, %arg1: i32) -> (i32, i32, i32, i32) {
    %c0_i32 = arith.constant 0 : i32
    %c0_i32_0 = arith.constant 0 : i32
    %c0_i32_1 = arith.constant 0 : i32
    return %arg0, %arg1, %c0_i32, %c0_i32_0 : i32, i32, i32, i32
  }
  func.func @transform_1(%arg0: i32, %arg1: i32) -> (i32, i32, i32, i32, i32) {
    %c0_i32 = arith.constant 0 : i32
    %c0_i32_0 = arith.constant 0 : i32
    %c0_i32_1 = arith.constant 0 : i32
    %c0_i32_2 = arith.constant 0 : i32
    return %arg0, %arg1, %c0_i32, %c0_i32_0, %c0_i32_1 : i32, i32, i32, i32, i32
  }
  func.func @transform_2(%arg0: i32, %arg1: i32) -> (i32, i32) {
    %c0_i32 = arith.constant 0 : i32
    %c0_i32_0 = arith.constant 0 : i32
    %c0_i32_1 = arith.constant 0 : i32
    return %c0_i32, %c0_i32_0 : i32, i32
  }
  func.func @transform_3(%arg0: i32, %arg1: i32) -> (i32, i32, i32, i32) {
    %c0_i32 = arith.constant 0 : i32
    %c0_i32_0 = arith.constant 0 : i32
    %c0_i32_1 = arith.constant 0 : i32
    return %arg0, %arg1, %c0_i32, %c0_i32_0 : i32, i32, i32, i32
  }
  func.func @transform_4(%arg0: i32, %arg1: i32) -> (i32, i32, i32, i32) {
    %c0_i32 = arith.constant 0 : i32
    %c0_i32_0 = arith.constant 0 : i32
    %c0_i32_1 = arith.constant 0 : i32
    return %arg0, %arg1, %c0_i32, %c0_i32_0 : i32, i32, i32, i32
  }
}

module attributes {stable_mosaic.version = 11 : i64} {
  func.func @_conv2_kernel(%arg0: i32, %arg1: i32, %arg2: memref<1x8x16x128xbf16, #tpu.memory_space<vmem>>, %arg3: memref<1x1x2x16x128xbf16, #tpu.memory_space<vmem>>, %arg4: memref<1x128xf32, #tpu.memory_space<vmem>>, %arg5: memref<1x128xf32, #tpu.memory_space<vmem>>, %arg6: memref<1152x128xbf16, #tpu.memory_space<vmem>>, %arg7: memref<1x8x16x128xbf16, #tpu.memory_space<vmem>>, %arg8: memref<1x1x2x128xf32, #tpu.memory_space<vmem>>, %arg9: memref<10x34x128xbf16, #tpu.memory_space<vmem>>, %arg10: memref<8x16x1152xbf16, #tpu.memory_space<vmem>>) attributes {dimension_semantics = [#tpu.dimension_semantics<parallel>, #tpu.dimension_semantics<parallel>], iteration_bounds = array<i64: 2, 2>, scalar_prefetch = 0 : i64, scratch_operands = 2 : i64, tpu.core_type = #tpu.core_type<tc>, window_params = [{transform_indices = @transform_0, window_bounds = array<i64: 1, 8, 16, 128>}, {transform_indices = @transform_1, window_bounds = array<i64: 1, 1, 2, 16, 128>}, {pipeline_mode = #tpu.pipeline_mode<synchronous>, transform_indices = @transform_2, window_bounds = array<i64: 1, 128>}, {pipeline_mode = #tpu.pipeline_mode<synchronous>, transform_indices = @transform_3, window_bounds = array<i64: 1, 128>}, {pipeline_mode = #tpu.pipeline_mode<synchronous>, transform_indices = @transform_4, window_bounds = array<i64: 1152, 128>}, {transform_indices = @transform_5, window_bounds = array<i64: 1, 8, 16, 128>}, {transform_indices = @transform_6, window_bounds = array<i64: 1, 1, 2, 128>}]} {
    %c0 = arith.constant 0 : index
    %c0_0 = arith.constant 0 : index
    %0 = vector.load %arg4[%c0, %c0_0] : memref<1x128xf32, #tpu.memory_space<vmem>>, vector<1x128xf32>
    %c0_1 = arith.constant 0 : index
    %c0_2 = arith.constant 0 : index
    %1 = vector.load %arg5[%c0_1, %c0_2] : memref<1x128xf32, #tpu.memory_space<vmem>>, vector<1x128xf32>
    %c0_3 = arith.constant 0 : index
    %c0_4 = arith.constant 0 : index
    %c0_5 = arith.constant 0 : index
    %c0_6 = arith.constant 0 : index
    %2 = vector.load %arg2[%c0_3, %c0_4, %c0_5, %c0_6] : memref<1x8x16x128xbf16, #tpu.memory_space<vmem>>, vector<1x8x16x128xbf16>
    %3 = vector.shape_cast %2 : vector<1x8x16x128xbf16> to vector<8x16x128xbf16>
    %4 = arith.extf %3 : vector<8x16x128xbf16> to vector<8x16x128xf32>
    %5 = vector.shape_cast %0 : vector<1x128xf32> to vector<1x1x128xf32>
    %6 = vector.broadcast %5 : vector<1x1x128xf32> to vector<8x16x128xf32>
    %7 = arith.mulf %4, %6 : vector<8x16x128xf32>
    %8 = vector.shape_cast %1 : vector<1x128xf32> to vector<1x1x128xf32>
    %9 = vector.broadcast %8 : vector<1x1x128xf32> to vector<8x16x128xf32>
    %10 = arith.addf %7, %9 : vector<8x16x128xf32>
    %cst = arith.constant 0.000000e+00 : f32
    %11 = vector.broadcast %cst : f32 to vector<8x16x128xf32>
    %12 = arith.maximumf %10, %11 : vector<8x16x128xf32>
    %c0_7 = arith.constant 0 : index
    %c0_8 = arith.constant 0 : index
    %c0_9 = arith.constant 0 : index
    %c0_10 = arith.constant 0 : index
    %c0_11 = arith.constant 0 : index
    %13 = vector.load %arg3[%c0_7, %c0_8, %c0_9, %c0_10, %c0_11] : memref<1x1x2x16x128xbf16, #tpu.memory_space<vmem>>, vector<1x1x2x16x128xbf16>
    %14 = vector.shape_cast %13 : vector<1x1x2x16x128xbf16> to vector<1x2x16x128xbf16>
    %15 = vector.shape_cast %14 : vector<1x2x16x128xbf16> to vector<2x16x128xbf16>
    %16 = arith.extf %15 : vector<2x16x128xbf16> to vector<2x16x128xf32>
    %17 = vector.shape_cast %0 : vector<1x128xf32> to vector<1x1x128xf32>
    %18 = vector.broadcast %17 : vector<1x1x128xf32> to vector<2x16x128xf32>
    %19 = arith.mulf %16, %18 : vector<2x16x128xf32>
    %20 = vector.shape_cast %1 : vector<1x128xf32> to vector<1x1x128xf32>
    %21 = vector.broadcast %20 : vector<1x1x128xf32> to vector<2x16x128xf32>
    %22 = arith.addf %19, %21 : vector<2x16x128xf32>
    %c0_i32 = arith.constant 0 : i32
    %23 = arith.cmpi sgt, %arg1, %c0_i32 : i32
    %24 = vector.extract_strided_slice %22 {offsets = [0, 0, 0], sizes = [1, 16, 128], strides = [1, 1, 1]} : vector<2x16x128xf32> to vector<1x16x128xf32>
    %cst_12 = arith.constant 0.000000e+00 : f32
    %25 = vector.broadcast %cst_12 : f32 to vector<1x16x128xf32>
    %26 = arith.maximumf %24, %25 : vector<1x16x128xf32>
    %cst_13 = arith.constant 0.000000e+00 : f32
    %27 = vector.broadcast %cst_13 : f32 to vector<1x16x128xf32>
    %28 = arith.select %23, %26, %27 : vector<1x16x128xf32>
    %c1_i32 = arith.constant 1 : i32
    %29 = arith.cmpi slt, %arg1, %c1_i32 : i32
    %30 = vector.extract_strided_slice %22 {offsets = [1, 0, 0], sizes = [1, 16, 128], strides = [1, 1, 1]} : vector<2x16x128xf32> to vector<1x16x128xf32>
    %cst_14 = arith.constant 0.000000e+00 : f32
    %31 = vector.broadcast %cst_14 : f32 to vector<1x16x128xf32>
    %32 = arith.maximumf %30, %31 : vector<1x16x128xf32>
    %cst_15 = arith.constant 0.000000e+00 : f32
    %33 = vector.broadcast %cst_15 : f32 to vector<1x16x128xf32>
    %34 = arith.select %29, %32, %33 : vector<1x16x128xf32>
    %35 = arith.truncf %12 : vector<8x16x128xf32> to vector<8x16x128xbf16>
    %36 = arith.truncf %28 : vector<1x16x128xf32> to vector<1x16x128xbf16>
    %37 = arith.truncf %34 : vector<1x16x128xf32> to vector<1x16x128xbf16>
    %cst_16 = arith.constant 0.000000e+00 : bf16
    %38 = vector.broadcast %cst_16 : bf16 to vector<10x1x128xbf16>
    %c0_17 = arith.constant 0 : index
    %c15 = arith.constant 15 : index
    %c0_18 = arith.constant 0 : index
    %39 = vector.load %arg9[%c0_17, %c15, %c0_18] : memref<10x34x128xbf16, #tpu.memory_space<vmem>>, vector<10x1x128xbf16>
    tpu.vector_store %arg9[%c0_17, %c15, %c0_18], %38 {strides = array<i32>} : memref<10x34x128xbf16, #tpu.memory_space<vmem>>, vector<10x1x128xbf16>,
    %c0_19 = arith.constant 0 : index
    %c32 = arith.constant 32 : index
    %c0_20 = arith.constant 0 : index
    %40 = vector.load %arg9[%c0_19, %c32, %c0_20] : memref<10x34x128xbf16, #tpu.memory_space<vmem>>, vector<10x1x128xbf16>
    tpu.vector_store %arg9[%c0_19, %c32, %c0_20], %38 {strides = array<i32>} : memref<10x34x128xbf16, #tpu.memory_space<vmem>>, vector<10x1x128xbf16>,
    %c0_21 = arith.constant 0 : index
    %c16 = arith.constant 16 : index
    %c0_22 = arith.constant 0 : index
    %41 = vector.load %arg9[%c0_21, %c16, %c0_22] : memref<10x34x128xbf16, #tpu.memory_space<vmem>>, vector<1x16x128xbf16>
    tpu.vector_store %arg9[%c0_21, %c16, %c0_22], %36 {strides = array<i32>} : memref<10x34x128xbf16, #tpu.memory_space<vmem>>, vector<1x16x128xbf16>,
    %c9 = arith.constant 9 : index
    %c16_23 = arith.constant 16 : index
    %c0_24 = arith.constant 0 : index
    %42 = vector.load %arg9[%c9, %c16_23, %c0_24] : memref<10x34x128xbf16, #tpu.memory_space<vmem>>, vector<1x16x128xbf16>
    tpu.vector_store %arg9[%c9, %c16_23, %c0_24], %37 {strides = array<i32>} : memref<10x34x128xbf16, #tpu.memory_space<vmem>>, vector<1x16x128xbf16>,
    %c1 = arith.constant 1 : index
    %c16_25 = arith.constant 16 : index
    %c0_26 = arith.constant 0 : index
    %43 = vector.load %arg9[%c1, %c16_25, %c0_26] : memref<10x34x128xbf16, #tpu.memory_space<vmem>>, vector<8x16x128xbf16>
    tpu.vector_store %arg9[%c1, %c16_25, %c0_26], %35 {strides = array<i32>} : memref<10x34x128xbf16, #tpu.memory_space<vmem>>, vector<8x16x128xbf16>,
    %c0_27 = arith.constant 0 : index
    %c15_28 = arith.constant 15 : index
    %c0_29 = arith.constant 0 : index
    %44 = vector.load %arg9[%c0_27, %c15_28, %c0_29] : memref<10x34x128xbf16, #tpu.memory_space<vmem>>, vector<8x16x128xbf16>
    %c0_30 = arith.constant 0 : index
    %c0_31 = arith.constant 0 : index
    %c0_32 = arith.constant 0 : index
    %45 = vector.load %arg10[%c0_30, %c0_31, %c0_32] : memref<8x16x1152xbf16, #tpu.memory_space<vmem>>, vector<8x16x128xbf16>
    tpu.vector_store %arg10[%c0_30, %c0_31, %c0_32], %44 {strides = array<i32>} : memref<8x16x1152xbf16, #tpu.memory_space<vmem>>, vector<8x16x128xbf16>,
    %c0_33 = arith.constant 0 : index
    %c16_34 = arith.constant 16 : index
    %c0_35 = arith.constant 0 : index
    %46 = vector.load %arg9[%c0_33, %c16_34, %c0_35] : memref<10x34x128xbf16, #tpu.memory_space<vmem>>, vector<8x16x128xbf16>
    %c0_36 = arith.constant 0 : index
    %c0_37 = arith.constant 0 : index
    %c128 = arith.constant 128 : index
    %47 = vector.load %arg10[%c0_36, %c0_37, %c128] : memref<8x16x1152xbf16, #tpu.memory_space<vmem>>, vector<8x16x128xbf16>
    tpu.vector_store %arg10[%c0_36, %c0_37, %c128], %46 {strides = array<i32>} : memref<8x16x1152xbf16, #tpu.memory_space<vmem>>, vector<8x16x128xbf16>,
    %c0_38 = arith.constant 0 : index
    %c17 = arith.constant 17 : index
    %c0_39 = arith.constant 0 : index
    %48 = vector.load %arg9[%c0_38, %c17, %c0_39] : memref<10x34x128xbf16, #tpu.memory_space<vmem>>, vector<8x16x128xbf16>
    %c0_40 = arith.constant 0 : index
    %c0_41 = arith.constant 0 : index
    %c256 = arith.constant 256 : index
    %49 = vector.load %arg10[%c0_40, %c0_41, %c256] : memref<8x16x1152xbf16, #tpu.memory_space<vmem>>, vector<8x16x128xbf16>
    tpu.vector_store %arg10[%c0_40, %c0_41, %c256], %48 {strides = array<i32>} : memref<8x16x1152xbf16, #tpu.memory_space<vmem>>, vector<8x16x128xbf16>,
    %c1_42 = arith.constant 1 : index
    %c15_43 = arith.constant 15 : index
    %c0_44 = arith.constant 0 : index
    %50 = vector.load %arg9[%c1_42, %c15_43, %c0_44] : memref<10x34x128xbf16, #tpu.memory_space<vmem>>, vector<8x16x128xbf16>
    %c0_45 = arith.constant 0 : index
    %c0_46 = arith.constant 0 : index
    %c384 = arith.constant 384 : index
    %51 = vector.load %arg10[%c0_45, %c0_46, %c384] : memref<8x16x1152xbf16, #tpu.memory_space<vmem>>, vector<8x16x128xbf16>
    tpu.vector_store %arg10[%c0_45, %c0_46, %c384], %50 {strides = array<i32>} : memref<8x16x1152xbf16, #tpu.memory_space<vmem>>, vector<8x16x128xbf16>,
    %c1_47 = arith.constant 1 : index
    %c16_48 = arith.constant 16 : index
    %c0_49 = arith.constant 0 : index
    %52 = vector.load %arg9[%c1_47, %c16_48, %c0_49] : memref<10x34x128xbf16, #tpu.memory_space<vmem>>, vector<8x16x128xbf16>
    %c0_50 = arith.constant 0 : index
    %c0_51 = arith.constant 0 : index
    %c512 = arith.constant 512 : index
    %53 = vector.load %arg10[%c0_50, %c0_51, %c512] : memref<8x16x1152xbf16, #tpu.memory_space<vmem>>, vector<8x16x128xbf16>
    tpu.vector_store %arg10[%c0_50, %c0_51, %c512], %52 {strides = array<i32>} : memref<8x16x1152xbf16, #tpu.memory_space<vmem>>, vector<8x16x128xbf16>,
    %c1_52 = arith.constant 1 : index
    %c17_53 = arith.constant 17 : index
    %c0_54 = arith.constant 0 : index
    %54 = vector.load %arg9[%c1_52, %c17_53, %c0_54] : memref<10x34x128xbf16, #tpu.memory_space<vmem>>, vector<8x16x128xbf16>
    %c0_55 = arith.constant 0 : index
    %c0_56 = arith.constant 0 : index
    %c640 = arith.constant 640 : index
    %55 = vector.load %arg10[%c0_55, %c0_56, %c640] : memref<8x16x1152xbf16, #tpu.memory_space<vmem>>, vector<8x16x128xbf16>
    tpu.vector_store %arg10[%c0_55, %c0_56, %c640], %54 {strides = array<i32>} : memref<8x16x1152xbf16, #tpu.memory_space<vmem>>, vector<8x16x128xbf16>,
    %c2 = arith.constant 2 : index
    %c15_57 = arith.constant 15 : index
    %c0_58 = arith.constant 0 : index
    %56 = vector.load %arg9[%c2, %c15_57, %c0_58] : memref<10x34x128xbf16, #tpu.memory_space<vmem>>, vector<8x16x128xbf16>
    %c0_59 = arith.constant 0 : index
    %c0_60 = arith.constant 0 : index
    %c768 = arith.constant 768 : index
    %57 = vector.load %arg10[%c0_59, %c0_60, %c768] : memref<8x16x1152xbf16, #tpu.memory_space<vmem>>, vector<8x16x128xbf16>
    tpu.vector_store %arg10[%c0_59, %c0_60, %c768], %56 {strides = array<i32>} : memref<8x16x1152xbf16, #tpu.memory_space<vmem>>, vector<8x16x128xbf16>,
    %c2_61 = arith.constant 2 : index
    %c16_62 = arith.constant 16 : index
    %c0_63 = arith.constant 0 : index
    %58 = vector.load %arg9[%c2_61, %c16_62, %c0_63] : memref<10x34x128xbf16, #tpu.memory_space<vmem>>, vector<8x16x128xbf16>
    %c0_64 = arith.constant 0 : index
    %c0_65 = arith.constant 0 : index
    %c896 = arith.constant 896 : index
    %59 = vector.load %arg10[%c0_64, %c0_65, %c896] : memref<8x16x1152xbf16, #tpu.memory_space<vmem>>, vector<8x16x128xbf16>
    tpu.vector_store %arg10[%c0_64, %c0_65, %c896], %58 {strides = array<i32>} : memref<8x16x1152xbf16, #tpu.memory_space<vmem>>, vector<8x16x128xbf16>,
    %c2_66 = arith.constant 2 : index
    %c17_67 = arith.constant 17 : index
    %c0_68 = arith.constant 0 : index
    %60 = vector.load %arg9[%c2_66, %c17_67, %c0_68] : memref<10x34x128xbf16, #tpu.memory_space<vmem>>, vector<8x16x128xbf16>
    %c0_69 = arith.constant 0 : index
    %c0_70 = arith.constant 0 : index
    %c1024 = arith.constant 1024 : index
    %61 = vector.load %arg10[%c0_69, %c0_70, %c1024] : memref<8x16x1152xbf16, #tpu.memory_space<vmem>>, vector<8x16x128xbf16>
    tpu.vector_store %arg10[%c0_69, %c0_70, %c1024], %60 {strides = array<i32>} : memref<8x16x1152xbf16, #tpu.memory_space<vmem>>, vector<8x16x128xbf16>,
    %c0_71 = arith.constant 0 : index
    %c0_72 = arith.constant 0 : index
    %c0_73 = arith.constant 0 : index
    %62 = vector.load %arg10[%c0_71, %c0_72, %c0_73] : memref<8x16x1152xbf16, #tpu.memory_space<vmem>>, vector<8x16x1152xbf16>
    %63 = vector.shape_cast %62 : vector<8x16x1152xbf16> to vector<128x1152xbf16>
    %c0_74 = arith.constant 0 : index
    %c0_75 = arith.constant 0 : index
    %64 = vector.load %arg6[%c0_74, %c0_75] : memref<1152x128xbf16, #tpu.memory_space<vmem>>, vector<1152x128xbf16>
    %cst_76 = arith.constant dense<0.000000e+00> : vector<128x128xf32>
    %65 = tpu.matmul %63, %64, %cst_76 {dimension_numbers = #tpu.dot_dimension_numbers<[1], [0], [0], [1], [0, 0, 1, 1], [], []>} : vector<128x1152xbf16>, vector<1152x128xbf16>, vector<128x128xf32> -> vector<128x128xf32>
    %66 = vector.shape_cast %65 : vector<128x128xf32> to vector<8x16x128xf32>
    %67 = arith.truncf %66 : vector<8x16x128xf32> to vector<8x16x128xbf16>
    %c0_77 = arith.constant 0 : index
    %c0_78 = arith.constant 0 : index
    %c0_79 = arith.constant 0 : index
    %c0_80 = arith.constant 0 : index
    %68 = vector.load %arg7[%c0_77, %c0_78, %c0_79, %c0_80] : memref<1x8x16x128xbf16, #tpu.memory_space<vmem>>, vector<1x8x16x128xbf16>
    %69 = vector.shape_cast %68 : vector<1x8x16x128xbf16> to vector<8x16x128xbf16>
    %70 = vector.shape_cast %67 : vector<8x16x128xbf16> to vector<1x8x16x128xbf16>
    tpu.vector_store %arg7[%c0_77, %c0_78, %c0_79, %c0_80], %70 {strides = array<i32>} : memref<1x8x16x128xbf16, #tpu.memory_space<vmem>>, vector<1x8x16x128xbf16>,
    %cst_81 = arith.constant dense<0.000000e+00> : vector<128xf32>
    %71 = vector.multi_reduction <add>, %65, %cst_81 [0] : vector<128x128xf32> to vector<128xf32>
    %72 = vector.shape_cast %71 : vector<128xf32> to vector<1x1x1x128xf32>
    %c0_82 = arith.constant 0 : index
    %c0_83 = arith.constant 0 : index
    %c0_84 = arith.constant 0 : index
    %c0_85 = arith.constant 0 : index
    %73 = vector.load %arg8[%c0_82, %c0_83, %c0_84, %c0_85] : memref<1x1x2x128xf32, #tpu.memory_space<vmem>>, vector<1x1x1x128xf32>
    tpu.vector_store %arg8[%c0_82, %c0_83, %c0_84, %c0_85], %72 {strides = array<i32>} : memref<1x1x2x128xf32, #tpu.memory_space<vmem>>, vector<1x1x1x128xf32>,
    %74 = arith.mulf %65, %65 : vector<128x128xf32>
    %cst_86 = arith.constant dense<0.000000e+00> : vector<128xf32>
    %75 = vector.multi_reduction <add>, %74, %cst_86 [0] : vector<128x128xf32> to vector<128xf32>
    %76 = vector.shape_cast %75 : vector<128xf32> to vector<1x1x1x128xf32>
    %c0_87 = arith.constant 0 : index
    %c0_88 = arith.constant 0 : index
    %c1_89 = arith.constant 1 : index
    %c0_90 = arith.constant 0 : index
    %77 = vector.load %arg8[%c0_87, %c0_88, %c1_89, %c0_90] : memref<1x1x2x128xf32, #tpu.memory_space<vmem>>, vector<1x1x1x128xf32>
    tpu.vector_store %arg8[%c0_87, %c0_88, %c1_89, %c0_90], %76 {strides = array<i32>} : memref<1x1x2x128xf32, #tpu.memory_space<vmem>>, vector<1x1x1x128xf32>,
    return
  }
  func.func @transform_0(%arg0: i32, %arg1: i32) -> (i32, i32, i32, i32) {
    %c0_i32 = arith.constant 0 : i32
    %c0_i32_0 = arith.constant 0 : i32
    %c0_i32_1 = arith.constant 0 : i32
    return %arg0, %arg1, %c0_i32, %c0_i32_0 : i32, i32, i32, i32
  }
  func.func @transform_1(%arg0: i32, %arg1: i32) -> (i32, i32, i32, i32, i32) {
    %c0_i32 = arith.constant 0 : i32
    %c0_i32_0 = arith.constant 0 : i32
    %c0_i32_1 = arith.constant 0 : i32
    %c0_i32_2 = arith.constant 0 : i32
    return %arg0, %arg1, %c0_i32, %c0_i32_0, %c0_i32_1 : i32, i32, i32, i32, i32
  }
  func.func @transform_2(%arg0: i32, %arg1: i32) -> (i32, i32) {
    %c0_i32 = arith.constant 0 : i32
    %c0_i32_0 = arith.constant 0 : i32
    %c0_i32_1 = arith.constant 0 : i32
    return %c0_i32, %c0_i32_0 : i32, i32
  }
  func.func @transform_3(%arg0: i32, %arg1: i32) -> (i32, i32) {
    %c0_i32 = arith.constant 0 : i32
    %c0_i32_0 = arith.constant 0 : i32
    %c0_i32_1 = arith.constant 0 : i32
    return %c0_i32, %c0_i32_0 : i32, i32
  }
  func.func @transform_4(%arg0: i32, %arg1: i32) -> (i32, i32) {
    %c0_i32 = arith.constant 0 : i32
    %c0_i32_0 = arith.constant 0 : i32
    %c0_i32_1 = arith.constant 0 : i32
    return %c0_i32, %c0_i32_0 : i32, i32
  }
  func.func @transform_5(%arg0: i32, %arg1: i32) -> (i32, i32, i32, i32) {
    %c0_i32 = arith.constant 0 : i32
    %c0_i32_0 = arith.constant 0 : i32
    %c0_i32_1 = arith.constant 0 : i32
    return %arg0, %arg1, %c0_i32, %c0_i32_0 : i32, i32, i32, i32
  }
  func.func @transform_6(%arg0: i32, %arg1: i32) -> (i32, i32, i32, i32) {
    %c0_i32 = arith.constant 0 : i32
    %c0_i32_0 = arith.constant 0 : i32
    %c0_i32_1 = arith.constant 0 : i32
    return %arg0, %arg1, %c0_i32, %c0_i32_0 : i32, i32, i32, i32
  }
}

module attributes {stable_mosaic.version = 11 : i64} {
  func.func @_bn_relu_out_kernel(%arg0: i32, %arg1: i32, %arg2: memref<1x8x16x128xbf16, #tpu.memory_space<vmem>>, %arg3: memref<1x128xf32, #tpu.memory_space<vmem>>, %arg4: memref<1x128xf32, #tpu.memory_space<vmem>>, %arg5: memref<1x8x16x8xf32, #tpu.memory_space<vmem>>) attributes {dimension_semantics = [#tpu.dimension_semantics<parallel>, #tpu.dimension_semantics<parallel>], iteration_bounds = array<i64: 2, 2>, scalar_prefetch = 0 : i64, scratch_operands = 0 : i64, tpu.core_type = #tpu.core_type<tc>, window_params = [{transform_indices = @transform_0, window_bounds = array<i64: 1, 8, 16, 128>}, {pipeline_mode = #tpu.pipeline_mode<synchronous>, transform_indices = @transform_1, window_bounds = array<i64: 1, 128>}, {pipeline_mode = #tpu.pipeline_mode<synchronous>, transform_indices = @transform_2, window_bounds = array<i64: 1, 128>}, {transform_indices = @transform_3, window_bounds = array<i64: 1, 8, 16, 8>}]} {
    %c0 = arith.constant 0 : index
    %c0_0 = arith.constant 0 : index
    %c0_1 = arith.constant 0 : index
    %c0_2 = arith.constant 0 : index
    %0 = vector.load %arg2[%c0, %c0_0, %c0_1, %c0_2] : memref<1x8x16x128xbf16, #tpu.memory_space<vmem>>, vector<1x8x16x128xbf16>
    %1 = vector.shape_cast %0 : vector<1x8x16x128xbf16> to vector<8x16x128xbf16>
    %2 = arith.extf %1 : vector<8x16x128xbf16> to vector<8x16x128xf32>
    %c0_3 = arith.constant 0 : index
    %c0_4 = arith.constant 0 : index
    %3 = vector.load %arg3[%c0_3, %c0_4] : memref<1x128xf32, #tpu.memory_space<vmem>>, vector<1x128xf32>
    %4 = vector.shape_cast %3 : vector<1x128xf32> to vector<1x1x128xf32>
    %5 = vector.broadcast %4 : vector<1x1x128xf32> to vector<8x16x128xf32>
    %6 = arith.mulf %2, %5 : vector<8x16x128xf32>
    %c0_5 = arith.constant 0 : index
    %c0_6 = arith.constant 0 : index
    %7 = vector.load %arg4[%c0_5, %c0_6] : memref<1x128xf32, #tpu.memory_space<vmem>>, vector<1x128xf32>
    %8 = vector.shape_cast %7 : vector<1x128xf32> to vector<1x1x128xf32>
    %9 = vector.broadcast %8 : vector<1x1x128xf32> to vector<8x16x128xf32>
    %10 = arith.addf %6, %9 : vector<8x16x128xf32>
    %cst = arith.constant 0.000000e+00 : f32
    %11 = vector.broadcast %cst : f32 to vector<8x16x128xf32>
    %12 = arith.maximumf %10, %11 : vector<8x16x128xf32>
    %13 = vector.extract_strided_slice %12 {offsets = [0, 0, 0], sizes = [8, 16, 8], strides = [1, 1, 1]} : vector<8x16x128xf32> to vector<8x16x8xf32>
    %c0_7 = arith.constant 0 : index
    %c0_8 = arith.constant 0 : index
    %c0_9 = arith.constant 0 : index
    %c0_10 = arith.constant 0 : index
    %14 = vector.load %arg5[%c0_7, %c0_8, %c0_9, %c0_10] : memref<1x8x16x8xf32, #tpu.memory_space<vmem>>, vector<1x8x16x8xf32>
    %15 = vector.shape_cast %14 : vector<1x8x16x8xf32> to vector<8x16x8xf32>
    %16 = vector.shape_cast %13 : vector<8x16x8xf32> to vector<1x8x16x8xf32>
    tpu.vector_store %arg5[%c0_7, %c0_8, %c0_9, %c0_10], %16 {strides = array<i32>} : memref<1x8x16x8xf32, #tpu.memory_space<vmem>>, vector<1x8x16x8xf32>,
    return
  }
  func.func @transform_0(%arg0: i32, %arg1: i32) -> (i32, i32, i32, i32) {
    %c0_i32 = arith.constant 0 : i32
    %c0_i32_0 = arith.constant 0 : i32
    %c0_i32_1 = arith.constant 0 : i32
    return %arg0, %arg1, %c0_i32, %c0_i32_0 : i32, i32, i32, i32
  }
  func.func @transform_1(%arg0: i32, %arg1: i32) -> (i32, i32) {
    %c0_i32 = arith.constant 0 : i32
    %c0_i32_0 = arith.constant 0 : i32
    %c0_i32_1 = arith.constant 0 : i32
    return %c0_i32, %c0_i32_0 : i32, i32
  }
  func.func @transform_2(%arg0: i32, %arg1: i32) -> (i32, i32) {
    %c0_i32 = arith.constant 0 : i32
    %c0_i32_0 = arith.constant 0 : i32
    %c0_i32_1 = arith.constant 0 : i32
    return %c0_i32, %c0_i32_0 : i32, i32
  }
  func.func @transform_3(%arg0: i32, %arg1: i32) -> (i32, i32, i32, i32) {
    %c0_i32 = arith.constant 0 : i32
    %c0_i32_0 = arith.constant 0 : i32
    %c0_i32_1 = arith.constant 0 : i32
    return %arg0, %arg1, %c0_i32, %c0_i32_0 : i32, i32, i32, i32
  }
}

</mosaic_0001>

<llo_original>
// kernel: double_conv.5
$region0: #{double_conv.5}
  #allocation0 [shape = 'u32[]', space=smem, size = 0x4, offset = 0x4, fixed_abs, tag = 'smem constant byte address 0x4 - core index']
  #allocation1 [shape = 'u32[144,128]{1,0:T(1,128)}', space=vmem, size = 0x12000, scoped, tag = 'internal scratch']
  %s0 = inlined_call_operand.vmem [shape: bf16[2,16,16,128], index: 0, kind: input, shape index: {}]
  %s1 = inlined_call_operand.vmem [shape: f32[1,128], index: 1, kind: input, shape index: {}]
  %s2 = inlined_call_operand.vmem [shape: f32[1,128], index: 2, kind: input, shape index: {}]
  %s3 = inlined_call_operand.vmem [shape: f32[2,16,16,8], index: 3, kind: output, shape index: {}]
  %s4 = sld [smem:[#allocation0]]
  $region45: #{double_conv.5} parent=0
    _
  %s6 = ssub.s32 1, %s4
  %s7 = scalar_select 0, %s6, %s4
  loop: start=0, step=1, limit=6
  $region2: #{double_conv.5} parent=0 // loop_pre_header
    _
  $region3: #{double_conv.5} parent=0 // loop_header
    %s9 = sphi 0, %s13
    %p10 = scmp.ge.s32.totalorder %s9, 6
    %s16 = sphi 0, %s28
    %s17 = sphi 0, %s24
    %s18 = sphi 0, %s16
    %s19 = sphi 0, %s17
    %s20 = sphi 0, %s18
    %s21 = sphi 0, %s19
    %s33 = sphi 0, %s35
    %s36 = sphi 0, %s33
    %s37 = sphi 0, %s36
    %s53 = sphi 0, %s37
    %s57 = sphi 0, %s57
    %s59 = sphi 0, %s57
    %s60 = sphi 0, %s59
    %s74 = sphi 0, %s60
    %s78 = sphi 0, %s78
    %s80 = sphi 0, %s78
    %s81 = sphi 0, %s80
    %s95 = sphi 0, %s81
    %s103 = sphi 0, %s105
    %s106 = sphi 0, %s103
    %s107 = sphi 0, %s106
    %s123 = sphi 0, %s107
  $region4: #{double_conv.5} parent=0 // loop_header_branch
    %12 = sbr.rel (%p10) target = $region8
  $region5: #{double_conv.5} parent=0 // loop_body
    %s14 = ssub.s32 %s9, 1
    %s15 = ssub.s32 %s9, 2
    %s22 = sadd.s32 1, %s17
    %p23 = scmp.ge.s32.totalorder %s22, 2
    %s24 = scalar_select %p23, 0, %s22
    %s25 = sadd.s32 1, %s16
    %s26 = scalar_select %p23, %s25, %s16
    %p27 = scmp.ge.s32.totalorder %s26, 2
    %s28 = scalar_select %p27, 0, %s26
    %s29 = ssub.s32 %s16, %s28
    %s30 = ssub.s32 %s17, %s24
    %s31 = sor.u32 %s29, %s30
    %p32 = scmp.eq.s32.totalorder %s31, 0
    %s34 = sadd.s32 %s33, 1
    %s35 = scalar_select %p32, %s33, %s34
    %p38 = pneg %p32
    %p39 = scmp.eq.s32.totalorder %s9, 3
    %p40 = por %p38, %p39
    %p41 = scmp.ne.s32.totalorder %s33, %s36
    %p42 = scmp.eq.s32.totalorder %s9, 0
    %p43 = por %p41, %p42
    %p44 = scmp.ne.s32.totalorder %s33, %s36
    %p45 = scmp.eq.s32.totalorder %s14, 3
    %p46 = por %p44, %p45
    %p47 = scmp.ne.s32.totalorder %s36, %s37
    %p48 = scmp.eq.s32.totalorder %s14, 0
    %p49 = por %p47, %p48
    %p50 = scmp.ne.s32.totalorder %s36, %s37
    %p51 = scmp.eq.s32.totalorder %s15, 3
    %p52 = por %p50, %p51
    %p54 = scmp.ne.s32.totalorder %s37, %s53
    %p55 = scmp.eq.s32.totalorder %s15, 0
    %p56 = por %p54, %p55
    %s58 = sadd.s32 %s57, 1
    %p61 = scmp.eq.s32.totalorder %s9, 3
    %p62 = scmp.ne.s32.totalorder %s57, %s59
    %p63 = scmp.eq.s32.totalorder %s9, 0
    %p64 = por %p62, %p63
    %p65 = scmp.ne.s32.totalorder %s57, %s59
    %p66 = scmp.eq.s32.totalorder %s14, 3
    %p67 = por %p65, %p66
    %p68 = scmp.ne.s32.totalorder %s59, %s60
    %p69 = scmp.eq.s32.totalorder %s14, 0
    %p70 = por %p68, %p69
    %p71 = scmp.ne.s32.totalorder %s59, %s60
    %p72 = scmp.eq.s32.totalorder %s15, 3
    %p73 = por %p71, %p72
    %p75 = scmp.ne.s32.totalorder %s60, %s74
    %p76 = scmp.eq.s32.totalorder %s15, 0
    %p77 = por %p75, %p76
    %s79 = sadd.s32 %s78, 1
    %p82 = scmp.eq.s32.totalorder %s9, 3
    %p83 = scmp.ne.s32.totalorder %s78, %s80
    %p84 = scmp.eq.s32.totalorder %s9, 0
    %p85 = por %p83, %p84
    %p86 = scmp.ne.s32.totalorder %s78, %s80
    %p87 = scmp.eq.s32.totalorder %s14, 3
    %p88 = por %p86, %p87
    %p89 = scmp.ne.s32.totalorder %s80, %s81
    %p90 = scmp.eq.s32.totalorder %s14, 0
    %p91 = por %p89, %p90
    %p92 = scmp.ne.s32.totalorder %s80, %s81
    %p93 = scmp.eq.s32.totalorder %s15, 3
    %p94 = por %p92, %p93
    %p96 = scmp.ne.s32.totalorder %s81, %s95
    %p97 = scmp.eq.s32.totalorder %s15, 0
    %p98 = por %p96, %p97
    %s99 = ssub.s32 %s16, %s28
    %s100 = ssub.s32 %s17, %s24
    %s101 = sor.u32 %s99, %s100
    %p102 = scmp.eq.s32.totalorder %s101, 0
    %s104 = sadd.s32 %s103, 1
    %s105 = scalar_select %p102, %s103, %s104
    %p108 = pneg %p102
    %p109 = scmp.eq.s32.totalorder %s9, 3
    %p110 = por %p108, %p109
    %p111 = scmp.ne.s32.totalorder %s103, %s106
    %p112 = scmp.eq.s32.totalorder %s9, 0
    %p113 = por %p111, %p112
    %p114 = scmp.ne.s32.totalorder %s103, %s106
    %p115 = scmp.eq.s32.totalorder %s14, 3
    %p116 = por %p114, %p115
    %p117 = scmp.ne.s32.totalorder %s106, %s107
    %p118 = scmp.eq.s32.totalorder %s14, 0
    %p119 = por %p117, %p118
    %p120 = scmp.ne.s32.totalorder %s106, %s107
    %p121 = scmp.eq.s32.totalorder %s15, 3
    %p122 = por %p120, %p121
    %p124 = scmp.ne.s32.totalorder %s107, %s123
    %p125 = scmp.eq.s32.totalorder %s15, 0
    %p126 = por %p124, %p125
    %p127 = scmp.le.s32.totalorder 1, %s9
    %p128 = scmp.lt.s32.totalorder %s9, 5
    %p129 = pnand %p127, %p128
    %p130 = pneg %p129
    // Predicated region
    $region9: #{double_conv.5} parent=5 // pred_check
      _
    $region10: #{double_conv.5} parent=5 // pred_check_branch
      %132 = sbr.rel (%p129) target = $region12
    $region11: #{double_conv.5} parent=5 // pred_region
      %s133 = ssub.s32 %s9, 1
      // Predicated region
      $region13: #{double_conv.5} parent=11 // pred_check
        %p134 = pneg %p70
      $region14: #{double_conv.5} parent=11 // pred_check_branch
        %136 = sbr.rel (%p134) target = $region16
      $region15: #{double_conv.5} parent=11 // pred_region
        _
      $region16: #{double_conv.5} parent=11 // pred_fallthru
        _
      // Predicated region
      $region17: #{double_conv.5} parent=11 // pred_check
        %p137 = pneg %p91
      $region18: #{double_conv.5} parent=11 // pred_check_branch
        %139 = sbr.rel (%p137) target = $region20
      $region19: #{double_conv.5} parent=11 // pred_region
        _
      $region20: #{double_conv.5} parent=11 // pred_fallthru
        _
    $region12: #{double_conv.5} parent=5 // pred_fallthru
      _
    %p140 = scmp.lt.s32.totalorder %s9, 4
    // Predicated region
    $region21: #{double_conv.5} parent=5 // pred_check
      %p141 = pneg %p140
    $region22: #{double_conv.5} parent=5 // pred_check_branch
      %143 = sbr.rel (%p141) target = $region24
    $region23: #{double_conv.5} parent=5 // pred_region
      // Predicated region
      $region25: #{double_conv.5} parent=23 // pred_check
        %p144 = pneg %p43
      $region26: #{double_conv.5} parent=23 // pred_check_branch
        %146 = sbr.rel (%p144) target = $region28
      $region27: #{double_conv.5} parent=23 // pred_region
        %s147 = smul.u32 8, %s17
        %p148 = scmp.lt.s32.totalorder %s16, 1
        %s149 = scalar_select %p148, %s16, 1
        %p150 = scmp.lt.s32.totalorder %s147, 15
        %s151 = scalar_select %p150, %s147, 15
        %s152 = smul.addr %s151, 2
        %s153 = smul.addr %s149, 32
        %s154 = sadd.s32 %s152, %s153
        %s155 = smul.addr %s154, 4
        %s156 = scalar_lea.vmem %s0, %s155
        %s157 = smul.u32 8, %s17
      $region28: #{double_conv.5} parent=23 // pred_fallthru
        _
    $region24: #{double_conv.5} parent=5 // pred_fallthru
      _
    %p158 = scmp.le.s32.totalorder 1, %s9
    %p159 = scmp.lt.s32.totalorder %s9, 5
    %p160 = pnand %p158, %p159
    %p161 = pneg %p160
    // Predicated region
    $region29: #{double_conv.5} parent=5 // pred_check
      _
    $region30: #{double_conv.5} parent=5 // pred_check_branch
      %163 = sbr.rel (%p160) target = $region32
    $region31: #{double_conv.5} parent=5 // pred_region
      %s164 = ssub.s32 %s9, 1
      %s165 = smul.u32 8, %s19
      %p166 = scmp.lt.s32.totalorder %s18, 1
      %s167 = scalar_select %p166, %s18, 1
      %p168 = scmp.lt.s32.totalorder %s165, 15
      %s169 = scalar_select %p168, %s165, 15
      %s170 = smul.addr %s169, 2
      %s171 = smul.addr %s167, 32
      %s172 = sadd.s32 %s170, %s171
      %s173 = smul.addr %s172, 4
      %s174 = scalar_lea.vmem %s0, %s173
      %p175 = pneg %p49
      %p176 = pneg %p46
      %p177 = pneg %p70
      %p178 = pneg %p67
      %p179 = pneg %p91
      %p180 = pneg %p88
      %p181 = pneg %p119
      %p182 = pneg %p116
      %s183 = smul.u32 8, %s19
      %p184 = scmp.lt.s32.totalorder %s18, 1
      %s185 = scalar_select %p184, %s18, 1
      %p186 = scmp.lt.s32.totalorder %s183, 15
      %s187 = scalar_select %p186, %s183, 15
      %s188 = smul.addr %s187, 2
      %s189 = smul.addr %s185, 32
      %s190 = sadd.s32 %s188, %s189
      %s191 = smul.addr %s190, 8
      %s192 = scalar_lea.vmem %s3, %s191
      %s193 = smul.u32 8, %s19
      %p194 = scmp.lt.s32.totalorder %s18, 1
      %s195 = scalar_select %p194, %s18, 1
      %p196 = scmp.lt.s32.totalorder %s193, 15
      %s197 = scalar_select %p196, %s193, 15
      %s198 = smul.addr %s197, 2
      %s199 = smul.addr %s195, 32
      %s200 = sadd.s32 %s198, %s199
      %s201 = smul.addr %s200, 4
      %s202 = scalar_lea.vmem %s0, %s201
      %s203 = smul.u32 8, %s19
      %s204 = smul.u32 8, %s19
      %p205 = scmp.lt.s32.totalorder %s18, 1
      %s206 = scalar_select %p205, %s18, 1
      %p207 = scmp.lt.s32.totalorder %s204, 15
      %s208 = scalar_select %p207, %s204, 15
      %s209 = smul.addr %s208, 2
      %s210 = smul.addr %s206, 32
      %s211 = sadd.s32 %s209, %s210
      %s212 = smul.addr %s211, 8
      %s213 = scalar_lea.vmem %s3, %s212
      %s214 = smul.u32 8, %s19
      %v215 = vld [vmem:[%s202] sm:$0xf]
      %v216 = vld [vmem:[%s202 + $0x4] sm:$0xf]
      %v217 = vld [vmem:[%s202 + $0x8] sm:$0xf]
      %v218 = vld [vmem:[%s202 + $0xc] sm:$0xf]
      %v219 = vld [vmem:[%s202 + $0x10] sm:$0xf]
      %v220 = vld [vmem:[%s202 + $0x14] sm:$0xf]
      %v221 = vld [vmem:[%s202 + $0x18] sm:$0xf]
      %v222 = vld [vmem:[%s202 + $0x1c] sm:$0xf]
      %v223 = vld [vmem:[%s202 + $0x20] sm:$0xf]
      %v224 = vld [vmem:[%s202 + $0x24] sm:$0xf]
      %v225 = vld [vmem:[%s202 + $0x28] sm:$0xf]
      %v226 = vld [vmem:[%s202 + $0x2c] sm:$0xf]
      %v227 = vld [vmem:[%s202 + $0x30] sm:$0xf]
      %v228 = vld [vmem:[%s202 + $0x34] sm:$0xf]
      %v229 = vld [vmem:[%s202 + $0x38] sm:$0xf]
      %v230 = vld [vmem:[%s202 + $0x3c] sm:$0xf]
      %v231 = vunpack.c.l.bf16 %v215
      %v232 = vunpack.c.l.bf16 %v216
      %v233 = vunpack.c.l.bf16 %v217
      %v234 = vunpack.c.l.bf16 %v218
      %v235 = vunpack.c.l.bf16 %v219
      %v236 = vunpack.c.l.bf16 %v220
      %v237 = vunpack.c.l.bf16 %v221
      %v238 = vunpack.c.l.bf16 %v222
      %v239 = vunpack.c.l.bf16 %v223
      %v240 = vunpack.c.l.bf16 %v224
      %v241 = vunpack.c.l.bf16 %v225
      %v242 = vunpack.c.l.bf16 %v226
      %v243 = vunpack.c.l.bf16 %v227
      %v244 = vunpack.c.l.bf16 %v228
      %v245 = vunpack.c.l.bf16 %v229
      %v246 = vunpack.c.l.bf16 %v230
      %v247 = vld [vmem:[%s1] sm:$0x1]
      %v249 = vlaneseq
      %v250 = vshrl.u32 %v249, 7
      %v251 = vsub.s32 0, %v250
      %v252 = vrot.slane %v247, %v251
      %v254 = vmul.f32 %v231, %v252
      %v255 = vmul.f32 %v232, %v252
      %v256 = vmul.f32 %v233, %v252
      %v257 = vmul.f32 %v234, %v252
      %v258 = vmul.f32 %v235, %v252
      %v259 = vmul.f32 %v236, %v252
      %v260 = vmul.f32 %v237, %v252
      %v261 = vmul.f32 %v238, %v252
      %v262 = vmul.f32 %v239, %v252
      %v263 = vmul.f32 %v240, %v252
      %v264 = vmul.f32 %v241, %v252
      %v265 = vmul.f32 %v242, %v252
      %v266 = vmul.f32 %v243, %v252
      %v267 = vmul.f32 %v244, %v252
      %v268 = vmul.f32 %v245, %v252
      %v269 = vmul.f32 %v246, %v252
      %v270 = vld [vmem:[%s2] sm:$0x1]
      %v272 = vlaneseq
      %v273 = vshrl.u32 %v272, 7
      %v274 = vsub.s32 0, %v273
      %v275 = vrot.slane %v270, %v274
      %v277 = vadd.f32 %v254, %v275
      %v278 = vadd.f32 %v255, %v275
      %v279 = vadd.f32 %v256, %v275
      %v280 = vadd.f32 %v257, %v275
      %v281 = vadd.f32 %v258, %v275
      %v282 = vadd.f32 %v259, %v275
      %v283 = vadd.f32 %v260, %v275
      %v284 = vadd.f32 %v261, %v275
      %v285 = vadd.f32 %v262, %v275
      %v286 = vadd.f32 %v263, %v275
      %v287 = vadd.f32 %v264, %v275
      %v288 = vadd.f32 %v265, %v275
      %v289 = vadd.f32 %v266, %v275
      %v290 = vadd.f32 %v267, %v275
      %v291 = vadd.f32 %v268, %v275
      %v292 = vadd.f32 %v269, %v275
      %v293 = vmax.f32 %v277, 0.0
      %v294 = vmax.f32 %v278, 0.0
      %v295 = vmax.f32 %v279, 0.0
      %v296 = vmax.f32 %v280, 0.0
      %v297 = vmax.f32 %v281, 0.0
      %v298 = vmax.f32 %v282, 0.0
      %v299 = vmax.f32 %v283, 0.0
      %v300 = vmax.f32 %v284, 0.0
      %v301 = vmax.f32 %v285, 0.0
      %v302 = vmax.f32 %v286, 0.0
      %v303 = vmax.f32 %v287, 0.0
      %v304 = vmax.f32 %v288, 0.0
      %v305 = vmax.f32 %v289, 0.0
      %v306 = vmax.f32 %v290, 0.0
      %v307 = vmax.f32 %v291, 0.0
      %v308 = vmax.f32 %v292, 0.0
      %vm309 = vcmask 64512
      %310 = vst.msk [vmem:[%s213] sm:$0xff] %vm309, %v293
      %311 = vst.msk [vmem:[%s213 + $0x8] sm:$0xff] %vm309, %v294
      %312 = vst.msk [vmem:[%s213 + $0x10] sm:$0xff] %vm309, %v295
      %313 = vst.msk [vmem:[%s213 + $0x18] sm:$0xff] %vm309, %v296
      %314 = vst.msk [vmem:[%s213 + $0x20] sm:$0xff] %vm309, %v297
      %315 = vst.msk [vmem:[%s213 + $0x28] sm:$0xff] %vm309, %v298
      %316 = vst.msk [vmem:[%s213 + $0x30] sm:$0xff] %vm309, %v299
      %317 = vst.msk [vmem:[%s213 + $0x38] sm:$0xff] %vm309, %v300
      %318 = vst.msk [vmem:[%s213 + $0x40] sm:$0xff] %vm309, %v301
      %319 = vst.msk [vmem:[%s213 + $0x48] sm:$0xff] %vm309, %v302
      %320 = vst.msk [vmem:[%s213 + $0x50] sm:$0xff] %vm309, %v303
      %321 = vst.msk [vmem:[%s213 + $0x58] sm:$0xff] %vm309, %v304
      %322 = vst.msk [vmem:[%s213 + $0x60] sm:$0xff] %vm309, %v305
      %323 = vst.msk [vmem:[%s213 + $0x68] sm:$0xff] %vm309, %v306
      %324 = vst.msk [vmem:[%s213 + $0x70] sm:$0xff] %vm309, %v307
      %325 = vst.msk [vmem:[%s213 + $0x78] sm:$0xff] %vm309, %v308
      %s326 = smul.u32 8, %s19
      %p327 = scmp.lt.s32.totalorder %s18, 1
      %s328 = scalar_select %p327, %s18, 1
      %p329 = scmp.lt.s32.totalorder %s326, 15
      %s330 = scalar_select %p329, %s326, 15
      %s331 = smul.addr %s330, 2
      %s332 = smul.addr %s328, 32
      %s333 = sadd.s32 %s331, %s332
      %s334 = smul.addr %s333, 8
      %s335 = scalar_lea.vmem %s3, %s334
      // Predicated region
      $region33: #{double_conv.5} parent=31 // pred_check
        %p336 = pneg %p116
      $region34: #{double_conv.5} parent=31 // pred_check_branch
        %338 = sbr.rel (%p336) target = $region36
      $region35: #{double_conv.5} parent=31 // pred_region
        %s339 = smul.u32 8, %s19
      $region36: #{double_conv.5} parent=31 // pred_fallthru
        _
    $region32: #{double_conv.5} parent=5 // pred_fallthru
      _
    %p340 = scmp.le.s32.totalorder 2, %s9
    // Predicated region
    $region37: #{double_conv.5} parent=5 // pred_check
      %p341 = pneg %p340
    $region38: #{double_conv.5} parent=5 // pred_check_branch
      %343 = sbr.rel (%p341) target = $region40
    $region39: #{double_conv.5} parent=5 // pred_region
      %s344 = ssub.s32 %s9, 2
      // Predicated region
      $region41: #{double_conv.5} parent=39 // pred_check
        %p345 = pneg %p122
      $region42: #{double_conv.5} parent=39 // pred_check_branch
        %347 = sbr.rel (%p345) target = $region44
      $region43: #{double_conv.5} parent=39 // pred_region
        %s348 = smul.u32 8, %s21
        %p349 = scmp.lt.s32.totalorder %s20, 1
        %s350 = scalar_select %p349, %s20, 1
        %p351 = scmp.lt.s32.totalorder %s348, 15
        %s352 = scalar_select %p351, %s348, 15
        %s353 = smul.addr %s352, 2
        %s354 = smul.addr %s350, 32
        %s355 = sadd.s32 %s353, %s354
        %s356 = smul.addr %s355, 8
        %s357 = scalar_lea.vmem %s3, %s356
      $region44: #{double_conv.5} parent=39 // pred_fallthru
        _
    $region40: #{double_conv.5} parent=5 // pred_fallthru
      _
  $region6: #{double_conv.5} parent=0 // loop_footer
    %s13 = sadd.s32 1, %s9
  $region7: #{double_conv.5} parent=0 // loop_footer_branch
    %8 = sbr.rel target = $region3
  $region8: #{double_conv.5} parent=0 // loop_exit
    _

// kernel: double_conv.3
$region0: #{double_conv.3}
  #allocation0 [shape = 'u32[]', space=smem, size = 0x4, offset = 0x4, fixed_abs, tag = 'smem constant byte address 0x4 - core index']
  #allocation1 [shape = 'u32[144,128]{1,0:T(1,128)}', space=vmem, size = 0x12000, scoped, tag = 'internal scratch']
  #allocation2 [shape = 'bf16[10,34,4]{2,1,0:T(8,128)(2,1)}', space=vmem, size = 0x19000, scoped, tag = 'scratch operand']
  #allocation3 [shape = 'bf16[8,16,36]{2,1,0:T(16,128)(2,1)}', space=vmem, size = 0x8000, scoped, tag = 'scratch operand']
  %s0 = inlined_call_operand.vmem [shape: bf16[2,16,16,4], index: 0, kind: input, shape index: {}]
  %s1 = inlined_call_operand.vmem [shape: bf16[2,2,2,16,4], index: 1, kind: input, shape index: {}]
  %s2 = inlined_call_operand.vmem [shape: bf16[36,128], index: 2, kind: input, shape index: {}]
  %s3 = inlined_call_operand.vmem [shape: bf16[2,16,16,128], index: 3, kind: output, shape index: {0}]
  %s4 = inlined_call_operand.vmem [shape: f32[2,2,2,128], index: 4, kind: output, shape index: {1}]
  %5 = xla_tuple %s3, %s4
  %s6 = sld [smem:[#allocation0]]
  $region53: #{double_conv.3} parent=0
    _
  %s8 = ssub.s32 1, %s6
  %s9 = scalar_select 0, %s8, %s6
  loop: start=0, step=1, limit=6
  $region2: #{double_conv.3} parent=0 // loop_pre_header
    _
  $region3: #{double_conv.3} parent=0 // loop_header
    %s11 = sphi 0, %s15
    %p12 = scmp.ge.s32.totalorder %s11, 6
    %s18 = sphi 0, %s30
    %s19 = sphi 0, %s26
    %s20 = sphi 0, %s18
    %s21 = sphi 0, %s19
    %s22 = sphi 0, %s20
    %s23 = sphi 0, %s21
    %s35 = sphi 0, %s37
    %s38 = sphi 0, %s35
    %s39 = sphi 0, %s38
    %s55 = sphi 0, %s39
    %s63 = sphi 0, %s65
    %s66 = sphi 0, %s63
    %s67 = sphi 0, %s66
    %s83 = sphi 0, %s67
    %s87 = sphi 0, %s87
    %s89 = sphi 0, %s87
    %s90 = sphi 0, %s89
    %s104 = sphi 0, %s90
    %s112 = sphi 0, %s114
    %s115 = sphi 0, %s112
    %s116 = sphi 0, %s115
    %s132 = sphi 0, %s116
    %s140 = sphi 0, %s142
    %s143 = sphi 0, %s140
    %s144 = sphi 0, %s143
    %s160 = sphi 0, %s144
  $region4: #{double_conv.3} parent=0 // loop_header_branch
    %14 = sbr.rel (%p12) target = $region8
  $region5: #{double_conv.3} parent=0 // loop_body
    %s16 = ssub.s32 %s11, 1
    %s17 = ssub.s32 %s11, 2
    %s24 = sadd.s32 1, %s19
    %p25 = scmp.ge.s32.totalorder %s24, 2
    %s26 = scalar_select %p25, 0, %s24
    %s27 = sadd.s32 1, %s18
    %s28 = scalar_select %p25, %s27, %s18
    %p29 = scmp.ge.s32.totalorder %s28, 2
    %s30 = scalar_select %p29, 0, %s28
    %s31 = ssub.s32 %s18, %s30
    %s32 = ssub.s32 %s19, %s26
    %s33 = sor.u32 %s31, %s32
    %p34 = scmp.eq.s32.totalorder %s33, 0
    %s36 = sadd.s32 %s35, 1
    %s37 = scalar_select %p34, %s35, %s36
    %p40 = pneg %p34
    %p41 = scmp.eq.s32.totalorder %s11, 3
    %p42 = por %p40, %p41
    %p43 = scmp.ne.s32.totalorder %s35, %s38
    %p44 = scmp.eq.s32.totalorder %s11, 0
    %p45 = por %p43, %p44
    %p46 = scmp.ne.s32.totalorder %s35, %s38
    %p47 = scmp.eq.s32.totalorder %s16, 3
    %p48 = por %p46, %p47
    %p49 = scmp.ne.s32.totalorder %s38, %s39
    %p50 = scmp.eq.s32.totalorder %s16, 0
    %p51 = por %p49, %p50
    %p52 = scmp.ne.s32.totalorder %s38, %s39
    %p53 = scmp.eq.s32.totalorder %s17, 3
    %p54 = por %p52, %p53
    %p56 = scmp.ne.s32.totalorder %s39, %s55
    %p57 = scmp.eq.s32.totalorder %s17, 0
    %p58 = por %p56, %p57
    %s59 = ssub.s32 %s18, %s30
    %s60 = ssub.s32 %s19, %s26
    %s61 = sor.u32 %s59, %s60
    %p62 = scmp.eq.s32.totalorder %s61, 0
    %s64 = sadd.s32 %s63, 1
    %s65 = scalar_select %p62, %s63, %s64
    %p68 = pneg %p62
    %p69 = scmp.eq.s32.totalorder %s11, 3
    %p70 = por %p68, %p69
    %p71 = scmp.ne.s32.totalorder %s63, %s66
    %p72 = scmp.eq.s32.totalorder %s11, 0
    %p73 = por %p71, %p72
    %p74 = scmp.ne.s32.totalorder %s63, %s66
    %p75 = scmp.eq.s32.totalorder %s16, 3
    %p76 = por %p74, %p75
    %p77 = scmp.ne.s32.totalorder %s66, %s67
    %p78 = scmp.eq.s32.totalorder %s16, 0
    %p79 = por %p77, %p78
    %p80 = scmp.ne.s32.totalorder %s66, %s67
    %p81 = scmp.eq.s32.totalorder %s17, 3
    %p82 = por %p80, %p81
    %p84 = scmp.ne.s32.totalorder %s67, %s83
    %p85 = scmp.eq.s32.totalorder %s17, 0
    %p86 = por %p84, %p85
    %s88 = sadd.s32 %s87, 1
    %p91 = scmp.eq.s32.totalorder %s11, 3
    %p92 = scmp.ne.s32.totalorder %s87, %s89
    %p93 = scmp.eq.s32.totalorder %s11, 0
    %p94 = por %p92, %p93
    %p95 = scmp.ne.s32.totalorder %s87, %s89
    %p96 = scmp.eq.s32.totalorder %s16, 3
    %p97 = por %p95, %p96
    %p98 = scmp.ne.s32.totalorder %s89, %s90
    %p99 = scmp.eq.s32.totalorder %s16, 0
    %p100 = por %p98, %p99
    %p101 = scmp.ne.s32.totalorder %s89, %s90
    %p102 = scmp.eq.s32.totalorder %s17, 3
    %p103 = por %p101, %p102
    %p105 = scmp.ne.s32.totalorder %s90, %s104
    %p106 = scmp.eq.s32.totalorder %s17, 0
    %p107 = por %p105, %p106
    %s108 = ssub.s32 %s18, %s30
    %s109 = ssub.s32 %s19, %s26
    %s110 = sor.u32 %s108, %s109
    %p111 = scmp.eq.s32.totalorder %s110, 0
    %s113 = sadd.s32 %s112, 1
    %s114 = scalar_select %p111, %s112, %s113
    %p117 = pneg %p111
    %p118 = scmp.eq.s32.totalorder %s11, 3
    %p119 = por %p117, %p118
    %p120 = scmp.ne.s32.totalorder %s112, %s115
    %p121 = scmp.eq.s32.totalorder %s11, 0
    %p122 = por %p120, %p121
    %p123 = scmp.ne.s32.totalorder %s112, %s115
    %p124 = scmp.eq.s32.totalorder %s16, 3
    %p125 = por %p123, %p124
    %p126 = scmp.ne.s32.totalorder %s115, %s116
    %p127 = scmp.eq.s32.totalorder %s16, 0
    %p128 = por %p126, %p127
    %p129 = scmp.ne.s32.totalorder %s115, %s116
    %p130 = scmp.eq.s32.totalorder %s17, 3
    %p131 = por %p129, %p130
    %p133 = scmp.ne.s32.totalorder %s116, %s132
    %p134 = scmp.eq.s32.totalorder %s17, 0
    %p135 = por %p133, %p134
    %s136 = ssub.s32 %s18, %s30
    %s137 = ssub.s32 %s19, %s26
    %s138 = sor.u32 %s136, %s137
    %p139 = scmp.eq.s32.totalorder %s138, 0
    %s141 = sadd.s32 %s140, 1
    %s142 = scalar_select %p139, %s140, %s141
    %p145 = pneg %p139
    %p146 = scmp.eq.s32.totalorder %s11, 3
    %p147 = por %p145, %p146
    %p148 = scmp.ne.s32.totalorder %s140, %s143
    %p149 = scmp.eq.s32.totalorder %s11, 0
    %p150 = por %p148, %p149
    %p151 = scmp.ne.s32.totalorder %s140, %s143
    %p152 = scmp.eq.s32.totalorder %s16, 3
    %p153 = por %p151, %p152
    %p154 = scmp.ne.s32.totalorder %s143, %s144
    %p155 = scmp.eq.s32.totalorder %s16, 0
    %p156 = por %p154, %p155
    %p157 = scmp.ne.s32.totalorder %s143, %s144
    %p158 = scmp.eq.s32.totalorder %s17, 3
    %p159 = por %p157, %p158
    %p161 = scmp.ne.s32.totalorder %s144, %s160
    %p162 = scmp.eq.s32.totalorder %s17, 0
    %p163 = por %p161, %p162
    %p164 = scmp.le.s32.totalorder 1, %s11
    %p165 = scmp.lt.s32.totalorder %s11, 5
    %p166 = pnand %p164, %p165
    %p167 = pneg %p166
    // Predicated region
    $region9: #{double_conv.3} parent=5 // pred_check
      _
    $region10: #{double_conv.3} parent=5 // pred_check_branch
      %169 = sbr.rel (%p166) target = $region12
    $region11: #{double_conv.3} parent=5 // pred_region
      %s170 = ssub.s32 %s11, 1
      // Predicated region
      $region13: #{double_conv.3} parent=11 // pred_check
        %p171 = pneg %p100
      $region14: #{double_conv.3} parent=11 // pred_check_branch
        %173 = sbr.rel (%p171) target = $region16
      $region15: #{double_conv.3} parent=11 // pred_region
        _
      $region16: #{double_conv.3} parent=11 // pred_fallthru
        _
    $region12: #{double_conv.3} parent=5 // pred_fallthru
      _
    %p174 = scmp.lt.s32.totalorder %s11, 4
    // Predicated region
    $region17: #{double_conv.3} parent=5 // pred_check
      %p175 = pneg %p174
    $region18: #{double_conv.3} parent=5 // pred_check_branch
      %177 = sbr.rel (%p175) target = $region20
    $region19: #{double_conv.3} parent=5 // pred_region
      // Predicated region
      $region21: #{double_conv.3} parent=19 // pred_check
        %p178 = pneg %p45
      $region22: #{double_conv.3} parent=19 // pred_check_branch
        %180 = sbr.rel (%p178) target = $region24
      $region23: #{double_conv.3} parent=19 // pred_region
        %s181 = smul.u32 8, %s19
        %p182 = scmp.lt.s32.totalorder %s18, 1
        %s183 = scalar_select %p182, %s18, 1
        %p184 = scmp.lt.s32.totalorder %s181, 15
        %s185 = scalar_select %p184, %s181, 15
        %s186 = smul.addr %s185, 2
        %s187 = smul.addr %s183, 32
        %s188 = sadd.s32 %s186, %s187
        %s189 = smul.addr %s188, 4
        %s190 = scalar_lea.vmem %s0, %s189
        %s191 = smul.u32 8, %s19
      $region24: #{double_conv.3} parent=19 // pred_fallthru
        _
      // Predicated region
      $region25: #{double_conv.3} parent=19 // pred_check
        %p192 = pneg %p73
      $region26: #{double_conv.3} parent=19 // pred_check_branch
        %194 = sbr.rel (%p192) target = $region28
      $region27: #{double_conv.3} parent=19 // pred_region
        %p195 = scmp.lt.s32.totalorder %s18, 1
        %s196 = scalar_select %p195, %s18, 1
        %p197 = scmp.lt.s32.totalorder %s19, 1
        %s198 = scalar_select %p197, %s19, 1
        %s199 = smul.addr %s198, 4
        %s200 = smul.addr %s196, 8
        %s201 = sadd.s32 %s199, %s200
        %s202 = smul.addr %s201, 4
        %s203 = scalar_lea.vmem %s1, %s202
      $region28: #{double_conv.3} parent=19 // pred_fallthru
        _
    $region20: #{double_conv.3} parent=5 // pred_fallthru
      _
    %p204 = scmp.le.s32.totalorder 1, %s11
    %p205 = scmp.lt.s32.totalorder %s11, 5
    %p206 = pnand %p204, %p205
    %p207 = pneg %p206
    // Predicated region
    $region29: #{double_conv.3} parent=5 // pred_check
      _
    $region30: #{double_conv.3} parent=5 // pred_check_branch
      %209 = sbr.rel (%p206) target = $region32
    $region31: #{double_conv.3} parent=5 // pred_region
      %s210 = ssub.s32 %s11, 1
      %s211 = smul.u32 8, %s21
      %p212 = scmp.lt.s32.totalorder %s20, 1
      %s213 = scalar_select %p212, %s20, 1
      %p214 = scmp.lt.s32.totalorder %s211, 15
      %s215 = scalar_select %p214, %s211, 15
      %s216 = smul.addr %s215, 2
      %s217 = smul.addr %s213, 32
      %s218 = sadd.s32 %s216, %s217
      %s219 = smul.addr %s218, 4
      %s220 = scalar_lea.vmem %s0, %s219
      %p221 = pneg %p51
      %p222 = pneg %p48
      %p223 = scmp.lt.s32.totalorder %s20, 1
      %s224 = scalar_select %p223, %s20, 1
      %p225 = scmp.lt.s32.totalorder %s21, 1
      %s226 = scalar_select %p225, %s21, 1
      %s227 = smul.addr %s226, 4
      %s228 = smul.addr %s224, 8
      %s229 = sadd.s32 %s227, %s228
      %s230 = smul.addr %s229, 4
      %s231 = scalar_lea.vmem %s1, %s230
      %p232 = pneg %p79
      %p233 = pneg %p76
      %p234 = pneg %p100
      %p235 = pneg %p97
      %p236 = pneg %p128
      %p237 = pneg %p125
      %s238 = smul.u32 8, %s21
      %p239 = scmp.lt.s32.totalorder %s20, 1
      %s240 = scalar_select %p239, %s20, 1
      %p241 = scmp.lt.s32.totalorder %s238, 15
      %s242 = scalar_select %p241, %s238, 15
      %s243 = smul.addr %s242, 2
      %s244 = smul.addr %s240, 32
      %s245 = sadd.s32 %s243, %s244
      %s246 = smul.addr %s245, 4
      %s247 = scalar_lea.vmem %s3, %s246
      %p248 = pneg %p156
      %p249 = pneg %p153
      %p250 = scmp.lt.s32.totalorder %s20, 1
      %s251 = scalar_select %p250, %s20, 1
      %p252 = scmp.lt.s32.totalorder %s21, 1
      %s253 = scalar_select %p252, %s21, 1
      %s254 = smul.addr %s251, 2
      %s255 = sadd.s32 %s253, %s254
      %s256 = smul.addr %s255, 2
      %s257 = scalar_lea.vmem %s4, %s256
      %s258 = smul.u32 8, %s21
      %p259 = scmp.lt.s32.totalorder %s20, 1
      %s260 = scalar_select %p259, %s20, 1
      %p261 = scmp.lt.s32.totalorder %s258, 15
      %s262 = scalar_select %p261, %s258, 15
      %s263 = smul.addr %s262, 2
      %s264 = smul.addr %s260, 32
      %s265 = sadd.s32 %s263, %s264
      %s266 = smul.addr %s265, 4
      %s267 = scalar_lea.vmem %s0, %s266
      %s268 = smul.u32 8, %s21
      %p269 = scmp.lt.s32.totalorder %s20, 1
      %s270 = scalar_select %p269, %s20, 1
      %p271 = scmp.lt.s32.totalorder %s21, 1
      %s272 = scalar_select %p271, %s21, 1
      %s273 = smul.addr %s272, 4
      %s274 = smul.addr %s270, 8
      %s275 = sadd.s32 %s273, %s274
      %s276 = smul.addr %s275, 4
      %s277 = scalar_lea.vmem %s1, %s276
      %s278 = smul.u32 8, %s21
      %p279 = scmp.lt.s32.totalorder %s20, 1
      %s280 = scalar_select %p279, %s20, 1
      %p281 = scmp.lt.s32.totalorder %s278, 15
      %s282 = scalar_select %p281, %s278, 15
      %s283 = smul.addr %s282, 2
      %s284 = smul.addr %s280, 32
      %s285 = sadd.s32 %s283, %s284
      %s286 = smul.addr %s285, 4
      %s287 = scalar_lea.vmem %s3, %s286
      %s288 = smul.u32 8, %s21
      %p289 = scmp.lt.s32.totalorder %s20, 1
      %s290 = scalar_select %p289, %s20, 1
      %p291 = scmp.lt.s32.totalorder %s21, 1
      %s292 = scalar_select %p291, %s21, 1
      %s293 = smul.addr %s290, 2
      %s294 = sadd.s32 %s292, %s293
      %s295 = smul.addr %s294, 2
      %s296 = scalar_lea.vmem %s4, %s295
      %v298 = vld [vmem:[%s277] sm:$0xf]
      %v299 = vld [vmem:[%s277 + $0x4] sm:$0xf]
      %v300 = vld [vmem:[%s277 + $0x8] sm:$0xf]
      %v301 = vld [vmem:[%s277 + $0xc] sm:$0xf]
      %v302 = vld [vmem:[%s267] sm:$0xf]
      %v303 = vld [vmem:[%s267 + $0x4] sm:$0xf]
      %v304 = vld [vmem:[%s267 + $0x8] sm:$0xf]
      %v305 = vld [vmem:[%s267 + $0xc] sm:$0xf]
      %v306 = vld [vmem:[%s267 + $0x10] sm:$0xf]
      %v307 = vld [vmem:[%s267 + $0x14] sm:$0xf]
      %v308 = vld [vmem:[%s267 + $0x18] sm:$0xf]
      %v309 = vld [vmem:[%s267 + $0x1c] sm:$0xf]
      %v310 = vld [vmem:[%s267 + $0x20] sm:$0xf]
      %v311 = vld [vmem:[%s267 + $0x24] sm:$0xf]
      %v312 = vld [vmem:[%s267 + $0x28] sm:$0xf]
      %v313 = vld [vmem:[%s267 + $0x2c] sm:$0xf]
      %v314 = vld [vmem:[%s267 + $0x30] sm:$0xf]
      %v315 = vld [vmem:[%s267 + $0x34] sm:$0xf]
      %v316 = vld [vmem:[%s267 + $0x38] sm:$0xf]
      %v317 = vld [vmem:[%s267 + $0x3c] sm:$0xf]
      %vm318 = vcmask 27651
      %vm319 = vsmask.f32 7950
      %vm320 = vmand %vm318, %vm319
      %v321 = vld [vmem:[#allocation2 + $0x4] sm:$0x8]
      %v322 = vsel %vm320, 0, %v321
      %323 = vst [vmem:[#allocation2 + $0x4] sm:$0x8] %v322
      %v324 = vld [vmem:[#allocation2 + $0x18] sm:$0x8]
      %v325 = vsel %vm320, 0, %v324
      %326 = vst [vmem:[#allocation2 + $0x18] sm:$0x8] %v325
      %v327 = vld [vmem:[#allocation2 + $0x2c] sm:$0x8]
      %v328 = vsel %vm320, 0, %v327
      %329 = vst [vmem:[#allocation2 + $0x2c] sm:$0x8] %v328
      %v330 = vld [vmem:[#allocation2 + $0x40] sm:$0x8]
      %v331 = vsel %vm320, 0, %v330
      %332 = vst [vmem:[#allocation2 + $0x40] sm:$0x8] %v331
      %v333 = vld [vmem:[#allocation2 + $0x54] sm:$0x8]
      %v334 = vsel %vm320, 0, %v333
      %335 = vst [vmem:[#allocation2 + $0x54] sm:$0x8] %v334
      %v336 = vld [vmem:[#allocation2 + $0x68] sm:$0x8]
      %v337 = vsel %vm320, 0, %v336
      %338 = vst [vmem:[#allocation2 + $0x68] sm:$0x8] %v337
      %v339 = vld [vmem:[#allocation2 + $0x7c] sm:$0x8]
      %v340 = vsel %vm320, 0, %v339
      %341 = vst [vmem:[#allocation2 + $0x7c] sm:$0x8] %v340
      %v342 = vld [vmem:[#allocation2 + $0x90] sm:$0x8]
      %v343 = vsel %vm320, 0, %v342
      %344 = vst [vmem:[#allocation2 + $0x90] sm:$0x8] %v343
      %v345 = vld [vmem:[#allocation2 + $0xa4] sm:$0x8]
      %v346 = vsel %vm320, 0, %v345
      %347 = vst [vmem:[#allocation2 + $0xa4] sm:$0x8] %v346
      %v348 = vld [vmem:[#allocation2 + $0xb8] sm:$0x8]
      %v349 = vsel %vm320, 0, %v348
      %350 = vst [vmem:[#allocation2 + $0xb8] sm:$0x8] %v349
      %vm351 = vcmask 24576
      %vm352 = vsmask.f32 256
      %vm353 = vmand %vm351, %vm352
      %v354 = vld [vmem:[#allocation2 + $0x10] sm:$0x1]
      %v355 = vsel %vm353, 0, %v354
      %356 = vst [vmem:[#allocation2 + $0x10] sm:$0x1] %v355
      %v357 = vld [vmem:[#allocation2 + $0x24] sm:$0x1]
      %v358 = vsel %vm353, 0, %v357
      %359 = vst [vmem:[#allocation2 + $0x24] sm:$0x1] %v358
      %v360 = vld [vmem:[#allocation2 + $0x38] sm:$0x1]
      %v361 = vsel %vm353, 0, %v360
      %362 = vst [vmem:[#allocation2 + $0x38] sm:$0x1] %v361
      %v363 = vld [vmem:[#allocation2 + $0x4c] sm:$0x1]
      %v364 = vsel %vm353, 0, %v363
      %365 = vst [vmem:[#allocation2 + $0x4c] sm:$0x1] %v364
      %v366 = vld [vmem:[#allocation2 + $0x60] sm:$0x1]
      %v367 = vsel %vm353, 0, %v366
      %368 = vst [vmem:[#allocation2 + $0x60] sm:$0x1] %v367
      %v369 = vld [vmem:[#allocation2 + $0x74] sm:$0x1]
      %v370 = vsel %vm353, 0, %v369
      %371 = vst [vmem:[#allocation2 + $0x74] sm:$0x1] %v370
      %v372 = vld [vmem:[#allocation2 + $0x88] sm:$0x1]
      %v373 = vsel %vm353, 0, %v372
      %374 = vst [vmem:[#allocation2 + $0x88] sm:$0x1] %v373
      %v375 = vld [vmem:[#allocation2 + $0x9c] sm:$0x1]
      %v376 = vsel %vm353, 0, %v375
      %377 = vst [vmem:[#allocation2 + $0x9c] sm:$0x1] %v376
      %v378 = vld [vmem:[#allocation2 + $0xb0] sm:$0x1]
      %v379 = vsel %vm353, 0, %v378
      %380 = vst [vmem:[#allocation2 + $0xb0] sm:$0x1] %v379
      %v381 = vld [vmem:[#allocation2 + $0xc4] sm:$0x1]
      %v382 = vsel %vm353, 0, %v381
      %383 = vst [vmem:[#allocation2 + $0xc4] sm:$0x1] %v382
      %vm384 = vcmask 27648
      %385 = vst.msk [vmem:[#allocation2 + $0x8] sm:$0xf] %vm384, %v298
      %386 = vst.msk [vmem:[#allocation2 + $0xc] sm:$0xf] %vm384, %v299
      %s387 = scalar_lea.vmem [#allocation2], 180
      %388 = vst.msk [vmem:[%s387 + $0x8] sm:$0xf] %vm384, %v300
      %389 = vst.msk [vmem:[%s387 + $0xc] sm:$0xf] %vm384, %v301
      %s390 = scalar_lea.vmem [#allocation2], 20
      %391 = vst.msk [vmem:[%s390 + $0x8] sm:$0xf] %vm384, %v302
      %392 = vst.msk [vmem:[%s390 + $0xc] sm:$0xf] %vm384, %v303
      %393 = vst.msk [vmem:[%s390 + $0x1c] sm:$0xf] %vm384, %v304
      %394 = vst.msk [vmem:[%s390 + $0x20] sm:$0xf] %vm384, %v305
      %395 = vst.msk [vmem:[%s390 + $0x30] sm:$0xf] %vm384, %v306
      %396 = vst.msk [vmem:[%s390 + $0x34] sm:$0xf] %vm384, %v307
      %397 = vst.msk [vmem:[%s390 + $0x44] sm:$0xf] %vm384, %v308
      %398 = vst.msk [vmem:[%s390 + $0x48] sm:$0xf] %vm384, %v309
      %399 = vst.msk [vmem:[%s390 + $0x58] sm:$0xf] %vm384, %v310
      %400 = vst.msk [vmem:[%s390 + $0x5c] sm:$0xf] %vm384, %v311
      %401 = vst.msk [vmem:[%s390 + $0x6c] sm:$0xf] %vm384, %v312
      %402 = vst.msk [vmem:[%s390 + $0x70] sm:$0xf] %vm384, %v313
      %403 = vst.msk [vmem:[%s390 + $0x80] sm:$0xf] %vm384, %v314
      %404 = vst.msk [vmem:[%s390 + $0x84] sm:$0xf] %vm384, %v315
      %405 = vst.msk [vmem:[%s390 + $0x94] sm:$0xf] %vm384, %v316
      %406 = vst.msk [vmem:[%s390 + $0x98] sm:$0xf] %vm384, %v317
      %v407 = vld [vmem:[#allocation2 + $0x4] sm:$0x8]
      %v408 = vld [vmem:[#allocation2 + $0x8] sm:$0xf]
      %v409 = vld [vmem:[#allocation2 + $0xc] sm:$0xf]
      %v410 = vld [vmem:[#allocation2 + $0x18] sm:$0x8]
      %v411 = vld [vmem:[#allocation2 + $0x1c] sm:$0xf]
      %v412 = vld [vmem:[#allocation2 + $0x20] sm:$0xf]
      %v413 = vld [vmem:[#allocation2 + $0x2c] sm:$0x8]
      %v414 = vld [vmem:[#allocation2 + $0x30] sm:$0xf]
      %v415 = vld [vmem:[#allocation2 + $0x34] sm:$0xf]
      %v416 = vld [vmem:[#allocation2 + $0x40] sm:$0x8]
      %v417 = vld [vmem:[#allocation2 + $0x44] sm:$0xf]
      %v418 = vld [vmem:[#allocation2 + $0x48] sm:$0xf]
      %v419 = vld [vmem:[#allocation2 + $0x54] sm:$0x8]
      %v420 = vld [vmem:[#allocation2 + $0x58] sm:$0xf]
      %v421 = vld [vmem:[#allocation2 + $0x5c] sm:$0xf]
      %v422 = vld [vmem:[#allocation2 + $0x68] sm:$0x8]
      %v423 = vld [vmem:[#allocation2 + $0x6c] sm:$0xf]
      %v424 = vld [vmem:[#allocation2 + $0x70] sm:$0xf]
      %v425 = vld [vmem:[#allocation2 + $0x7c] sm:$0x8]
      %v426 = vld [vmem:[#allocation2 + $0x80] sm:$0xf]
      %v427 = vld [vmem:[#allocation2 + $0x84] sm:$0xf]
      %v428 = vld [vmem:[#allocation2 + $0x90] sm:$0x8]
      %v429 = vld [vmem:[#allocation2 + $0x94] sm:$0xf]
      %v430 = vld [vmem:[#allocation2 + $0x98] sm:$0xf]
      %v455 = vunpack.c.l.b16 %v407
      %v456 = vunpack.c.l.b16 %v408
      %v457 = vunpack.c.l.b16 %v409
      %v458 = vunpack.c.l.b16 %v410
      %v459 = vunpack.c.l.b16 %v411
      %v460 = vunpack.c.l.b16 %v412
      %v461 = vunpack.c.l.b16 %v413
      %v462 = vunpack.c.l.b16 %v414
      %v463 = vunpack.c.l.b16 %v415
      %v464 = vunpack.c.l.b16 %v416
      %v465 = vunpack.c.l.b16 %v417
      %v466 = vunpack.c.l.b16 %v418
      %v467 = vunpack.c.l.b16 %v419
      %v468 = vunpack.c.l.b16 %v420
      %v469 = vunpack.c.l.b16 %v421
      %v470 = vunpack.c.l.b16 %v422
      %v471 = vunpack.c.l.b16 %v423
      %v472 = vunpack.c.l.b16 %v424
      %v473 = vunpack.c.l.b16 %v425
      %v474 = vunpack.c.l.b16 %v426
      %v475 = vunpack.c.l.b16 %v427
      %v476 = vunpack.c.l.b16 %v428
      %v477 = vunpack.c.l.b16 %v429
      %v478 = vunpack.c.l.b16 %v430
      %v479 = vpack.c.b16 %v456, %v455
      %v480 = vpack.c.b16 %v457, %v457
      %v481 = vpack.c.b16 %v459, %v458
      %v482 = vpack.c.b16 %v460, %v460
      %v483 = vpack.c.b16 %v462, %v461
      %v484 = vpack.c.b16 %v463, %v463
      %v485 = vpack.c.b16 %v465, %v464
      %v486 = vpack.c.b16 %v466, %v466
      %v487 = vpack.c.b16 %v468, %v467
      %v488 = vpack.c.b16 %v469, %v469
      %v489 = vpack.c.b16 %v471, %v470
      %v490 = vpack.c.b16 %v472, %v472
      %v491 = vpack.c.b16 %v474, %v473
      %v492 = vpack.c.b16 %v475, %v475
      %v493 = vpack.c.b16 %v477, %v476
      %v494 = vpack.c.b16 %v478, %v478
      %vm495 = vsmask.f32 4352
      %v497 = vshrl.u32 %v479, 16
      %v499 = vrot.slane %v497, 3
      %v500 = vshll.u32 %v479, 16
      %v502 = vrot.slane %v500, 4
      %v503 = vor.u32 %v499, %v502
      %v505 = vshrl.u32 %v480, 16
      %v507 = vrot.slane %v505, 3
      %v508 = vshll.u32 %v480, 16
      %v510 = vrot.slane %v508, 4
      %v511 = vor.u32 %v507, %v510
      %v512 = vsel %vm495, %v503, %v511
      %v514 = vshrl.u32 %v481, 16
      %v516 = vrot.slane %v514, 3
      %v517 = vshll.u32 %v481, 16
      %v519 = vrot.slane %v517, 4
      %v520 = vor.u32 %v516, %v519
      %v522 = vshrl.u32 %v482, 16
      %v524 = vrot.slane %v522, 3
      %v525 = vshll.u32 %v482, 16
      %v527 = vrot.slane %v525, 4
      %v528 = vor.u32 %v524, %v527
      %v529 = vsel %vm495, %v520, %v528
      %v531 = vshrl.u32 %v483, 16
      %v533 = vrot.slane %v531, 3
      %v534 = vshll.u32 %v483, 16
      %v536 = vrot.slane %v534, 4
      %v537 = vor.u32 %v533, %v536
      %v539 = vshrl.u32 %v484, 16
      %v541 = vrot.slane %v539, 3
      %v542 = vshll.u32 %v484, 16
      %v544 = vrot.slane %v542, 4
      %v545 = vor.u32 %v541, %v544
      %v546 = vsel %vm495, %v537, %v545
      %v548 = vshrl.u32 %v485, 16
      %v550 = vrot.slane %v548, 3
      %v551 = vshll.u32 %v485, 16
      %v553 = vrot.slane %v551, 4
      %v554 = vor.u32 %v550, %v553
      %v556 = vshrl.u32 %v486, 16
      %v558 = vrot.slane %v556, 3
      %v559 = vshll.u32 %v486, 16
      %v561 = vrot.slane %v559, 4
      %v562 = vor.u32 %v558, %v561
      %v563 = vsel %vm495, %v554, %v562
      %v565 = vshrl.u32 %v487, 16
      %v567 = vrot.slane %v565, 3
      %v568 = vshll.u32 %v487, 16
      %v570 = vrot.slane %v568, 4
      %v571 = vor.u32 %v567, %v570
      %v573 = vshrl.u32 %v488, 16
      %v575 = vrot.slane %v573, 3
      %v576 = vshll.u32 %v488, 16
      %v578 = vrot.slane %v576, 4
      %v579 = vor.u32 %v575, %v578
      %v580 = vsel %vm495, %v571, %v579
      %v582 = vshrl.u32 %v489, 16
      %v584 = vrot.slane %v582, 3
      %v585 = vshll.u32 %v489, 16
      %v587 = vrot.slane %v585, 4
      %v588 = vor.u32 %v584, %v587
      %v590 = vshrl.u32 %v490, 16
      %v592 = vrot.slane %v590, 3
      %v593 = vshll.u32 %v490, 16
      %v595 = vrot.slane %v593, 4
      %v596 = vor.u32 %v592, %v595
      %v597 = vsel %vm495, %v588, %v596
      %v599 = vshrl.u32 %v491, 16
      %v601 = vrot.slane %v599, 3
      %v602 = vshll.u32 %v491, 16
      %v604 = vrot.slane %v602, 4
      %v605 = vor.u32 %v601, %v604
      %v607 = vshrl.u32 %v492, 16
      %v609 = vrot.slane %v607, 3
      %v610 = vshll.u32 %v492, 16
      %v612 = vrot.slane %v610, 4
      %v613 = vor.u32 %v609, %v612
      %v614 = vsel %vm495, %v605, %v613
      %v616 = vshrl.u32 %v493, 16
      %v618 = vrot.slane %v616, 3
      %v619 = vshll.u32 %v493, 16
      %v621 = vrot.slane %v619, 4
      %v622 = vor.u32 %v618, %v621
      %v624 = vshrl.u32 %v494, 16
      %v626 = vrot.slane %v624, 3
      %v627 = vshll.u32 %v494, 16
      %v629 = vrot.slane %v627, 4
      %v630 = vor.u32 %v626, %v629
      %v631 = vsel %vm495, %v622, %v630
      %vm640 = vcmask 31744
      %641 = vst.msk [vmem:[#allocation3] sm:$0xff] %vm640, %v512
      %642 = vst.msk [vmem:[#allocation3 + $0x8] sm:$0xff] %vm640, %v529
      %643 = vst.msk [vmem:[#allocation3 + $0x10] sm:$0xff] %vm640, %v546
      %644 = vst.msk [vmem:[#allocation3 + $0x18] sm:$0xff] %vm640, %v563
      %645 = vst.msk [vmem:[#allocation3 + $0x20] sm:$0xff] %vm640, %v580
      %646 = vst.msk [vmem:[#allocation3 + $0x28] sm:$0xff] %vm640, %v597
      %647 = vst.msk [vmem:[#allocation3 + $0x30] sm:$0xff] %vm640, %v614
      %648 = vst.msk [vmem:[#allocation3 + $0x38] sm:$0xff] %vm640, %v631
      %v649 = vld [vmem:[#allocation2 + $0x8] sm:$0xf]
      %v650 = vld [vmem:[#allocation2 + $0xc] sm:$0xf]
      %v651 = vld [vmem:[#allocation2 + $0x1c] sm:$0xf]
      %v652 = vld [vmem:[#allocation2 + $0x20] sm:$0xf]
      %v653 = vld [vmem:[#allocation2 + $0x30] sm:$0xf]
      %v654 = vld [vmem:[#allocation2 + $0x34] sm:$0xf]
      %v655 = vld [vmem:[#allocation2 + $0x44] sm:$0xf]
      %v656 = vld [vmem:[#allocation2 + $0x48] sm:$0xf]
      %v657 = vld [vmem:[#allocation2 + $0x58] sm:$0xf]
      %v658 = vld [vmem:[#allocation2 + $0x5c] sm:$0xf]
      %v659 = vld [vmem:[#allocation2 + $0x6c] sm:$0xf]
      %v660 = vld [vmem:[#allocation2 + $0x70] sm:$0xf]
      %v661 = vld [vmem:[#allocation2 + $0x80] sm:$0xf]
      %v662 = vld [vmem:[#allocation2 + $0x84] sm:$0xf]
      %v663 = vld [vmem:[#allocation2 + $0x94] sm:$0xf]
      %v664 = vld [vmem:[#allocation2 + $0x98] sm:$0xf]
      %v681 = vunpack.c.l.b16 %v649
      %v682 = vunpack.c.l.b16 %v650
      %v683 = vunpack.c.l.b16 %v651
      %v684 = vunpack.c.l.b16 %v652
      %v685 = vunpack.c.l.b16 %v653
      %v686 = vunpack.c.l.b16 %v654
      %v687 = vunpack.c.l.b16 %v655
      %v688 = vunpack.c.l.b16 %v656
      %v689 = vunpack.c.l.b16 %v657
      %v690 = vunpack.c.l.b16 %v658
      %v691 = vunpack.c.l.b16 %v659
      %v692 = vunpack.c.l.b16 %v660
      %v693 = vunpack.c.l.b16 %v661
      %v694 = vunpack.c.l.b16 %v662
      %v695 = vunpack.c.l.b16 %v663
      %v696 = vunpack.c.l.b16 %v664
      %v697 = vpack.c.b16 %v682, %v681
      %v698 = vpack.c.b16 %v684, %v683
      %v699 = vpack.c.b16 %v686, %v685
      %v700 = vpack.c.b16 %v688, %v687
      %v701 = vpack.c.b16 %v690, %v689
      %v702 = vpack.c.b16 %v692, %v691
      %v703 = vpack.c.b16 %v694, %v693
      %v704 = vpack.c.b16 %v696, %v695
      %705 = vrot.lane.b32.xlu0 %v697, 4
      %v706 = vpop.permute.xlu0 %705
      %707 = vrot.lane.b32.xlu0 %v698, 4
      %v708 = vpop.permute.xlu0 %707
      %709 = vrot.lane.b32.xlu0 %v699, 4
      %v710 = vpop.permute.xlu0 %709
      %711 = vrot.lane.b32.xlu0 %v700, 4
      %v712 = vpop.permute.xlu0 %711
      %713 = vrot.lane.b32.xlu0 %v701, 4
      %v714 = vpop.permute.xlu0 %713
      %715 = vrot.lane.b32.xlu0 %v702, 4
      %v716 = vpop.permute.xlu0 %715
      %717 = vrot.lane.b32.xlu0 %v703, 4
      %v718 = vpop.permute.xlu0 %717
      %719 = vrot.lane.b32.xlu0 %v704, 4
      %v720 = vpop.permute.xlu0 %719
      %vm729 = vcmask 64544
      %730 = vst.msk [vmem:[#allocation3] sm:$0xff] %vm729, %v706
      %731 = vst.msk [vmem:[#allocation3 + $0x8] sm:$0xff] %vm729, %v708
      %732 = vst.msk [vmem:[#allocation3 + $0x10] sm:$0xff] %vm729, %v710
      %733 = vst.msk [vmem:[#allocation3 + $0x18] sm:$0xff] %vm729, %v712
      %734 = vst.msk [vmem:[#allocation3 + $0x20] sm:$0xff] %vm729, %v714
      %735 = vst.msk [vmem:[#allocation3 + $0x28] sm:$0xff] %vm729, %v716
      %736 = vst.msk [vmem:[#allocation3 + $0x30] sm:$0xff] %vm729, %v718
      %737 = vst.msk [vmem:[#allocation3 + $0x38] sm:$0xff] %vm729, %v720
      %v738 = vld [vmem:[#allocation2 + $0x8] sm:$0xf]
      %v739 = vld [vmem:[#allocation2 + $0xc] sm:$0xf]
      %v740 = vld [vmem:[#allocation2 + $0x10] sm:$0x1]
      %v741 = vld [vmem:[#allocation2 + $0x1c] sm:$0xf]
      %v742 = vld [vmem:[#allocation2 + $0x20] sm:$0xf]
      %v743 = vld [vmem:[#allocation2 + $0x24] sm:$0x1]
      %v744 = vld [vmem:[#allocation2 + $0x30] sm:$0xf]
      %v745 = vld [vmem:[#allocation2 + $0x34] sm:$0xf]
      %v746 = vld [vmem:[#allocation2 + $0x38] sm:$0x1]
      %v747 = vld [vmem:[#allocation2 + $0x44] sm:$0xf]
      %v748 = vld [vmem:[#allocation2 + $0x48] sm:$0xf]
      %v749 = vld [vmem:[#allocation2 + $0x4c] sm:$0x1]
      %v750 = vld [vmem:[#allocation2 + $0x58] sm:$0xf]
      %v751 = vld [vmem:[#allocation2 + $0x5c] sm:$0xf]
      %v752 = vld [vmem:[#allocation2 + $0x60] sm:$0x1]
      %v753 = vld [vmem:[#allocation2 + $0x6c] sm:$0xf]
      %v754 = vld [vmem:[#allocation2 + $0x70] sm:$0xf]
      %v755 = vld [vmem:[#allocation2 + $0x74] sm:$0x1]
      %v756 = vld [vmem:[#allocation2 + $0x80] sm:$0xf]
      %v757 = vld [vmem:[#allocation2 + $0x84] sm:$0xf]
      %v758 = vld [vmem:[#allocation2 + $0x88] sm:$0x1]
      %v759 = vld [vmem:[#allocation2 + $0x94] sm:$0xf]
      %v760 = vld [vmem:[#allocation2 + $0x98] sm:$0xf]
      %v761 = vld [vmem:[#allocation2 + $0x9c] sm:$0x1]
      %v786 = vunpack.c.l.b16 %v738
      %v787 = vunpack.c.l.b16 %v739
      %v788 = vunpack.c.l.b16 %v740
      %v789 = vunpack.c.l.b16 %v741
      %v790 = vunpack.c.l.b16 %v742
      %v791 = vunpack.c.l.b16 %v743
      %v792 = vunpack.c.l.b16 %v744
      %v793 = vunpack.c.l.b16 %v745
      %v794 = vunpack.c.l.b16 %v746
      %v795 = vunpack.c.l.b16 %v747
      %v796 = vunpack.c.l.b16 %v748
      %v797 = vunpack.c.l.b16 %v749
      %v798 = vunpack.c.l.b16 %v750
      %v799 = vunpack.c.l.b16 %v751
      %v800 = vunpack.c.l.b16 %v752
      %v801 = vunpack.c.l.b16 %v753
      %v802 = vunpack.c.l.b16 %v754
      %v803 = vunpack.c.l.b16 %v755
      %v804 = vunpack.c.l.b16 %v756
      %v805 = vunpack.c.l.b16 %v757
      %v806 = vunpack.c.l.b16 %v758
      %v807 = vunpack.c.l.b16 %v759
      %v808 = vunpack.c.l.b16 %v760
      %v809 = vunpack.c.l.b16 %v761
      %v810 = vpack.c.b16 %v787, %v786
      %v811 = vpack.c.b16 %v788, %v788
      %v812 = vpack.c.b16 %v790, %v789
      %v813 = vpack.c.b16 %v791, %v791
      %v814 = vpack.c.b16 %v793, %v792
      %v815 = vpack.c.b16 %v794, %v794
      %v816 = vpack.c.b16 %v796, %v795
      %v817 = vpack.c.b16 %v797, %v797
      %v818 = vpack.c.b16 %v799, %v798
      %v819 = vpack.c.b16 %v800, %v800
      %v820 = vpack.c.b16 %v802, %v801
      %v821 = vpack.c.b16 %v803, %v803
      %v822 = vpack.c.b16 %v805, %v804
      %v823 = vpack.c.b16 %v806, %v806
      %v824 = vpack.c.b16 %v808, %v807
      %v825 = vpack.c.b16 %v809, %v809
      %vm826 = vsmask.f32 7424
      %v828 = vshrl.u32 %v810, 16
      %v830 = vshll.u32 %v810, 16
      %v832 = vrot.slane %v830, 1
      %v833 = vor.u32 %v828, %v832
      %v835 = vshll.u32 %v811, 16
      %v837 = vrot.slane %v835, 1
      %v838 = vsel %vm826, %v833, %v837
      %v840 = vshrl.u32 %v812, 16
      %v842 = vshll.u32 %v812, 16
      %v844 = vrot.slane %v842, 1
      %v845 = vor.u32 %v840, %v844
      %v847 = vshll.u32 %v813, 16
      %v849 = vrot.slane %v847, 1
      %v850 = vsel %vm826, %v845, %v849
      %v852 = vshrl.u32 %v814, 16
      %v854 = vshll.u32 %v814, 16
      %v856 = vrot.slane %v854, 1
      %v857 = vor.u32 %v852, %v856
      %v859 = vshll.u32 %v815, 16
      %v861 = vrot.slane %v859, 1
      %v862 = vsel %vm826, %v857, %v861
      %v864 = vshrl.u32 %v816, 16
      %v866 = vshll.u32 %v816, 16
      %v868 = vrot.slane %v866, 1
      %v869 = vor.u32 %v864, %v868
      %v871 = vshll.u32 %v817, 16
      %v873 = vrot.slane %v871, 1
      %v874 = vsel %vm826, %v869, %v873
      %v876 = vshrl.u32 %v818, 16
      %v878 = vshll.u32 %v818, 16
      %v880 = vrot.slane %v878, 1
      %v881 = vor.u32 %v876, %v880
      %v883 = vshll.u32 %v819, 16
      %v885 = vrot.slane %v883, 1
      %v886 = vsel %vm826, %v881, %v885
      %v888 = vshrl.u32 %v820, 16
      %v890 = vshll.u32 %v820, 16
      %v892 = vrot.slane %v890, 1
      %v893 = vor.u32 %v888, %v892
      %v895 = vshll.u32 %v821, 16
      %v897 = vrot.slane %v895, 1
      %v898 = vsel %vm826, %v893, %v897
      %v900 = vshrl.u32 %v822, 16
      %v902 = vshll.u32 %v822, 16
      %v904 = vrot.slane %v902, 1
      %v905 = vor.u32 %v900, %v904
      %v907 = vshll.u32 %v823, 16
      %v909 = vrot.slane %v907, 1
      %v910 = vsel %vm826, %v905, %v909
      %v912 = vshrl.u32 %v824, 16
      %v914 = vshll.u32 %v824, 16
      %v916 = vrot.slane %v914, 1
      %v917 = vor.u32 %v912, %v916
      %v919 = vshll.u32 %v825, 16
      %v921 = vrot.slane %v919, 1
      %v922 = vsel %vm826, %v917, %v921
      %923 = vrot.lane.b32.xlu0 %v838, 8
      %v924 = vpop.permute.xlu0 %923
      %925 = vrot.lane.b32.xlu0 %v850, 8
      %v926 = vpop.permute.xlu0 %925
      %927 = vrot.lane.b32.xlu0 %v862, 8
      %v928 = vpop.permute.xlu0 %927
      %929 = vrot.lane.b32.xlu0 %v874, 8
      %v930 = vpop.permute.xlu0 %929
      %931 = vrot.lane.b32.xlu0 %v886, 8
      %v932 = vpop.permute.xlu0 %931
      %933 = vrot.lane.b32.xlu0 %v898, 8
      %v934 = vpop.permute.xlu0 %933
      %935 = vrot.lane.b32.xlu0 %v910, 8
      %v936 = vpop.permute.xlu0 %935
      %937 = vrot.lane.b32.xlu0 %v922, 8
      %v938 = vpop.permute.xlu0 %937
      %vm947 = vcmask 97344
      %948 = vst.msk [vmem:[#allocation3] sm:$0xff] %vm947, %v924
      %949 = vst.msk [vmem:[#allocation3 + $0x8] sm:$0xff] %vm947, %v926
      %950 = vst.msk [vmem:[#allocation3 + $0x10] sm:$0xff] %vm947, %v928
      %951 = vst.msk [vmem:[#allocation3 + $0x18] sm:$0xff] %vm947, %v930
      %952 = vst.msk [vmem:[#allocation3 + $0x20] sm:$0xff] %vm947, %v932
      %953 = vst.msk [vmem:[#allocation3 + $0x28] sm:$0xff] %vm947, %v934
      %954 = vst.msk [vmem:[#allocation3 + $0x30] sm:$0xff] %vm947, %v936
      %955 = vst.msk [vmem:[#allocation3 + $0x38] sm:$0xff] %vm947, %v938
      %v956 = vld [vmem:[%s390 + $0x4] sm:$0x8]
      %v957 = vld [vmem:[%s390 + $0x8] sm:$0xf]
      %v958 = vld [vmem:[%s390 + $0xc] sm:$0xf]
      %v959 = vld [vmem:[%s390 + $0x18] sm:$0x8]
      %v960 = vld [vmem:[%s390 + $0x1c] sm:$0xf]
      %v961 = vld [vmem:[%s390 + $0x20] sm:$0xf]
      %v962 = vld [vmem:[%s390 + $0x2c] sm:$0x8]
      %v963 = vld [vmem:[%s390 + $0x30] sm:$0xf]
      %v964 = vld [vmem:[%s390 + $0x34] sm:$0xf]
      %v965 = vld [vmem:[%s390 + $0x40] sm:$0x8]
      %v966 = vld [vmem:[%s390 + $0x44] sm:$0xf]
      %v967 = vld [vmem:[%s390 + $0x48] sm:$0xf]
      %v968 = vld [vmem:[%s390 + $0x54] sm:$0x8]
      %v969 = vld [vmem:[%s390 + $0x58] sm:$0xf]
      %v970 = vld [vmem:[%s390 + $0x5c] sm:$0xf]
      %v971 = vld [vmem:[%s390 + $0x68] sm:$0x8]
      %v972 = vld [vmem:[%s390 + $0x6c] sm:$0xf]
      %v973 = vld [vmem:[%s390 + $0x70] sm:$0xf]
      %v974 = vld [vmem:[%s390 + $0x7c] sm:$0x8]
      %v975 = vld [vmem:[%s390 + $0x80] sm:$0xf]
      %v976 = vld [vmem:[%s390 + $0x84] sm:$0xf]
      %v977 = vld [vmem:[%s390 + $0x90] sm:$0x8]
      %v978 = vld [vmem:[%s390 + $0x94] sm:$0xf]
      %v979 = vld [vmem:[%s390 + $0x98] sm:$0xf]
      %v1004 = vunpack.c.l.b16 %v956
      %v1005 = vunpack.c.l.b16 %v957
      %v1006 = vunpack.c.l.b16 %v958
      %v1007 = vunpack.c.l.b16 %v959
      %v1008 = vunpack.c.l.b16 %v960
      %v1009 = vunpack.c.l.b16 %v961
      %v1010 = vunpack.c.l.b16 %v962
      %v1011 = vunpack.c.l.b16 %v963
      %v1012 = vunpack.c.l.b16 %v964
      %v1013 = vunpack.c.l.b16 %v965
      %v1014 = vunpack.c.l.b16 %v966
      %v1015 = vunpack.c.l.b16 %v967
      %v1016 = vunpack.c.l.b16 %v968
      %v1017 = vunpack.c.l.b16 %v969
      %v1018 = vunpack.c.l.b16 %v970
      %v1019 = vunpack.c.l.b16 %v971
      %v1020 = vunpack.c.l.b16 %v972
      %v1021 = vunpack.c.l.b16 %v973
      %v1022 = vunpack.c.l.b16 %v974
      %v1023 = vunpack.c.l.b16 %v975
      %v1024 = vunpack.c.l.b16 %v976
      %v1025 = vunpack.c.l.b16 %v977
      %v1026 = vunpack.c.l.b16 %v978
      %v1027 = vunpack.c.l.b16 %v979
      %v1028 = vpack.c.b16 %v1005, %v1004
      %v1029 = vpack.c.b16 %v1006, %v1006
      %v1030 = vpack.c.b16 %v1008, %v1007
      %v1031 = vpack.c.b16 %v1009, %v1009
      %v1032 = vpack.c.b16 %v1011, %v1010
      %v1033 = vpack.c.b16 %v1012, %v1012
      %v1034 = vpack.c.b16 %v1014, %v1013
      %v1035 = vpack.c.b16 %v1015, %v1015
      %v1036 = vpack.c.b16 %v1017, %v1016
      %v1037 = vpack.c.b16 %v1018, %v1018
      %v1038 = vpack.c.b16 %v1020, %v1019
      %v1039 = vpack.c.b16 %v1021, %v1021
      %v1040 = vpack.c.b16 %v1023, %v1022
      %v1041 = vpack.c.b16 %v1024, %v1024
      %v1042 = vpack.c.b16 %v1026, %v1025
      %v1043 = vpack.c.b16 %v1027, %v1027
      %v1045 = vshrl.u32 %v1028, 16
      %v1047 = vrot.slane %v1045, 3
      %v1048 = vshll.u32 %v1028, 16
      %v1050 = vrot.slane %v1048, 4
      %v1051 = vor.u32 %v1047, %v1050
      %v1053 = vshrl.u32 %v1029, 16
      %v1055 = vrot.slane %v1053, 3
      %v1056 = vshll.u32 %v1029, 16
      %v1058 = vrot.slane %v1056, 4
      %v1059 = vor.u32 %v1055, %v1058
      %v1060 = vsel %vm495, %v1051, %v1059
      %v1062 = vshrl.u32 %v1030, 16
      %v1064 = vrot.slane %v1062, 3
      %v1065 = vshll.u32 %v1030, 16
      %v1067 = vrot.slane %v1065, 4
      %v1068 = vor.u32 %v1064, %v1067
      %v1070 = vshrl.u32 %v1031, 16
      %v1072 = vrot.slane %v1070, 3
      %v1073 = vshll.u32 %v1031, 16
      %v1075 = vrot.slane %v1073, 4
      %v1076 = vor.u32 %v1072, %v1075
      %v1077 = vsel %vm495, %v1068, %v1076
      %v1079 = vshrl.u32 %v1032, 16
      %v1081 = vrot.slane %v1079, 3
      %v1082 = vshll.u32 %v1032, 16
      %v1084 = vrot.slane %v1082, 4
      %v1085 = vor.u32 %v1081, %v1084
      %v1087 = vshrl.u32 %v1033, 16
      %v1089 = vrot.slane %v1087, 3
      %v1090 = vshll.u32 %v1033, 16
      %v1092 = vrot.slane %v1090, 4
      %v1093 = vor.u32 %v1089, %v1092
      %v1094 = vsel %vm495, %v1085, %v1093
      %v1096 = vshrl.u32 %v1034, 16
      %v1098 = vrot.slane %v1096, 3
      %v1099 = vshll.u32 %v1034, 16
      %v1101 = vrot.slane %v1099, 4
      %v1102 = vor.u32 %v1098, %v1101
      %v1104 = vshrl.u32 %v1035, 16
      %v1106 = vrot.slane %v1104, 3
      %v1107 = vshll.u32 %v1035, 16
      %v1109 = vrot.slane %v1107, 4
      %v1110 = vor.u32 %v1106, %v1109
      %v1111 = vsel %vm495, %v1102, %v1110
      %v1113 = vshrl.u32 %v1036, 16
      %v1115 = vrot.slane %v1113, 3
      %v1116 = vshll.u32 %v1036, 16
      %v1118 = vrot.slane %v1116, 4
      %v1119 = vor.u32 %v1115, %v1118
      %v1121 = vshrl.u32 %v1037, 16
      %v1123 = vrot.slane %v1121, 3
      %v1124 = vshll.u32 %v1037, 16
      %v1126 = vrot.slane %v1124, 4
      %v1127 = vor.u32 %v1123, %v1126
      %v1128 = vsel %vm495, %v1119, %v1127
      %v1130 = vshrl.u32 %v1038, 16
      %v1132 = vrot.slane %v1130, 3
      %v1133 = vshll.u32 %v1038, 16
      %v1135 = vrot.slane %v1133, 4
      %v1136 = vor.u32 %v1132, %v1135
      %v1138 = vshrl.u32 %v1039, 16
      %v1140 = vrot.slane %v1138, 3
      %v1141 = vshll.u32 %v1039, 16
      %v1143 = vrot.slane %v1141, 4
      %v1144 = vor.u32 %v1140, %v1143
      %v1145 = vsel %vm495, %v1136, %v1144
      %v1147 = vshrl.u32 %v1040, 16
      %v1149 = vrot.slane %v1147, 3
      %v1150 = vshll.u32 %v1040, 16
      %v1152 = vrot.slane %v1150, 4
      %v1153 = vor.u32 %v1149, %v1152
      %v1155 = vshrl.u32 %v1041, 16
      %v1157 = vrot.slane %v1155, 3
      %v1158 = vshll.u32 %v1041, 16
      %v1160 = vrot.slane %v1158, 4
      %v1161 = vor.u32 %v1157, %v1160
      %v1162 = vsel %vm495, %v1153, %v1161
      %v1164 = vshrl.u32 %v1042, 16
      %v1166 = vrot.slane %v1164, 3
      %v1167 = vshll.u32 %v1042, 16
      %v1169 = vrot.slane %v1167, 4
      %v1170 = vor.u32 %v1166, %v1169
      %v1172 = vshrl.u32 %v1043, 16
      %v1174 = vrot.slane %v1172, 3
      %v1175 = vshll.u32 %v1043, 16
      %v1177 = vrot.slane %v1175, 4
      %v1178 = vor.u32 %v1174, %v1177
      %v1179 = vsel %vm495, %v1170, %v1178
      %1180 = vrot.lane.b32.xlu0 %v1060, 12
      %v1181 = vpop.permute.xlu0 %1180
      %1182 = vrot.lane.b32.xlu0 %v1077, 12
      %v1183 = vpop.permute.xlu0 %1182
      %1184 = vrot.lane.b32.xlu0 %v1094, 12
      %v1185 = vpop.permute.xlu0 %1184
      %1186 = vrot.lane.b32.xlu0 %v1111, 12
      %v1187 = vpop.permute.xlu0 %1186
      %1188 = vrot.lane.b32.xlu0 %v1128, 12
      %v1189 = vpop.permute.xlu0 %1188
      %1190 = vrot.lane.b32.xlu0 %v1145, 12
      %v1191 = vpop.permute.xlu0 %1190
      %1192 = vrot.lane.b32.xlu0 %v1162, 12
      %v1193 = vpop.permute.xlu0 %1192
      %1194 = vrot.lane.b32.xlu0 %v1179, 12
      %v1195 = vpop.permute.xlu0 %1194
      %vm1204 = vcmask 130144
      %1205 = vst.msk [vmem:[#allocation3] sm:$0xff] %vm1204, %v1181
      %1206 = vst.msk [vmem:[#allocation3 + $0x8] sm:$0xff] %vm1204, %v1183
      %1207 = vst.msk [vmem:[#allocation3 + $0x10] sm:$0xff] %vm1204, %v1185
      %1208 = vst.msk [vmem:[#allocation3 + $0x18] sm:$0xff] %vm1204, %v1187
      %1209 = vst.msk [vmem:[#allocation3 + $0x20] sm:$0xff] %vm1204, %v1189
      %1210 = vst.msk [vmem:[#allocation3 + $0x28] sm:$0xff] %vm1204, %v1191
      %1211 = vst.msk [vmem:[#allocation3 + $0x30] sm:$0xff] %vm1204, %v1193
      %1212 = vst.msk [vmem:[#allocation3 + $0x38] sm:$0xff] %vm1204, %v1195
      %v1213 = vld [vmem:[%s390 + $0x8] sm:$0xf]
      %v1214 = vld [vmem:[%s390 + $0xc] sm:$0xf]
      %v1215 = vld [vmem:[%s390 + $0x1c] sm:$0xf]
      %v1216 = vld [vmem:[%s390 + $0x20] sm:$0xf]
      %v1217 = vld [vmem:[%s390 + $0x30] sm:$0xf]
      %v1218 = vld [vmem:[%s390 + $0x34] sm:$0xf]
      %v1219 = vld [vmem:[%s390 + $0x44] sm:$0xf]
      %v1220 = vld [vmem:[%s390 + $0x48] sm:$0xf]
      %v1221 = vld [vmem:[%s390 + $0x58] sm:$0xf]
      %v1222 = vld [vmem:[%s390 + $0x5c] sm:$0xf]
      %v1223 = vld [vmem:[%s390 + $0x6c] sm:$0xf]
      %v1224 = vld [vmem:[%s390 + $0x70] sm:$0xf]
      %v1225 = vld [vmem:[%s390 + $0x80] sm:$0xf]
      %v1226 = vld [vmem:[%s390 + $0x84] sm:$0xf]
      %v1227 = vld [vmem:[%s390 + $0x94] sm:$0xf]
      %v1228 = vld [vmem:[%s390 + $0x98] sm:$0xf]
      %v1245 = vunpack.c.l.b16 %v1213
      %v1246 = vunpack.c.l.b16 %v1214
      %v1247 = vunpack.c.l.b16 %v1215
      %v1248 = vunpack.c.l.b16 %v1216
      %v1249 = vunpack.c.l.b16 %v1217
      %v1250 = vunpack.c.l.b16 %v1218
      %v1251 = vunpack.c.l.b16 %v1219
      %v1252 = vunpack.c.l.b16 %v1220
      %v1253 = vunpack.c.l.b16 %v1221
      %v1254 = vunpack.c.l.b16 %v1222
      %v1255 = vunpack.c.l.b16 %v1223
      %v1256 = vunpack.c.l.b16 %v1224
      %v1257 = vunpack.c.l.b16 %v1225
      %v1258 = vunpack.c.l.b16 %v1226
      %v1259 = vunpack.c.l.b16 %v1227
      %v1260 = vunpack.c.l.b16 %v1228
      %v1261 = vpack.c.b16 %v1246, %v1245
      %v1262 = vpack.c.b16 %v1248, %v1247
      %v1263 = vpack.c.b16 %v1250, %v1249
      %v1264 = vpack.c.b16 %v1252, %v1251
      %v1265 = vpack.c.b16 %v1254, %v1253
      %v1266 = vpack.c.b16 %v1256, %v1255
      %v1267 = vpack.c.b16 %v1258, %v1257
      %v1268 = vpack.c.b16 %v1260, %v1259
      %1269 = vrot.lane.b32.xlu0 %v1261, 16
      %v1270 = vpop.permute.xlu0 %1269
      %1271 = vrot.lane.b32.xlu0 %v1262, 16
      %v1272 = vpop.permute.xlu0 %1271
      %1273 = vrot.lane.b32.xlu0 %v1263, 16
      %v1274 = vpop.permute.xlu0 %1273
      %1275 = vrot.lane.b32.xlu0 %v1264, 16
      %v1276 = vpop.permute.xlu0 %1275
      %1277 = vrot.lane.b32.xlu0 %v1265, 16
      %v1278 = vpop.permute.xlu0 %1277
      %1279 = vrot.lane.b32.xlu0 %v1266, 16
      %v1280 = vpop.permute.xlu0 %1279
      %1281 = vrot.lane.b32.xlu0 %v1267, 16
      %v1282 = vpop.permute.xlu0 %1281
      %1283 = vrot.lane.b32.xlu0 %v1268, 16
      %v1284 = vpop.permute.xlu0 %1283
      %vm1293 = vcmask 162944
      %1294 = vst.msk [vmem:[#allocation3] sm:$0xff] %vm1293, %v1270
      %1295 = vst.msk [vmem:[#allocation3 + $0x8] sm:$0xff] %vm1293, %v1272
      %1296 = vst.msk [vmem:[#allocation3 + $0x10] sm:$0xff] %vm1293, %v1274
      %1297 = vst.msk [vmem:[#allocation3 + $0x18] sm:$0xff] %vm1293, %v1276
      %1298 = vst.msk [vmem:[#allocation3 + $0x20] sm:$0xff] %vm1293, %v1278
      %1299 = vst.msk [vmem:[#allocation3 + $0x28] sm:$0xff] %vm1293, %v1280
      %1300 = vst.msk [vmem:[#allocation3 + $0x30] sm:$0xff] %vm1293, %v1282
      %1301 = vst.msk [vmem:[#allocation3 + $0x38] sm:$0xff] %vm1293, %v1284
      %v1302 = vld [vmem:[%s390 + $0x8] sm:$0xf]
      %v1303 = vld [vmem:[%s390 + $0xc] sm:$0xf]
      %v1304 = vld [vmem:[%s390 + $0x10] sm:$0x1]
      %v1305 = vld [vmem:[%s390 + $0x1c] sm:$0xf]
      %v1306 = vld [vmem:[%s390 + $0x20] sm:$0xf]
      %v1307 = vld [vmem:[%s390 + $0x24] sm:$0x1]
      %v1308 = vld [vmem:[%s390 + $0x30] sm:$0xf]
      %v1309 = vld [vmem:[%s390 + $0x34] sm:$0xf]
      %v1310 = vld [vmem:[%s390 + $0x38] sm:$0x1]
      %v1311 = vld [vmem:[%s390 + $0x44] sm:$0xf]
      %v1312 = vld [vmem:[%s390 + $0x48] sm:$0xf]
      %v1313 = vld [vmem:[%s390 + $0x4c] sm:$0x1]
      %v1314 = vld [vmem:[%s390 + $0x58] sm:$0xf]
      %v1315 = vld [vmem:[%s390 + $0x5c] sm:$0xf]
      %v1316 = vld [vmem:[%s390 + $0x60] sm:$0x1]
      %v1317 = vld [vmem:[%s390 + $0x6c] sm:$0xf]
      %v1318 = vld [vmem:[%s390 + $0x70] sm:$0xf]
      %v1319 = vld [vmem:[%s390 + $0x74] sm:$0x1]
      %v1320 = vld [vmem:[%s390 + $0x80] sm:$0xf]
      %v1321 = vld [vmem:[%s390 + $0x84] sm:$0xf]
      %v1322 = vld [vmem:[%s390 + $0x88] sm:$0x1]
      %v1323 = vld [vmem:[%s390 + $0x94] sm:$0xf]
      %v1324 = vld [vmem:[%s390 + $0x98] sm:$0xf]
      %v1325 = vld [vmem:[%s390 + $0x9c] sm:$0x1]
      %v1350 = vunpack.c.l.b16 %v1302
      %v1351 = vunpack.c.l.b16 %v1303
      %v1352 = vunpack.c.l.b16 %v1304
      %v1353 = vunpack.c.l.b16 %v1305
      %v1354 = vunpack.c.l.b16 %v1306
      %v1355 = vunpack.c.l.b16 %v1307
      %v1356 = vunpack.c.l.b16 %v1308
      %v1357 = vunpack.c.l.b16 %v1309
      %v1358 = vunpack.c.l.b16 %v1310
      %v1359 = vunpack.c.l.b16 %v1311
      %v1360 = vunpack.c.l.b16 %v1312
      %v1361 = vunpack.c.l.b16 %v1313
      %v1362 = vunpack.c.l.b16 %v1314
      %v1363 = vunpack.c.l.b16 %v1315
      %v1364 = vunpack.c.l.b16 %v1316
      %v1365 = vunpack.c.l.b16 %v1317
      %v1366 = vunpack.c.l.b16 %v1318
      %v1367 = vunpack.c.l.b16 %v1319
      %v1368 = vunpack.c.l.b16 %v1320
      %v1369 = vunpack.c.l.b16 %v1321
      %v1370 = vunpack.c.l.b16 %v1322
      %v1371 = vunpack.c.l.b16 %v1323
      %v1372 = vunpack.c.l.b16 %v1324
      %v1373 = vunpack.c.l.b16 %v1325
      %v1374 = vpack.c.b16 %v1351, %v1350
      %v1375 = vpack.c.b16 %v1352, %v1352
      %v1376 = vpack.c.b16 %v1354, %v1353
      %v1377 = vpack.c.b16 %v1355, %v1355
      %v1378 = vpack.c.b16 %v1357, %v1356
      %v1379 = vpack.c.b16 %v1358, %v1358
      %v1380 = vpack.c.b16 %v1360, %v1359
      %v1381 = vpack.c.b16 %v1361, %v1361
      %v1382 = vpack.c.b16 %v1363, %v1362
      %v1383 = vpack.c.b16 %v1364, %v1364
      %v1384 = vpack.c.b16 %v1366, %v1365
      %v1385 = vpack.c.b16 %v1367, %v1367
      %v1386 = vpack.c.b16 %v1369, %v1368
      %v1387 = vpack.c.b16 %v1370, %v1370
      %v1388 = vpack.c.b16 %v1372, %v1371
      %v1389 = vpack.c.b16 %v1373, %v1373
      %v1391 = vshrl.u32 %v1374, 16
      %v1393 = vshll.u32 %v1374, 16
      %v1395 = vrot.slane %v1393, 1
      %v1396 = vor.u32 %v1391, %v1395
      %v1398 = vshll.u32 %v1375, 16
      %v1400 = vrot.slane %v1398, 1
      %v1401 = vsel %vm826, %v1396, %v1400
      %v1403 = vshrl.u32 %v1376, 16
      %v1405 = vshll.u32 %v1376, 16
      %v1407 = vrot.slane %v1405, 1
      %v1408 = vor.u32 %v1403, %v1407
      %v1410 = vshll.u32 %v1377, 16
      %v1412 = vrot.slane %v1410, 1
      %v1413 = vsel %vm826, %v1408, %v1412
      %v1415 = vshrl.u32 %v1378, 16
      %v1417 = vshll.u32 %v1378, 16
      %v1419 = vrot.slane %v1417, 1
      %v1420 = vor.u32 %v1415, %v1419
      %v1422 = vshll.u32 %v1379, 16
      %v1424 = vrot.slane %v1422, 1
      %v1425 = vsel %vm826, %v1420, %v1424
      %v1427 = vshrl.u32 %v1380, 16
      %v1429 = vshll.u32 %v1380, 16
      %v1431 = vrot.slane %v1429, 1
      %v1432 = vor.u32 %v1427, %v1431
      %v1434 = vshll.u32 %v1381, 16
      %v1436 = vrot.slane %v1434, 1
      %v1437 = vsel %vm826, %v1432, %v1436
      %v1439 = vshrl.u32 %v1382, 16
      %v1441 = vshll.u32 %v1382, 16
      %v1443 = vrot.slane %v1441, 1
      %v1444 = vor.u32 %v1439, %v1443
      %v1446 = vshll.u32 %v1383, 16
      %v1448 = vrot.slane %v1446, 1
      %v1449 = vsel %vm826, %v1444, %v1448
      %v1451 = vshrl.u32 %v1384, 16
      %v1453 = vshll.u32 %v1384, 16
      %v1455 = vrot.slane %v1453, 1
      %v1456 = vor.u32 %v1451, %v1455
      %v1458 = vshll.u32 %v1385, 16
      %v1460 = vrot.slane %v1458, 1
      %v1461 = vsel %vm826, %v1456, %v1460
      %v1463 = vshrl.u32 %v1386, 16
      %v1465 = vshll.u32 %v1386, 16
      %v1467 = vrot.slane %v1465, 1
      %v1468 = vor.u32 %v1463, %v1467
      %v1470 = vshll.u32 %v1387, 16
      %v1472 = vrot.slane %v1470, 1
      %v1473 = vsel %vm826, %v1468, %v1472
      %v1475 = vshrl.u32 %v1388, 16
      %v1477 = vshll.u32 %v1388, 16
      %v1479 = vrot.slane %v1477, 1
      %v1480 = vor.u32 %v1475, %v1479
      %v1482 = vshll.u32 %v1389, 16
      %v1484 = vrot.slane %v1482, 1
      %v1485 = vsel %vm826, %v1480, %v1484
      %1486 = vrot.lane.b32.xlu0 %v1401, 20
      %v1487 = vpop.permute.xlu0 %1486
      %1488 = vrot.lane.b32.xlu0 %v1413, 20
      %v1489 = vpop.permute.xlu0 %1488
      %1490 = vrot.lane.b32.xlu0 %v1425, 20
      %v1491 = vpop.permute.xlu0 %1490
      %1492 = vrot.lane.b32.xlu0 %v1437, 20
      %v1493 = vpop.permute.xlu0 %1492
      %1494 = vrot.lane.b32.xlu0 %v1449, 20
      %v1495 = vpop.permute.xlu0 %1494
      %1496 = vrot.lane.b32.xlu0 %v1461, 20
      %v1497 = vpop.permute.xlu0 %1496
      %1498 = vrot.lane.b32.xlu0 %v1473, 20
      %v1499 = vpop.permute.xlu0 %1498
      %1500 = vrot.lane.b32.xlu0 %v1485, 20
      %v1501 = vpop.permute.xlu0 %1500
      %vm1510 = vcmask 195744
      %1511 = vst.msk [vmem:[#allocation3] sm:$0xff] %vm1510, %v1487
      %1512 = vst.msk [vmem:[#allocation3 + $0x8] sm:$0xff] %vm1510, %v1489
      %1513 = vst.msk [vmem:[#allocation3 + $0x10] sm:$0xff] %vm1510, %v1491
      %1514 = vst.msk [vmem:[#allocation3 + $0x18] sm:$0xff] %vm1510, %v1493
      %1515 = vst.msk [vmem:[#allocation3 + $0x20] sm:$0xff] %vm1510, %v1495
      %1516 = vst.msk [vmem:[#allocation3 + $0x28] sm:$0xff] %vm1510, %v1497
      %1517 = vst.msk [vmem:[#allocation3 + $0x30] sm:$0xff] %vm1510, %v1499
      %1518 = vst.msk [vmem:[#allocation3 + $0x38] sm:$0xff] %vm1510, %v1501
      %s1519 = scalar_lea.vmem [#allocation2], 40
      %v1520 = vld [vmem:[%s1519 + $0x4] sm:$0x8]
      %v1521 = vld [vmem:[%s1519 + $0x8] sm:$0xf]
      %v1522 = vld [vmem:[%s1519 + $0xc] sm:$0xf]
      %v1523 = vld [vmem:[%s1519 + $0x18] sm:$0x8]
      %v1524 = vld [vmem:[%s1519 + $0x1c] sm:$0xf]
      %v1525 = vld [vmem:[%s1519 + $0x20] sm:$0xf]
      %v1526 = vld [vmem:[%s1519 + $0x2c] sm:$0x8]
      %v1527 = vld [vmem:[%s1519 + $0x30] sm:$0xf]
      %v1528 = vld [vmem:[%s1519 + $0x34] sm:$0xf]
      %v1529 = vld [vmem:[%s1519 + $0x40] sm:$0x8]
      %v1530 = vld [vmem:[%s1519 + $0x44] sm:$0xf]
      %v1531 = vld [vmem:[%s1519 + $0x48] sm:$0xf]
      %v1532 = vld [vmem:[%s1519 + $0x54] sm:$0x8]
      %v1533 = vld [vmem:[%s1519 + $0x58] sm:$0xf]
      %v1534 = vld [vmem:[%s1519 + $0x5c] sm:$0xf]
      %v1535 = vld [vmem:[%s1519 + $0x68] sm:$0x8]
      %v1536 = vld [vmem:[%s1519 + $0x6c] sm:$0xf]
      %v1537 = vld [vmem:[%s1519 + $0x70] sm:$0xf]
      %v1538 = vld [vmem:[%s1519 + $0x7c] sm:$0x8]
      %v1539 = vld [vmem:[%s1519 + $0x80] sm:$0xf]
      %v1540 = vld [vmem:[%s1519 + $0x84] sm:$0xf]
      %v1541 = vld [vmem:[%s1519 + $0x90] sm:$0x8]
      %v1542 = vld [vmem:[%s1519 + $0x94] sm:$0xf]
      %v1543 = vld [vmem:[%s1519 + $0x98] sm:$0xf]
      %v1568 = vunpack.c.l.b16 %v1520
      %v1569 = vunpack.c.l.b16 %v1521
      %v1570 = vunpack.c.l.b16 %v1522
      %v1571 = vunpack.c.l.b16 %v1523
      %v1572 = vunpack.c.l.b16 %v1524
      %v1573 = vunpack.c.l.b16 %v1525
      %v1574 = vunpack.c.l.b16 %v1526
      %v1575 = vunpack.c.l.b16 %v1527
      %v1576 = vunpack.c.l.b16 %v1528
      %v1577 = vunpack.c.l.b16 %v1529
      %v1578 = vunpack.c.l.b16 %v1530
      %v1579 = vunpack.c.l.b16 %v1531
      %v1580 = vunpack.c.l.b16 %v1532
      %v1581 = vunpack.c.l.b16 %v1533
      %v1582 = vunpack.c.l.b16 %v1534
      %v1583 = vunpack.c.l.b16 %v1535
      %v1584 = vunpack.c.l.b16 %v1536
      %v1585 = vunpack.c.l.b16 %v1537
      %v1586 = vunpack.c.l.b16 %v1538
      %v1587 = vunpack.c.l.b16 %v1539
      %v1588 = vunpack.c.l.b16 %v1540
      %v1589 = vunpack.c.l.b16 %v1541
      %v1590 = vunpack.c.l.b16 %v1542
      %v1591 = vunpack.c.l.b16 %v1543
      %v1592 = vpack.c.b16 %v1569, %v1568
      %v1593 = vpack.c.b16 %v1570, %v1570
      %v1594 = vpack.c.b16 %v1572, %v1571
      %v1595 = vpack.c.b16 %v1573, %v1573
      %v1596 = vpack.c.b16 %v1575, %v1574
      %v1597 = vpack.c.b16 %v1576, %v1576
      %v1598 = vpack.c.b16 %v1578, %v1577
      %v1599 = vpack.c.b16 %v1579, %v1579
      %v1600 = vpack.c.b16 %v1581, %v1580
      %v1601 = vpack.c.b16 %v1582, %v1582
      %v1602 = vpack.c.b16 %v1584, %v1583
      %v1603 = vpack.c.b16 %v1585, %v1585
      %v1604 = vpack.c.b16 %v1587, %v1586
      %v1605 = vpack.c.b16 %v1588, %v1588
      %v1606 = vpack.c.b16 %v1590, %v1589
      %v1607 = vpack.c.b16 %v1591, %v1591
      %v1609 = vshrl.u32 %v1592, 16
      %v1611 = vrot.slane %v1609, 3
      %v1612 = vshll.u32 %v1592, 16
      %v1614 = vrot.slane %v1612, 4
      %v1615 = vor.u32 %v1611, %v1614
      %v1617 = vshrl.u32 %v1593, 16
      %v1619 = vrot.slane %v1617, 3
      %v1620 = vshll.u32 %v1593, 16
      %v1622 = vrot.slane %v1620, 4
      %v1623 = vor.u32 %v1619, %v1622
      %v1624 = vsel %vm495, %v1615, %v1623
      %v1626 = vshrl.u32 %v1594, 16
      %v1628 = vrot.slane %v1626, 3
      %v1629 = vshll.u32 %v1594, 16
      %v1631 = vrot.slane %v1629, 4
      %v1632 = vor.u32 %v1628, %v1631
      %v1634 = vshrl.u32 %v1595, 16
      %v1636 = vrot.slane %v1634, 3
      %v1637 = vshll.u32 %v1595, 16
      %v1639 = vrot.slane %v1637, 4
      %v1640 = vor.u32 %v1636, %v1639
      %v1641 = vsel %vm495, %v1632, %v1640
      %v1643 = vshrl.u32 %v1596, 16
      %v1645 = vrot.slane %v1643, 3
      %v1646 = vshll.u32 %v1596, 16
      %v1648 = vrot.slane %v1646, 4
      %v1649 = vor.u32 %v1645, %v1648
      %v1651 = vshrl.u32 %v1597, 16
      %v1653 = vrot.slane %v1651, 3
      %v1654 = vshll.u32 %v1597, 16
      %v1656 = vrot.slane %v1654, 4
      %v1657 = vor.u32 %v1653, %v1656
      %v1658 = vsel %vm495, %v1649, %v1657
      %v1660 = vshrl.u32 %v1598, 16
      %v1662 = vrot.slane %v1660, 3
      %v1663 = vshll.u32 %v1598, 16
      %v1665 = vrot.slane %v1663, 4
      %v1666 = vor.u32 %v1662, %v1665
      %v1668 = vshrl.u32 %v1599, 16
      %v1670 = vrot.slane %v1668, 3
      %v1671 = vshll.u32 %v1599, 16
      %v1673 = vrot.slane %v1671, 4
      %v1674 = vor.u32 %v1670, %v1673
      %v1675 = vsel %vm495, %v1666, %v1674
      %v1677 = vshrl.u32 %v1600, 16
      %v1679 = vrot.slane %v1677, 3
      %v1680 = vshll.u32 %v1600, 16
      %v1682 = vrot.slane %v1680, 4
      %v1683 = vor.u32 %v1679, %v1682
      %v1685 = vshrl.u32 %v1601, 16
      %v1687 = vrot.slane %v1685, 3
      %v1688 = vshll.u32 %v1601, 16
      %v1690 = vrot.slane %v1688, 4
      %v1691 = vor.u32 %v1687, %v1690
      %v1692 = vsel %vm495, %v1683, %v1691
      %v1694 = vshrl.u32 %v1602, 16
      %v1696 = vrot.slane %v1694, 3
      %v1697 = vshll.u32 %v1602, 16
      %v1699 = vrot.slane %v1697, 4
      %v1700 = vor.u32 %v1696, %v1699
      %v1702 = vshrl.u32 %v1603, 16
      %v1704 = vrot.slane %v1702, 3
      %v1705 = vshll.u32 %v1603, 16
      %v1707 = vrot.slane %v1705, 4
      %v1708 = vor.u32 %v1704, %v1707
      %v1709 = vsel %vm495, %v1700, %v1708
      %v1711 = vshrl.u32 %v1604, 16
      %v1713 = vrot.slane %v1711, 3
      %v1714 = vshll.u32 %v1604, 16
      %v1716 = vrot.slane %v1714, 4
      %v1717 = vor.u32 %v1713, %v1716
      %v1719 = vshrl.u32 %v1605, 16
      %v1721 = vrot.slane %v1719, 3
      %v1722 = vshll.u32 %v1605, 16
      %v1724 = vrot.slane %v1722, 4
      %v1725 = vor.u32 %v1721, %v1724
      %v1726 = vsel %vm495, %v1717, %v1725
      %v1728 = vshrl.u32 %v1606, 16
      %v1730 = vrot.slane %v1728, 3
      %v1731 = vshll.u32 %v1606, 16
      %v1733 = vrot.slane %v1731, 4
      %v1734 = vor.u32 %v1730, %v1733
      %v1736 = vshrl.u32 %v1607, 16
      %v1738 = vrot.slane %v1736, 3
      %v1739 = vshll.u32 %v1607, 16
      %v1741 = vrot.slane %v1739, 4
      %v1742 = vor.u32 %v1738, %v1741
      %v1743 = vsel %vm495, %v1734, %v1742
      %1744 = vrot.lane.b32.xlu0 %v1624, 24
      %v1745 = vpop.permute.xlu0 %1744
      %1746 = vrot.lane.b32.xlu0 %v1641, 24
      %v1747 = vpop.permute.xlu0 %1746
      %1748 = vrot.lane.b32.xlu0 %v1658, 24
      %v1749 = vpop.permute.xlu0 %1748
      %1750 = vrot.lane.b32.xlu0 %v1675, 24
      %v1751 = vpop.permute.xlu0 %1750
      %1752 = vrot.lane.b32.xlu0 %v1692, 24
      %v1753 = vpop.permute.xlu0 %1752
      %1754 = vrot.lane.b32.xlu0 %v1709, 24
      %v1755 = vpop.permute.xlu0 %1754
      %1756 = vrot.lane.b32.xlu0 %v1726, 24
      %v1757 = vpop.permute.xlu0 %1756
      %1758 = vrot.lane.b32.xlu0 %v1743, 24
      %v1759 = vpop.permute.xlu0 %1758
      %vm1768 = vcmask 228544
      %1769 = vst.msk [vmem:[#allocation3] sm:$0xff] %vm1768, %v1745
      %1770 = vst.msk [vmem:[#allocation3 + $0x8] sm:$0xff] %vm1768, %v1747
      %1771 = vst.msk [vmem:[#allocation3 + $0x10] sm:$0xff] %vm1768, %v1749
      %1772 = vst.msk [vmem:[#allocation3 + $0x18] sm:$0xff] %vm1768, %v1751
      %1773 = vst.msk [vmem:[#allocation3 + $0x20] sm:$0xff] %vm1768, %v1753
      %1774 = vst.msk [vmem:[#allocation3 + $0x28] sm:$0xff] %vm1768, %v1755
      %1775 = vst.msk [vmem:[#allocation3 + $0x30] sm:$0xff] %vm1768, %v1757
      %1776 = vst.msk [vmem:[#allocation3 + $0x38] sm:$0xff] %vm1768, %v1759
      %v1777 = vld [vmem:[%s1519 + $0x8] sm:$0xf]
      %v1778 = vld [vmem:[%s1519 + $0xc] sm:$0xf]
      %v1779 = vld [vmem:[%s1519 + $0x1c] sm:$0xf]
      %v1780 = vld [vmem:[%s1519 + $0x20] sm:$0xf]
      %v1781 = vld [vmem:[%s1519 + $0x30] sm:$0xf]
      %v1782 = vld [vmem:[%s1519 + $0x34] sm:$0xf]
      %v1783 = vld [vmem:[%s1519 + $0x44] sm:$0xf]
      %v1784 = vld [vmem:[%s1519 + $0x48] sm:$0xf]
      %v1785 = vld [vmem:[%s1519 + $0x58] sm:$0xf]
      %v1786 = vld [vmem:[%s1519 + $0x5c] sm:$0xf]
      %v1787 = vld [vmem:[%s1519 + $0x6c] sm:$0xf]
      %v1788 = vld [vmem:[%s1519 + $0x70] sm:$0xf]
      %v1789 = vld [vmem:[%s1519 + $0x80] sm:$0xf]
      %v1790 = vld [vmem:[%s1519 + $0x84] sm:$0xf]
      %v1791 = vld [vmem:[%s1519 + $0x94] sm:$0xf]
      %v1792 = vld [vmem:[%s1519 + $0x98] sm:$0xf]
      %v1809 = vunpack.c.l.b16 %v1777
      %v1810 = vunpack.c.l.b16 %v1778
      %v1811 = vunpack.c.l.b16 %v1779
      %v1812 = vunpack.c.l.b16 %v1780
      %v1813 = vunpack.c.l.b16 %v1781
      %v1814 = vunpack.c.l.b16 %v1782
      %v1815 = vunpack.c.l.b16 %v1783
      %v1816 = vunpack.c.l.b16 %v1784
      %v1817 = vunpack.c.l.b16 %v1785
      %v1818 = vunpack.c.l.b16 %v1786
      %v1819 = vunpack.c.l.b16 %v1787
      %v1820 = vunpack.c.l.b16 %v1788
      %v1821 = vunpack.c.l.b16 %v1789
      %v1822 = vunpack.c.l.b16 %v1790
      %v1823 = vunpack.c.l.b16 %v1791
      %v1824 = vunpack.c.l.b16 %v1792
      %v1825 = vpack.c.b16 %v1810, %v1809
      %v1826 = vpack.c.b16 %v1812, %v1811
      %v1827 = vpack.c.b16 %v1814, %v1813
      %v1828 = vpack.c.b16 %v1816, %v1815
      %v1829 = vpack.c.b16 %v1818, %v1817
      %v1830 = vpack.c.b16 %v1820, %v1819
      %v1831 = vpack.c.b16 %v1822, %v1821
      %v1832 = vpack.c.b16 %v1824, %v1823
      %1833 = vrot.lane.b32.xlu0 %v1825, 28
      %v1834 = vpop.permute.xlu0 %1833
      %1835 = vrot.lane.b32.xlu0 %v1826, 28
      %v1836 = vpop.permute.xlu0 %1835
      %1837 = vrot.lane.b32.xlu0 %v1827, 28
      %v1838 = vpop.permute.xlu0 %1837
      %1839 = vrot.lane.b32.xlu0 %v1828, 28
      %v1840 = vpop.permute.xlu0 %1839
      %1841 = vrot.lane.b32.xlu0 %v1829, 28
      %v1842 = vpop.permute.xlu0 %1841
      %1843 = vrot.lane.b32.xlu0 %v1830, 28
      %v1844 = vpop.permute.xlu0 %1843
      %1845 = vrot.lane.b32.xlu0 %v1831, 28
      %v1846 = vpop.permute.xlu0 %1845
      %1847 = vrot.lane.b32.xlu0 %v1832, 28
      %v1848 = vpop.permute.xlu0 %1847
      %vm1857 = vcmask 261344
      %1858 = vst.msk [vmem:[#allocation3] sm:$0xff] %vm1857, %v1834
      %1859 = vst.msk [vmem:[#allocation3 + $0x8] sm:$0xff] %vm1857, %v1836
      %1860 = vst.msk [vmem:[#allocation3 + $0x10] sm:$0xff] %vm1857, %v1838
      %1861 = vst.msk [vmem:[#allocation3 + $0x18] sm:$0xff] %vm1857, %v1840
      %1862 = vst.msk [vmem:[#allocation3 + $0x20] sm:$0xff] %vm1857, %v1842
      %1863 = vst.msk [vmem:[#allocation3 + $0x28] sm:$0xff] %vm1857, %v1844
      %1864 = vst.msk [vmem:[#allocation3 + $0x30] sm:$0xff] %vm1857, %v1846
      %1865 = vst.msk [vmem:[#allocation3 + $0x38] sm:$0xff] %vm1857, %v1848
      %v1866 = vld [vmem:[%s1519 + $0x8] sm:$0xf]
      %v1867 = vld [vmem:[%s1519 + $0xc] sm:$0xf]
      %v1868 = vld [vmem:[%s1519 + $0x10] sm:$0x1]
      %v1869 = vld [vmem:[%s1519 + $0x1c] sm:$0xf]
      %v1870 = vld [vmem:[%s1519 + $0x20] sm:$0xf]
      %v1871 = vld [vmem:[%s1519 + $0x24] sm:$0x1]
      %v1872 = vld [vmem:[%s1519 + $0x30] sm:$0xf]
      %v1873 = vld [vmem:[%s1519 + $0x34] sm:$0xf]
      %v1874 = vld [vmem:[%s1519 + $0x38] sm:$0x1]
      %v1875 = vld [vmem:[%s1519 + $0x44] sm:$0xf]
      %v1876 = vld [vmem:[%s1519 + $0x48] sm:$0xf]
      %v1877 = vld [vmem:[%s1519 + $0x4c] sm:$0x1]
      %v1878 = vld [vmem:[%s1519 + $0x58] sm:$0xf]
      %v1879 = vld [vmem:[%s1519 + $0x5c] sm:$0xf]
      %v1880 = vld [vmem:[%s1519 + $0x60] sm:$0x1]
      %v1881 = vld [vmem:[%s1519 + $0x6c] sm:$0xf]
      %v1882 = vld [vmem:[%s1519 + $0x70] sm:$0xf]
      %v1883 = vld [vmem:[%s1519 + $0x74] sm:$0x1]
      %v1884 = vld [vmem:[%s1519 + $0x80] sm:$0xf]
      %v1885 = vld [vmem:[%s1519 + $0x84] sm:$0xf]
      %v1886 = vld [vmem:[%s1519 + $0x88] sm:$0x1]
      %v1887 = vld [vmem:[%s1519 + $0x94] sm:$0xf]
      %v1888 = vld [vmem:[%s1519 + $0x98] sm:$0xf]
      %v1889 = vld [vmem:[%s1519 + $0x9c] sm:$0x1]
      %v1914 = vunpack.c.l.b16 %v1866
      %v1915 = vunpack.c.l.b16 %v1867
      %v1916 = vunpack.c.l.b16 %v1868
      %v1917 = vunpack.c.l.b16 %v1869
      %v1918 = vunpack.c.l.b16 %v1870
      %v1919 = vunpack.c.l.b16 %v1871
      %v1920 = vunpack.c.l.b16 %v1872
      %v1921 = vunpack.c.l.b16 %v1873
      %v1922 = vunpack.c.l.b16 %v1874
      %v1923 = vunpack.c.l.b16 %v1875
      %v1924 = vunpack.c.l.b16 %v1876
      %v1925 = vunpack.c.l.b16 %v1877
      %v1926 = vunpack.c.l.b16 %v1878
      %v1927 = vunpack.c.l.b16 %v1879
      %v1928 = vunpack.c.l.b16 %v1880
      %v1929 = vunpack.c.l.b16 %v1881
      %v1930 = vunpack.c.l.b16 %v1882
      %v1931 = vunpack.c.l.b16 %v1883
      %v1932 = vunpack.c.l.b16 %v1884
      %v1933 = vunpack.c.l.b16 %v1885
      %v1934 = vunpack.c.l.b16 %v1886
      %v1935 = vunpack.c.l.b16 %v1887
      %v1936 = vunpack.c.l.b16 %v1888
      %v1937 = vunpack.c.l.b16 %v1889
      %v1938 = vpack.c.b16 %v1915, %v1914
      %v1939 = vpack.c.b16 %v1916, %v1916
      %v1940 = vpack.c.b16 %v1918, %v1917
      %v1941 = vpack.c.b16 %v1919, %v1919
      %v1942 = vpack.c.b16 %v1921, %v1920
      %v1943 = vpack.c.b16 %v1922, %v1922
      %v1944 = vpack.c.b16 %v1924, %v1923
      %v1945 = vpack.c.b16 %v1925, %v1925
      %v1946 = vpack.c.b16 %v1927, %v1926
      %v1947 = vpack.c.b16 %v1928, %v1928
      %v1948 = vpack.c.b16 %v1930, %v1929
      %v1949 = vpack.c.b16 %v1931, %v1931
      %v1950 = vpack.c.b16 %v1933, %v1932
      %v1951 = vpack.c.b16 %v1934, %v1934
      %v1952 = vpack.c.b16 %v1936, %v1935
      %v1953 = vpack.c.b16 %v1937, %v1937
      %v1955 = vshrl.u32 %v1938, 16
      %v1957 = vshll.u32 %v1938, 16
      %v1959 = vrot.slane %v1957, 1
      %v1960 = vor.u32 %v1955, %v1959
      %v1962 = vshll.u32 %v1939, 16
      %v1964 = vrot.slane %v1962, 1
      %v1965 = vsel %vm826, %v1960, %v1964
      %v1967 = vshrl.u32 %v1940, 16
      %v1969 = vshll.u32 %v1940, 16
      %v1971 = vrot.slane %v1969, 1
      %v1972 = vor.u32 %v1967, %v1971
      %v1974 = vshll.u32 %v1941, 16
      %v1976 = vrot.slane %v1974, 1
      %v1977 = vsel %vm826, %v1972, %v1976
      %v1979 = vshrl.u32 %v1942, 16
      %v1981 = vshll.u32 %v1942, 16
      %v1983 = vrot.slane %v1981, 1
      %v1984 = vor.u32 %v1979, %v1983
      %v1986 = vshll.u32 %v1943, 16
      %v1988 = vrot.slane %v1986, 1
      %v1989 = vsel %vm826, %v1984, %v1988
      %v1991 = vshrl.u32 %v1944, 16
      %v1993 = vshll.u32 %v1944, 16
      %v1995 = vrot.slane %v1993, 1
      %v1996 = vor.u32 %v1991, %v1995
      %v1998 = vshll.u32 %v1945, 16
      %v2000 = vrot.slane %v1998, 1
      %v2001 = vsel %vm826, %v1996, %v2000
      %v2003 = vshrl.u32 %v1946, 16
      %v2005 = vshll.u32 %v1946, 16
      %v2007 = vrot.slane %v2005, 1
      %v2008 = vor.u32 %v2003, %v2007
      %v2010 = vshll.u32 %v1947, 16
      %v2012 = vrot.slane %v2010, 1
      %v2013 = vsel %vm826, %v2008, %v2012
      %v2015 = vshrl.u32 %v1948, 16
      %v2017 = vshll.u32 %v1948, 16
      %v2019 = vrot.slane %v2017, 1
      %v2020 = vor.u32 %v2015, %v2019
      %v2022 = vshll.u32 %v1949, 16
      %v2024 = vrot.slane %v2022, 1
      %v2025 = vsel %vm826, %v2020, %v2024
      %v2027 = vshrl.u32 %v1950, 16
      %v2029 = vshll.u32 %v1950, 16
      %v2031 = vrot.slane %v2029, 1
      %v2032 = vor.u32 %v2027, %v2031
      %v2034 = vshll.u32 %v1951, 16
      %v2036 = vrot.slane %v2034, 1
      %v2037 = vsel %vm826, %v2032, %v2036
      %v2039 = vshrl.u32 %v1952, 16
      %v2041 = vshll.u32 %v1952, 16
      %v2043 = vrot.slane %v2041, 1
      %v2044 = vor.u32 %v2039, %v2043
      %v2046 = vshll.u32 %v1953, 16
      %v2048 = vrot.slane %v2046, 1
      %v2049 = vsel %vm826, %v2044, %v2048
      %2050 = vrot.lane.b32.xlu0 %v1965, 32
      %v2051 = vpop.permute.xlu0 %2050
      %2052 = vrot.lane.b32.xlu0 %v1977, 32
      %v2053 = vpop.permute.xlu0 %2052
      %2054 = vrot.lane.b32.xlu0 %v1989, 32
      %v2055 = vpop.permute.xlu0 %2054
      %2056 = vrot.lane.b32.xlu0 %v2001, 32
      %v2057 = vpop.permute.xlu0 %2056
      %2058 = vrot.lane.b32.xlu0 %v2013, 32
      %v2059 = vpop.permute.xlu0 %2058
      %2060 = vrot.lane.b32.xlu0 %v2025, 32
      %v2061 = vpop.permute.xlu0 %2060
      %2062 = vrot.lane.b32.xlu0 %v2037, 32
      %v2063 = vpop.permute.xlu0 %2062
      %2064 = vrot.lane.b32.xlu0 %v2049, 32
      %v2065 = vpop.permute.xlu0 %2064
      %vm2074 = vcmask 294144
      %2075 = vst.msk [vmem:[#allocation3] sm:$0xff] %vm2074, %v2051
      %2076 = vst.msk [vmem:[#allocation3 + $0x8] sm:$0xff] %vm2074, %v2053
      %2077 = vst.msk [vmem:[#allocation3 + $0x10] sm:$0xff] %vm2074, %v2055
      %2078 = vst.msk [vmem:[#allocation3 + $0x18] sm:$0xff] %vm2074, %v2057
      %2079 = vst.msk [vmem:[#allocation3 + $0x20] sm:$0xff] %vm2074, %v2059
      %2080 = vst.msk [vmem:[#allocation3 + $0x28] sm:$0xff] %vm2074, %v2061
      %2081 = vst.msk [vmem:[#allocation3 + $0x30] sm:$0xff] %vm2074, %v2063
      %2082 = vst.msk [vmem:[#allocation3 + $0x38] sm:$0xff] %vm2074, %v2065
      %v2083 = vld [vmem:[#allocation3] sm:$0xff]
      %v2084 = vld [vmem:[#allocation3 + $0x8] sm:$0xff]
      %v2085 = vld [vmem:[#allocation3 + $0x10] sm:$0xff]
      %v2086 = vld [vmem:[#allocation3 + $0x18] sm:$0xff]
      %v2087 = vld [vmem:[#allocation3 + $0x20] sm:$0xff]
      %v2088 = vld [vmem:[#allocation3 + $0x28] sm:$0xff]
      %v2089 = vld [vmem:[#allocation3 + $0x30] sm:$0xff]
      %v2090 = vld [vmem:[#allocation3 + $0x38] sm:$0xff]
      %v2091 = vld [vmem:[%s2] sm:$0xf]
      %v2092 = vld [vmem:[%s2 + $0x4] sm:$0xf]
      %v2093 = vld [vmem:[%s2 + $0x8] sm:$0xf]
      %v2094 = vld [vmem:[%s2 + $0xc] sm:$0xf]
      %v2095 = vld [vmem:[%s2 + $0x10] sm:$0x3]
      %v2101 = vunpack.c.l.b16 %v2091
      %v2102 = vunpack.c.l.b16 %v2092
      %v2103 = vunpack.c.l.b16 %v2093
      %v2104 = vunpack.c.l.b16 %v2094
      %v2105 = vunpack.c.l.b16 %v2095
      %v2106 = vpack.c.b16 %v2102, %v2101
      %v2107 = vpack.c.b16 %v2104, %v2103
      %v2108 = vpack.c.b16 %v2105, %v2105
      %vm2111 = vcmask 293888
      %v2113 = vsel %vm2111, %v2083, 0
      %v2116 = vsel %vm2111, %v2084, 0
      %v2119 = vsel %vm2111, %v2085, 0
      %v2122 = vsel %vm2111, %v2086, 0
      %v2125 = vsel %vm2111, %v2087, 0
      %v2128 = vsel %vm2111, %v2088, 0
      %v2131 = vsel %vm2111, %v2089, 0
      %v2134 = vsel %vm2111, %v2090, 0
      %vm2136 = vcmask 1041408
      %v2138 = vsel %vm2136, %v2108, 0
      %2140 = vmatprep.subr.bf16.mxu0 0
      %2141 = vmatpush1.bf16.msra.mxu0 %v2106
      %2142 = vmatprep.subr.bf16.mxu0 0
      %2143 = vmatpush1.bf16.msra.mxu0 %v2107
      %2144 = vmatprep.subr.bf16.mxu0 0
      %2145 = vmatpush1.bf16.msra.mxu0 %v2138
      %2146 = vmatprep.subr.bf16.mxu0 0
      %2147 = vmatpush1.bf16.msra.mxu0 0
      %2148 = vmatprep.subr.bf16.mxu0 0
      %2149 = vmatpush1.bf16.msra.mxu0 0
      %2150 = vmatprep.subr.bf16.mxu0 0
      %2151 = vmatpush1.bf16.msra.mxu0 0
      %2152 = vmatprep.subr.bf16.mxu0 0
      %2153 = vmatpush1.bf16.msra.mxu0 0
      %2154 = vmatprep.subr.bf16.mxu0 0
      %2155 = vmatpush1.bf16.msra.mxu0 0
      %2156 = vmatprep.subr.bf16.mxu0 0
      %2157 = vmatpush1.bf16.msra.mxu0 0
      %2158 = vmatprep.subr.bf16.mxu0 0
      %2159 = vmatpush1.bf16.msra.mxu0 0
      %2160 = vmatprep.subr.bf16.mxu0 0
      %2161 = vmatpush1.bf16.msra.mxu0 0
      %2162 = vmatprep.subr.bf16.mxu0 0
      %2163 = vmatpush1.bf16.msra.mxu0 0
      %2164 = vmatprep.subr.bf16.mxu0 0
      %2165 = vmatpush1.bf16.msra.mxu0 0
      %2166 = vmatprep.subr.bf16.mxu0 0
      %2167 = vmatpush1.bf16.msra.mxu0 0
      %2168 = vmatprep.subr.bf16.mxu0 0
      %2169 = vmatpush1.bf16.msra.mxu0 0
      %2170 = vmatprep.subr.bf16.mxu0 0
      %2171 = vmatpush1.bf16.msra.mxu0 0
      %2172 = vmatprep.mubr.bf16.mxu0 0
      %2173 = vmatmul.mubr.bf16.gmra.mrb[0].mxu0 %v2113
      %v2174 = vpop.f32.mrb[0].mxu0
      %v2175 = vadd.f32 0.0, %v2174
      %v2176 = vpop.f32.mrb[0].mxu0
      %v2177 = vpop.f32.mrb[0].mxu0
      %v2178 = vadd.f32 0.0, %v2177
      %v2179 = vpop.f32.mrb[0].mxu0
      %2180 = vmatprep.mubr.bf16.mxu0 0
      %2181 = vmatmul.mubr.bf16.gmra.mrb[0].mxu0 %v2116
      %v2182 = vpop.f32.mrb[0].mxu0
      %v2183 = vadd.f32 0.0, %v2182
      %v2184 = vpop.f32.mrb[0].mxu0
      %v2185 = vpop.f32.mrb[0].mxu0
      %v2186 = vadd.f32 0.0, %v2185
      %v2187 = vpop.f32.mrb[0].mxu0
      %2188 = vmatprep.mubr.bf16.mxu0 0
      %2189 = vmatmul.mubr.bf16.gmra.mrb[0].mxu0 %v2119
      %v2190 = vpop.f32.mrb[0].mxu0
      %v2191 = vadd.f32 0.0, %v2190
      %v2192 = vpop.f32.mrb[0].mxu0
      %v2193 = vpop.f32.mrb[0].mxu0
      %v2194 = vadd.f32 0.0, %v2193
      %v2195 = vpop.f32.mrb[0].mxu0
      %2196 = vmatprep.mubr.bf16.mxu0 0
      %2197 = vmatmul.mubr.bf16.gmra.mrb[0].mxu0 %v2122
      %v2198 = vpop.f32.mrb[0].mxu0
      %v2199 = vadd.f32 0.0, %v2198
      %v2200 = vpop.f32.mrb[0].mxu0
      %v2201 = vpop.f32.mrb[0].mxu0
      %v2202 = vadd.f32 0.0, %v2201
      %v2203 = vpop.f32.mrb[0].mxu0
      %2204 = vmatprep.mubr.bf16.mxu0 0
      %2205 = vmatmul.mubr.bf16.gmra.mrb[0].mxu0 %v2125
      %v2206 = vpop.f32.mrb[0].mxu0
      %v2207 = vadd.f32 0.0, %v2206
      %v2208 = vpop.f32.mrb[0].mxu0
      %v2209 = vpop.f32.mrb[0].mxu0
      %v2210 = vadd.f32 0.0, %v2209
      %v2211 = vpop.f32.mrb[0].mxu0
      %2212 = vmatprep.mubr.bf16.mxu0 0
      %2213 = vmatmul.mubr.bf16.gmra.mrb[0].mxu0 %v2128
      %v2214 = vpop.f32.mrb[0].mxu0
      %v2215 = vadd.f32 0.0, %v2214
      %v2216 = vpop.f32.mrb[0].mxu0
      %v2217 = vpop.f32.mrb[0].mxu0
      %v2218 = vadd.f32 0.0, %v2217
      %v2219 = vpop.f32.mrb[0].mxu0
      %2220 = vmatprep.mubr.bf16.mxu0 0
      %2221 = vmatmul.mubr.bf16.gmra.mrb[0].mxu0 %v2131
      %v2222 = vpop.f32.mrb[0].mxu0
      %v2223 = vadd.f32 0.0, %v2222
      %v2224 = vpop.f32.mrb[0].mxu0
      %v2225 = vpop.f32.mrb[0].mxu0
      %v2226 = vadd.f32 0.0, %v2225
      %v2227 = vpop.f32.mrb[0].mxu0
      %2228 = vmatprep.mubr.bf16.mxu0 0
      %2229 = vmatmul.mubr.bf16.gmra.mrb[0].mxu0 %v2134
      %v2230 = vpop.f32.mrb[0].mxu0
      %v2231 = vadd.f32 0.0, %v2230
      %v2232 = vpop.f32.mrb[0].mxu0
      %v2233 = vpop.f32.mrb[0].mxu0
      %v2234 = vadd.f32 0.0, %v2233
      %v2235 = vpop.f32.mrb[0].mxu0
      %2236 = vdwg.mxu0
      %v2237 = vpack.c.bf16 %v2178, %v2175
      %v2238 = vpack.c.bf16 %v2186, %v2183
      %v2239 = vpack.c.bf16 %v2194, %v2191
      %v2240 = vpack.c.bf16 %v2202, %v2199
      %v2241 = vpack.c.bf16 %v2210, %v2207
      %v2242 = vpack.c.bf16 %v2218, %v2215
      %v2243 = vpack.c.bf16 %v2226, %v2223
      %v2244 = vpack.c.bf16 %v2234, %v2231
      %v2253 = vunpack.c.l.b16 %v2237
      %v2254 = vunpack.c.h.b16 %v2237
      %v2255 = vunpack.c.l.b16 %v2238
      %v2256 = vunpack.c.h.b16 %v2238
      %v2257 = vunpack.c.l.b16 %v2239
      %v2258 = vunpack.c.h.b16 %v2239
      %v2259 = vunpack.c.l.b16 %v2240
      %v2260 = vunpack.c.h.b16 %v2240
      %v2261 = vunpack.c.l.b16 %v2241
      %v2262 = vunpack.c.h.b16 %v2241
      %v2263 = vunpack.c.l.b16 %v2242
      %v2264 = vunpack.c.h.b16 %v2242
      %v2265 = vunpack.c.l.b16 %v2243
      %v2266 = vunpack.c.h.b16 %v2243
      %v2267 = vunpack.c.l.b16 %v2244
      %v2268 = vunpack.c.h.b16 %v2244
      %v2269 = vpack.c.b16 %v2253, %v2253
      %v2270 = vpack.c.b16 %v2254, %v2254
      %v2271 = vpack.c.b16 %v2255, %v2255
      %v2272 = vpack.c.b16 %v2256, %v2256
      %v2273 = vpack.c.b16 %v2257, %v2257
      %v2274 = vpack.c.b16 %v2258, %v2258
      %v2275 = vpack.c.b16 %v2259, %v2259
      %v2276 = vpack.c.b16 %v2260, %v2260
      %v2277 = vpack.c.b16 %v2261, %v2261
      %v2278 = vpack.c.b16 %v2262, %v2262
      %v2279 = vpack.c.b16 %v2263, %v2263
      %v2280 = vpack.c.b16 %v2264, %v2264
      %v2281 = vpack.c.b16 %v2265, %v2265
      %v2282 = vpack.c.b16 %v2266, %v2266
      %v2283 = vpack.c.b16 %v2267, %v2267
      %v2284 = vpack.c.b16 %v2268, %v2268
      %2301 = vst [vmem:[%s287] sm:$0xf] %v2269
      %2302 = vst [vmem:[%s287 + $0x4] sm:$0xf] %v2270
      %2303 = vst [vmem:[%s287 + $0x8] sm:$0xf] %v2271
      %2304 = vst [vmem:[%s287 + $0xc] sm:$0xf] %v2272
      %2305 = vst [vmem:[%s287 + $0x10] sm:$0xf] %v2273
      %2306 = vst [vmem:[%s287 + $0x14] sm:$0xf] %v2274
      %2307 = vst [vmem:[%s287 + $0x18] sm:$0xf] %v2275
      %2308 = vst [vmem:[%s287 + $0x1c] sm:$0xf] %v2276
      %2309 = vst [vmem:[%s287 + $0x20] sm:$0xf] %v2277
      %2310 = vst [vmem:[%s287 + $0x24] sm:$0xf] %v2278
      %2311 = vst [vmem:[%s287 + $0x28] sm:$0xf] %v2279
      %2312 = vst [vmem:[%s287 + $0x2c] sm:$0xf] %v2280
      %2313 = vst [vmem:[%s287 + $0x30] sm:$0xf] %v2281
      %2314 = vst [vmem:[%s287 + $0x34] sm:$0xf] %v2282
      %2315 = vst [vmem:[%s287 + $0x38] sm:$0xf] %v2283
      %2316 = vst [vmem:[%s287 + $0x3c] sm:$0xf] %v2284
      %v2317 = vadd.f32 %v2175, %v2178
      %v2318 = vadd.f32 %v2317, %v2183
      %v2319 = vadd.f32 %v2318, %v2186
      %v2320 = vadd.f32 %v2319, %v2191
      %v2321 = vadd.f32 %v2320, %v2194
      %v2322 = vadd.f32 %v2321, %v2199
      %v2323 = vadd.f32 %v2322, %v2202
      %v2324 = vadd.f32 %v2323, %v2207
      %v2325 = vadd.f32 %v2324, %v2210
      %v2326 = vadd.f32 %v2325, %v2215
      %v2327 = vadd.f32 %v2326, %v2218
      %v2328 = vadd.f32 %v2327, %v2223
      %v2329 = vadd.f32 %v2328, %v2226
      %v2330 = vadd.f32 %v2329, %v2231
      %v2331 = vadd.f32 %v2330, %v2234
      %v2332 = vrot.slane %v2331, 4
      %v2333 = vadd.f32 %v2331, %v2332
      %v2334 = vrot.slane %v2333, 2
      %v2335 = vadd.f32 %v2333, %v2334
      %v2336 = vrot.slane %v2335, 1
      %v2337 = vadd.f32 %v2335, %v2336
      %2338 = vst [vmem:[%s296] sm:$0x1] %v2337
      %v2339 = vmul.f32 %v2175, %v2175
      %v2340 = vmul.f32 %v2178, %v2178
      %v2341 = vmul.f32 %v2183, %v2183
      %v2342 = vmul.f32 %v2186, %v2186
      %v2343 = vmul.f32 %v2191, %v2191
      %v2344 = vmul.f32 %v2194, %v2194
      %v2345 = vmul.f32 %v2199, %v2199
      %v2346 = vmul.f32 %v2202, %v2202
      %v2347 = vmul.f32 %v2207, %v2207
      %v2348 = vmul.f32 %v2210, %v2210
      %v2349 = vmul.f32 %v2215, %v2215
      %v2350 = vmul.f32 %v2218, %v2218
      %v2351 = vmul.f32 %v2223, %v2223
      %v2352 = vmul.f32 %v2226, %v2226
      %v2353 = vmul.f32 %v2231, %v2231
      %v2354 = vmul.f32 %v2234, %v2234
      %v2355 = vadd.f32 %v2339, %v2340
      %v2356 = vadd.f32 %v2355, %v2341
      %v2357 = vadd.f32 %v2356, %v2342
      %v2358 = vadd.f32 %v2357, %v2343
      %v2359 = vadd.f32 %v2358, %v2344
      %v2360 = vadd.f32 %v2359, %v2345
      %v2361 = vadd.f32 %v2360, %v2346
      %v2362 = vadd.f32 %v2361, %v2347
      %v2363 = vadd.f32 %v2362, %v2348
      %v2364 = vadd.f32 %v2363, %v2349
      %v2365 = vadd.f32 %v2364, %v2350
      %v2366 = vadd.f32 %v2365, %v2351
      %v2367 = vadd.f32 %v2366, %v2352
      %v2368 = vadd.f32 %v2367, %v2353
      %v2369 = vadd.f32 %v2368, %v2354
      %v2370 = vrot.slane %v2369, 4
      %v2371 = vadd.f32 %v2369, %v2370
      %v2372 = vrot.slane %v2371, 2
      %v2373 = vadd.f32 %v2371, %v2372
      %v2374 = vrot.slane %v2373, 1
      %v2375 = vadd.f32 %v2373, %v2374
      %2376 = vst [vmem:[%s296 + $0x1] sm:$0x1] %v2375
      %s2377 = smul.u32 8, %s21
      %p2378 = scmp.lt.s32.totalorder %s20, 1
      %s2379 = scalar_select %p2378, %s20, 1
      %p2380 = scmp.lt.s32.totalorder %s2377, 15
      %s2381 = scalar_select %p2380, %s2377, 15
      %s2382 = smul.addr %s2381, 2
      %s2383 = smul.addr %s2379, 32
      %s2384 = sadd.s32 %s2382, %s2383
      %s2385 = smul.addr %s2384, 4
      %s2386 = scalar_lea.vmem %s3, %s2385
      %p2387 = scmp.lt.s32.totalorder %s20, 1
      %s2388 = scalar_select %p2387, %s20, 1
      %p2389 = scmp.lt.s32.totalorder %s21, 1
      %s2390 = scalar_select %p2389, %s21, 1
      %s2391 = smul.addr %s2388, 2
      %s2392 = sadd.s32 %s2390, %s2391
      %s2393 = smul.addr %s2392, 2
      %s2394 = scalar_lea.vmem %s4, %s2393
      // Predicated region
      $region33: #{double_conv.3} parent=31 // pred_check
        %p2395 = pneg %p125
      $region34: #{double_conv.3} parent=31 // pred_check_branch
        %2397 = sbr.rel (%p2395) target = $region36
      $region35: #{double_conv.3} parent=31 // pred_region
        %s2398 = smul.u32 8, %s21
      $region36: #{double_conv.3} parent=31 // pred_fallthru
        _
      // Predicated region
      $region37: #{double_conv.3} parent=31 // pred_check
        %p2399 = pneg %p153
      $region38: #{double_conv.3} parent=31 // pred_check_branch
        %2401 = sbr.rel (%p2399) target = $region40
      $region39: #{double_conv.3} parent=31 // pred_region
        _
      $region40: #{double_conv.3} parent=31 // pred_fallthru
        _
    $region32: #{double_conv.3} parent=5 // pred_fallthru
      _
    %p2402 = scmp.le.s32.totalorder 2, %s11
    // Predicated region
    $region41: #{double_conv.3} parent=5 // pred_check
      %p2403 = pneg %p2402
    $region42: #{double_conv.3} parent=5 // pred_check_branch
      %2405 = sbr.rel (%p2403) target = $region44
    $region43: #{double_conv.3} parent=5 // pred_region
      %s2406 = ssub.s32 %s11, 2
      // Predicated region
      $region45: #{double_conv.3} parent=43 // pred_check
        %p2407 = pneg %p131
      $region46: #{double_conv.3} parent=43 // pred_check_branch
        %2409 = sbr.rel (%p2407) target = $region48
      $region47: #{double_conv.3} parent=43 // pred_region
        %s2410 = smul.u32 8, %s23
        %p2411 = scmp.lt.s32.totalorder %s22, 1
        %s2412 = scalar_select %p2411, %s22, 1
        %p2413 = scmp.lt.s32.totalorder %s2410, 15
        %s2414 = scalar_select %p2413, %s2410, 15
        %s2415 = smul.addr %s2414, 2
        %s2416 = smul.addr %s2412, 32
        %s2417 = sadd.s32 %s2415, %s2416
        %s2418 = smul.addr %s2417, 4
        %s2419 = scalar_lea.vmem %s3, %s2418
      $region48: #{double_conv.3} parent=43 // pred_fallthru
        _
      // Predicated region
      $region49: #{double_conv.3} parent=43 // pred_check
        %p2420 = pneg %p159
      $region50: #{double_conv.3} parent=43 // pred_check_branch
        %2422 = sbr.rel (%p2420) target = $region52
      $region51: #{double_conv.3} parent=43 // pred_region
        %p2423 = scmp.lt.s32.totalorder %s22, 1
        %s2424 = scalar_select %p2423, %s22, 1
        %p2425 = scmp.lt.s32.totalorder %s23, 1
        %s2426 = scalar_select %p2425, %s23, 1
        %s2427 = smul.addr %s2424, 2
        %s2428 = sadd.s32 %s2426, %s2427
        %s2429 = smul.addr %s2428, 2
        %s2430 = scalar_lea.vmem %s4, %s2429
      $region52: #{double_conv.3} parent=43 // pred_fallthru
        _
    $region44: #{double_conv.3} parent=5 // pred_fallthru
      _
  $region6: #{double_conv.3} parent=0 // loop_footer
    %s15 = sadd.s32 1, %s11
  $region7: #{double_conv.3} parent=0 // loop_footer_branch
    %10 = sbr.rel target = $region3
  $region8: #{double_conv.3} parent=0 // loop_exit
    _

// kernel: double_conv.4
$region0: #{double_conv.4}
  #allocation0 [shape = 'u32[]', space=smem, size = 0x4, offset = 0x4, fixed_abs, tag = 'smem constant byte address 0x4 - core index']
  #allocation1 [shape = 'u32[144,128]{1,0:T(1,128)}', space=vmem, size = 0x12000, scoped, tag = 'internal scratch']
  #allocation2 [shape = 'bf16[10,34,128]{2,1,0:T(8,128)(2,1)}', space=vmem, size = 0x19000, scoped, tag = 'scratch operand']
  #allocation3 [shape = 'bf16[8,16,1152]{2,1,0:T(16,128)(2,1)}', space=vmem, size = 0x48000, scoped, tag = 'scratch operand']
  %s0 = inlined_call_operand.vmem [shape: bf16[2,16,16,128], index: 0, kind: input, shape index: {}]
  %s1 = inlined_call_operand.vmem [shape: bf16[2,2,2,16,128], index: 1, kind: input, shape index: {}]
  %s2 = inlined_call_operand.vmem [shape: f32[1,128], index: 2, kind: input, shape index: {}]
  %s3 = inlined_call_operand.vmem [shape: f32[1,128], index: 3, kind: input, shape index: {}]
  %s4 = inlined_call_operand.vmem [shape: bf16[1152,128], index: 4, kind: input, shape index: {}]
  %s5 = inlined_call_operand.vmem [shape: bf16[2,16,16,128], index: 5, kind: output, shape index: {0}]
  %s6 = inlined_call_operand.vmem [shape: f32[2,2,2,128], index: 6, kind: output, shape index: {1}]
  %7 = xla_tuple %s5, %s6
  %s8 = sld [smem:[#allocation0]]
  $region61: #{double_conv.4} parent=0
    _
  %s10 = ssub.s32 1, %s8
  %s11 = scalar_select 0, %s10, %s8
  loop: start=0, step=1, limit=6
  $region2: #{double_conv.4} parent=0 // loop_pre_header
    _
  $region3: #{double_conv.4} parent=0 // loop_header
    %s13 = sphi 0, %s17
    %p14 = scmp.ge.s32.totalorder %s13, 6
    %s20 = sphi 0, %s32
    %s21 = sphi 0, %s28
    %s22 = sphi 0, %s20
    %s23 = sphi 0, %s21
    %s24 = sphi 0, %s22
    %s25 = sphi 0, %s23
    %s37 = sphi 0, %s39
    %s40 = sphi 0, %s37
    %s41 = sphi 0, %s40
    %s57 = sphi 0, %s41
    %s65 = sphi 0, %s67
    %s68 = sphi 0, %s65
    %s69 = sphi 0, %s68
    %s85 = sphi 0, %s69
    %s89 = sphi 0, %s89
    %s91 = sphi 0, %s89
    %s92 = sphi 0, %s91
    %s106 = sphi 0, %s92
    %s110 = sphi 0, %s110
    %s112 = sphi 0, %s110
    %s113 = sphi 0, %s112
    %s127 = sphi 0, %s113
    %s131 = sphi 0, %s131
    %s133 = sphi 0, %s131
    %s134 = sphi 0, %s133
    %s148 = sphi 0, %s134
    %s156 = sphi 0, %s158
    %s159 = sphi 0, %s156
    %s160 = sphi 0, %s159
    %s176 = sphi 0, %s160
    %s184 = sphi 0, %s186
    %s187 = sphi 0, %s184
    %s188 = sphi 0, %s187
    %s204 = sphi 0, %s188
  $region4: #{double_conv.4} parent=0 // loop_header_branch
    %16 = sbr.rel (%p14) target = $region8
  $region5: #{double_conv.4} parent=0 // loop_body
    %s18 = ssub.s32 %s13, 1
    %s19 = ssub.s32 %s13, 2
    %s26 = sadd.s32 1, %s21
    %p27 = scmp.ge.s32.totalorder %s26, 2
    %s28 = scalar_select %p27, 0, %s26
    %s29 = sadd.s32 1, %s20
    %s30 = scalar_select %p27, %s29, %s20
    %p31 = scmp.ge.s32.totalorder %s30, 2
    %s32 = scalar_select %p31, 0, %s30
    %s33 = ssub.s32 %s20, %s32
    %s34 = ssub.s32 %s21, %s28
    %s35 = sor.u32 %s33, %s34
    %p36 = scmp.eq.s32.totalorder %s35, 0
    %s38 = sadd.s32 %s37, 1
    %s39 = scalar_select %p36, %s37, %s38
    %p42 = pneg %p36
    %p43 = scmp.eq.s32.totalorder %s13, 3
    %p44 = por %p42, %p43
    %p45 = scmp.ne.s32.totalorder %s37, %s40
    %p46 = scmp.eq.s32.totalorder %s13, 0
    %p47 = por %p45, %p46
    %p48 = scmp.ne.s32.totalorder %s37, %s40
    %p49 = scmp.eq.s32.totalorder %s18, 3
    %p50 = por %p48, %p49
    %p51 = scmp.ne.s32.totalorder %s40, %s41
    %p52 = scmp.eq.s32.totalorder %s18, 0
    %p53 = por %p51, %p52
    %p54 = scmp.ne.s32.totalorder %s40, %s41
    %p55 = scmp.eq.s32.totalorder %s19, 3
    %p56 = por %p54, %p55
    %p58 = scmp.ne.s32.totalorder %s41, %s57
    %p59 = scmp.eq.s32.totalorder %s19, 0
    %p60 = por %p58, %p59
    %s61 = ssub.s32 %s20, %s32
    %s62 = ssub.s32 %s21, %s28
    %s63 = sor.u32 %s61, %s62
    %p64 = scmp.eq.s32.totalorder %s63, 0
    %s66 = sadd.s32 %s65, 1
    %s67 = scalar_select %p64, %s65, %s66
    %p70 = pneg %p64
    %p71 = scmp.eq.s32.totalorder %s13, 3
    %p72 = por %p70, %p71
    %p73 = scmp.ne.s32.totalorder %s65, %s68
    %p74 = scmp.eq.s32.totalorder %s13, 0
    %p75 = por %p73, %p74
    %p76 = scmp.ne.s32.totalorder %s65, %s68
    %p77 = scmp.eq.s32.totalorder %s18, 3
    %p78 = por %p76, %p77
    %p79 = scmp.ne.s32.totalorder %s68, %s69
    %p80 = scmp.eq.s32.totalorder %s18, 0
    %p81 = por %p79, %p80
    %p82 = scmp.ne.s32.totalorder %s68, %s69
    %p83 = scmp.eq.s32.totalorder %s19, 3
    %p84 = por %p82, %p83
    %p86 = scmp.ne.s32.totalorder %s69, %s85
    %p87 = scmp.eq.s32.totalorder %s19, 0
    %p88 = por %p86, %p87
    %s90 = sadd.s32 %s89, 1
    %p93 = scmp.eq.s32.totalorder %s13, 3
    %p94 = scmp.ne.s32.totalorder %s89, %s91
    %p95 = scmp.eq.s32.totalorder %s13, 0
    %p96 = por %p94, %p95
    %p97 = scmp.ne.s32.totalorder %s89, %s91
    %p98 = scmp.eq.s32.totalorder %s18, 3
    %p99 = por %p97, %p98
    %p100 = scmp.ne.s32.totalorder %s91, %s92
    %p101 = scmp.eq.s32.totalorder %s18, 0
    %p102 = por %p100, %p101
    %p103 = scmp.ne.s32.totalorder %s91, %s92
    %p104 = scmp.eq.s32.totalorder %s19, 3
    %p105 = por %p103, %p104
    %p107 = scmp.ne.s32.totalorder %s92, %s106
    %p108 = scmp.eq.s32.totalorder %s19, 0
    %p109 = por %p107, %p108
    %s111 = sadd.s32 %s110, 1
    %p114 = scmp.eq.s32.totalorder %s13, 3
    %p115 = scmp.ne.s32.totalorder %s110, %s112
    %p116 = scmp.eq.s32.totalorder %s13, 0
    %p117 = por %p115, %p116
    %p118 = scmp.ne.s32.totalorder %s110, %s112
    %p119 = scmp.eq.s32.totalorder %s18, 3
    %p120 = por %p118, %p119
    %p121 = scmp.ne.s32.totalorder %s112, %s113
    %p122 = scmp.eq.s32.totalorder %s18, 0
    %p123 = por %p121, %p122
    %p124 = scmp.ne.s32.totalorder %s112, %s113
    %p125 = scmp.eq.s32.totalorder %s19, 3
    %p126 = por %p124, %p125
    %p128 = scmp.ne.s32.totalorder %s113, %s127
    %p129 = scmp.eq.s32.totalorder %s19, 0
    %p130 = por %p128, %p129
    %s132 = sadd.s32 %s131, 1
    %p135 = scmp.eq.s32.totalorder %s13, 3
    %p136 = scmp.ne.s32.totalorder %s131, %s133
    %p137 = scmp.eq.s32.totalorder %s13, 0
    %p138 = por %p136, %p137
    %p139 = scmp.ne.s32.totalorder %s131, %s133
    %p140 = scmp.eq.s32.totalorder %s18, 3
    %p141 = por %p139, %p140
    %p142 = scmp.ne.s32.totalorder %s133, %s134
    %p143 = scmp.eq.s32.totalorder %s18, 0
    %p144 = por %p142, %p143
    %p145 = scmp.ne.s32.totalorder %s133, %s134
    %p146 = scmp.eq.s32.totalorder %s19, 3
    %p147 = por %p145, %p146
    %p149 = scmp.ne.s32.totalorder %s134, %s148
    %p150 = scmp.eq.s32.totalorder %s19, 0
    %p151 = por %p149, %p150
    %s152 = ssub.s32 %s20, %s32
    %s153 = ssub.s32 %s21, %s28
    %s154 = sor.u32 %s152, %s153
    %p155 = scmp.eq.s32.totalorder %s154, 0
    %s157 = sadd.s32 %s156, 1
    %s158 = scalar_select %p155, %s156, %s157
    %p161 = pneg %p155
    %p162 = scmp.eq.s32.totalorder %s13, 3
    %p163 = por %p161, %p162
    %p164 = scmp.ne.s32.totalorder %s156, %s159
    %p165 = scmp.eq.s32.totalorder %s13, 0
    %p166 = por %p164, %p165
    %p167 = scmp.ne.s32.totalorder %s156, %s159
    %p168 = scmp.eq.s32.totalorder %s18, 3
    %p169 = por %p167, %p168
    %p170 = scmp.ne.s32.totalorder %s159, %s160
    %p171 = scmp.eq.s32.totalorder %s18, 0
    %p172 = por %p170, %p171
    %p173 = scmp.ne.s32.totalorder %s159, %s160
    %p174 = scmp.eq.s32.totalorder %s19, 3
    %p175 = por %p173, %p174
    %p177 = scmp.ne.s32.totalorder %s160, %s176
    %p178 = scmp.eq.s32.totalorder %s19, 0
    %p179 = por %p177, %p178
    %s180 = ssub.s32 %s20, %s32
    %s181 = ssub.s32 %s21, %s28
    %s182 = sor.u32 %s180, %s181
    %p183 = scmp.eq.s32.totalorder %s182, 0
    %s185 = sadd.s32 %s184, 1
    %s186 = scalar_select %p183, %s184, %s185
    %p189 = pneg %p183
    %p190 = scmp.eq.s32.totalorder %s13, 3
    %p191 = por %p189, %p190
    %p192 = scmp.ne.s32.totalorder %s184, %s187
    %p193 = scmp.eq.s32.totalorder %s13, 0
    %p194 = por %p192, %p193
    %p195 = scmp.ne.s32.totalorder %s184, %s187
    %p196 = scmp.eq.s32.totalorder %s18, 3
    %p197 = por %p195, %p196
    %p198 = scmp.ne.s32.totalorder %s187, %s188
    %p199 = scmp.eq.s32.totalorder %s18, 0
    %p200 = por %p198, %p199
    %p201 = scmp.ne.s32.totalorder %s187, %s188
    %p202 = scmp.eq.s32.totalorder %s19, 3
    %p203 = por %p201, %p202
    %p205 = scmp.ne.s32.totalorder %s188, %s204
    %p206 = scmp.eq.s32.totalorder %s19, 0
    %p207 = por %p205, %p206
    %p208 = scmp.le.s32.totalorder 1, %s13
    %p209 = scmp.lt.s32.totalorder %s13, 5
    %p210 = pnand %p208, %p209
    %p211 = pneg %p210
    // Predicated region
    $region9: #{double_conv.4} parent=5 // pred_check
      _
    $region10: #{double_conv.4} parent=5 // pred_check_branch
      %213 = sbr.rel (%p210) target = $region12
    $region11: #{double_conv.4} parent=5 // pred_region
      %s214 = ssub.s32 %s13, 1
      // Predicated region
      $region13: #{double_conv.4} parent=11 // pred_check
        %p215 = pneg %p102
      $region14: #{double_conv.4} parent=11 // pred_check_branch
        %217 = sbr.rel (%p215) target = $region16
      $region15: #{double_conv.4} parent=11 // pred_region
        _
      $region16: #{double_conv.4} parent=11 // pred_fallthru
        _
      // Predicated region
      $region17: #{double_conv.4} parent=11 // pred_check
        %p218 = pneg %p123
      $region18: #{double_conv.4} parent=11 // pred_check_branch
        %220 = sbr.rel (%p218) target = $region20
      $region19: #{double_conv.4} parent=11 // pred_region
        _
      $region20: #{double_conv.4} parent=11 // pred_fallthru
        _
      // Predicated region
      $region21: #{double_conv.4} parent=11 // pred_check
        %p221 = pneg %p144
      $region22: #{double_conv.4} parent=11 // pred_check_branch
        %223 = sbr.rel (%p221) target = $region24
      $region23: #{double_conv.4} parent=11 // pred_region
        _
      $region24: #{double_conv.4} parent=11 // pred_fallthru
        _
    $region12: #{double_conv.4} parent=5 // pred_fallthru
      _
    %p224 = scmp.lt.s32.totalorder %s13, 4
    // Predicated region
    $region25: #{double_conv.4} parent=5 // pred_check
      %p225 = pneg %p224
    $region26: #{double_conv.4} parent=5 // pred_check_branch
      %227 = sbr.rel (%p225) target = $region28
    $region27: #{double_conv.4} parent=5 // pred_region
      // Predicated region
      $region29: #{double_conv.4} parent=27 // pred_check
        %p228 = pneg %p47
      $region30: #{double_conv.4} parent=27 // pred_check_branch
        %230 = sbr.rel (%p228) target = $region32
      $region31: #{double_conv.4} parent=27 // pred_region
        %s231 = smul.u32 8, %s21
        %p232 = scmp.lt.s32.totalorder %s20, 1
        %s233 = scalar_select %p232, %s20, 1
        %p234 = scmp.lt.s32.totalorder %s231, 15
        %s235 = scalar_select %p234, %s231, 15
        %s236 = smul.addr %s235, 2
        %s237 = smul.addr %s233, 32
        %s238 = sadd.s32 %s236, %s237
        %s239 = smul.addr %s238, 4
        %s240 = scalar_lea.vmem %s0, %s239
        %s241 = smul.u32 8, %s21
      $region32: #{double_conv.4} parent=27 // pred_fallthru
        _
      // Predicated region
      $region33: #{double_conv.4} parent=27 // pred_check
        %p242 = pneg %p75
      $region34: #{double_conv.4} parent=27 // pred_check_branch
        %244 = sbr.rel (%p242) target = $region36
      $region35: #{double_conv.4} parent=27 // pred_region
        %p245 = scmp.lt.s32.totalorder %s20, 1
        %s246 = scalar_select %p245, %s20, 1
        %p247 = scmp.lt.s32.totalorder %s21, 1
        %s248 = scalar_select %p247, %s21, 1
        %s249 = smul.addr %s248, 4
        %s250 = smul.addr %s246, 8
        %s251 = sadd.s32 %s249, %s250
        %s252 = smul.addr %s251, 4
        %s253 = scalar_lea.vmem %s1, %s252
      $region36: #{double_conv.4} parent=27 // pred_fallthru
        _
    $region28: #{double_conv.4} parent=5 // pred_fallthru
      _
    %p254 = scmp.le.s32.totalorder 1, %s13
    %p255 = scmp.lt.s32.totalorder %s13, 5
    %p256 = pnand %p254, %p255
    %p257 = pneg %p256
    // Predicated region
    $region37: #{double_conv.4} parent=5 // pred_check
      _
    $region38: #{double_conv.4} parent=5 // pred_check_branch
      %259 = sbr.rel (%p256) target = $region40
    $region39: #{double_conv.4} parent=5 // pred_region
      %s260 = ssub.s32 %s13, 1
      %s261 = smul.u32 8, %s23
      %p262 = scmp.lt.s32.totalorder %s22, 1
      %s263 = scalar_select %p262, %s22, 1
      %p264 = scmp.lt.s32.totalorder %s261, 15
      %s265 = scalar_select %p264, %s261, 15
      %s266 = smul.addr %s265, 2
      %s267 = smul.addr %s263, 32
      %s268 = sadd.s32 %s266, %s267
      %s269 = smul.addr %s268, 4
      %s270 = scalar_lea.vmem %s0, %s269
      %p271 = pneg %p53
      %p272 = pneg %p50
      %p273 = scmp.lt.s32.totalorder %s22, 1
      %s274 = scalar_select %p273, %s22, 1
      %p275 = scmp.lt.s32.totalorder %s23, 1
      %s276 = scalar_select %p275, %s23, 1
      %s277 = smul.addr %s276, 4
      %s278 = smul.addr %s274, 8
      %s279 = sadd.s32 %s277, %s278
      %s280 = smul.addr %s279, 4
      %s281 = scalar_lea.vmem %s1, %s280
      %p282 = pneg %p81
      %p283 = pneg %p78
      %p284 = pneg %p102
      %p285 = pneg %p99
      %p286 = pneg %p123
      %p287 = pneg %p120
      %p288 = pneg %p144
      %p289 = pneg %p141
      %p290 = pneg %p172
      %p291 = pneg %p169
      %s292 = smul.u32 8, %s23
      %p293 = scmp.lt.s32.totalorder %s22, 1
      %s294 = scalar_select %p293, %s22, 1
      %p295 = scmp.lt.s32.totalorder %s292, 15
      %s296 = scalar_select %p295, %s292, 15
      %s297 = smul.addr %s296, 2
      %s298 = smul.addr %s294, 32
      %s299 = sadd.s32 %s297, %s298
      %s300 = smul.addr %s299, 4
      %s301 = scalar_lea.vmem %s5, %s300
      %p302 = pneg %p200
      %p303 = pneg %p197
      %p304 = scmp.lt.s32.totalorder %s22, 1
      %s305 = scalar_select %p304, %s22, 1
      %p306 = scmp.lt.s32.totalorder %s23, 1
      %s307 = scalar_select %p306, %s23, 1
      %s308 = smul.addr %s305, 2
      %s309 = sadd.s32 %s307, %s308
      %s310 = smul.addr %s309, 2
      %s311 = scalar_lea.vmem %s6, %s310
      %s312 = smul.u32 8, %s23
      %p313 = scmp.lt.s32.totalorder %s22, 1
      %s314 = scalar_select %p313, %s22, 1
      %p315 = scmp.lt.s32.totalorder %s312, 15
      %s316 = scalar_select %p315, %s312, 15
      %s317 = smul.addr %s316, 2
      %s318 = smul.addr %s314, 32
      %s319 = sadd.s32 %s317, %s318
      %s320 = smul.addr %s319, 4
      %s321 = scalar_lea.vmem %s0, %s320
      %s322 = smul.u32 8, %s23
      %p323 = scmp.lt.s32.totalorder %s22, 1
      %s324 = scalar_select %p323, %s22, 1
      %p325 = scmp.lt.s32.totalorder %s23, 1
      %s326 = scalar_select %p325, %s23, 1
      %s327 = smul.addr %s326, 4
      %s328 = smul.addr %s324, 8
      %s329 = sadd.s32 %s327, %s328
      %s330 = smul.addr %s329, 4
      %s331 = scalar_lea.vmem %s1, %s330
      %s332 = smul.u32 8, %s23
      %p333 = scmp.lt.s32.totalorder %s22, 1
      %s334 = scalar_select %p333, %s22, 1
      %p335 = scmp.lt.s32.totalorder %s332, 15
      %s336 = scalar_select %p335, %s332, 15
      %s337 = smul.addr %s336, 2
      %s338 = smul.addr %s334, 32
      %s339 = sadd.s32 %s337, %s338
      %s340 = smul.addr %s339, 4
      %s341 = scalar_lea.vmem %s5, %s340
      %s342 = smul.u32 8, %s23
      %p343 = scmp.lt.s32.totalorder %s22, 1
      %s344 = scalar_select %p343, %s22, 1
      %p345 = scmp.lt.s32.totalorder %s23, 1
      %s346 = scalar_select %p345, %s23, 1
      %s347 = smul.addr %s344, 2
      %s348 = sadd.s32 %s346, %s347
      %s349 = smul.addr %s348, 2
      %s350 = scalar_lea.vmem %s6, %s349
      %v352 = vld [vmem:[%s2] sm:$0x1]
      %v353 = vld [vmem:[%s3] sm:$0x1]
      %v354 = vld [vmem:[%s321] sm:$0xf]
      %v355 = vld [vmem:[%s321 + $0x4] sm:$0xf]
      %v356 = vld [vmem:[%s321 + $0x8] sm:$0xf]
      %v357 = vld [vmem:[%s321 + $0xc] sm:$0xf]
      %v358 = vld [vmem:[%s321 + $0x10] sm:$0xf]
      %v359 = vld [vmem:[%s321 + $0x14] sm:$0xf]
      %v360 = vld [vmem:[%s321 + $0x18] sm:$0xf]
      %v361 = vld [vmem:[%s321 + $0x1c] sm:$0xf]
      %v362 = vld [vmem:[%s321 + $0x20] sm:$0xf]
      %v363 = vld [vmem:[%s321 + $0x24] sm:$0xf]
      %v364 = vld [vmem:[%s321 + $0x28] sm:$0xf]
      %v365 = vld [vmem:[%s321 + $0x2c] sm:$0xf]
      %v366 = vld [vmem:[%s321 + $0x30] sm:$0xf]
      %v367 = vld [vmem:[%s321 + $0x34] sm:$0xf]
      %v368 = vld [vmem:[%s321 + $0x38] sm:$0xf]
      %v369 = vld [vmem:[%s321 + $0x3c] sm:$0xf]
      %v370 = vunpack.c.l.bf16 %v354
      %v371 = vunpack.c.l.bf16 %v355
      %v372 = vunpack.c.l.bf16 %v356
      %v373 = vunpack.c.l.bf16 %v357
      %v374 = vunpack.c.l.bf16 %v358
      %v375 = vunpack.c.l.bf16 %v359
      %v376 = vunpack.c.l.bf16 %v360
      %v377 = vunpack.c.l.bf16 %v361
      %v378 = vunpack.c.l.bf16 %v362
      %v379 = vunpack.c.l.bf16 %v363
      %v380 = vunpack.c.l.bf16 %v364
      %v381 = vunpack.c.l.bf16 %v365
      %v382 = vunpack.c.l.bf16 %v366
      %v383 = vunpack.c.l.bf16 %v367
      %v384 = vunpack.c.l.bf16 %v368
      %v385 = vunpack.c.l.bf16 %v369
      %v387 = vlaneseq
      %v388 = vshrl.u32 %v387, 7
      %v389 = vsub.s32 0, %v388
      %v390 = vrot.slane %v352, %v389
      %v392 = vmul.f32 %v370, %v390
      %v393 = vmul.f32 %v371, %v390
      %v394 = vmul.f32 %v372, %v390
      %v395 = vmul.f32 %v373, %v390
      %v396 = vmul.f32 %v374, %v390
      %v397 = vmul.f32 %v375, %v390
      %v398 = vmul.f32 %v376, %v390
      %v399 = vmul.f32 %v377, %v390
      %v400 = vmul.f32 %v378, %v390
      %v401 = vmul.f32 %v379, %v390
      %v402 = vmul.f32 %v380, %v390
      %v403 = vmul.f32 %v381, %v390
      %v404 = vmul.f32 %v382, %v390
      %v405 = vmul.f32 %v383, %v390
      %v406 = vmul.f32 %v384, %v390
      %v407 = vmul.f32 %v385, %v390
      %v409 = vlaneseq
      %v410 = vshrl.u32 %v409, 7
      %v411 = vsub.s32 0, %v410
      %v412 = vrot.slane %v353, %v411
      %v414 = vadd.f32 %v392, %v412
      %v415 = vadd.f32 %v393, %v412
      %v416 = vadd.f32 %v394, %v412
      %v417 = vadd.f32 %v395, %v412
      %v418 = vadd.f32 %v396, %v412
      %v419 = vadd.f32 %v397, %v412
      %v420 = vadd.f32 %v398, %v412
      %v421 = vadd.f32 %v399, %v412
      %v422 = vadd.f32 %v400, %v412
      %v423 = vadd.f32 %v401, %v412
      %v424 = vadd.f32 %v402, %v412
      %v425 = vadd.f32 %v403, %v412
      %v426 = vadd.f32 %v404, %v412
      %v427 = vadd.f32 %v405, %v412
      %v428 = vadd.f32 %v406, %v412
      %v429 = vadd.f32 %v407, %v412
      %v430 = vmax.f32 %v414, 0.0
      %v431 = vmax.f32 %v415, 0.0
      %v432 = vmax.f32 %v416, 0.0
      %v433 = vmax.f32 %v417, 0.0
      %v434 = vmax.f32 %v418, 0.0
      %v435 = vmax.f32 %v419, 0.0
      %v436 = vmax.f32 %v420, 0.0
      %v437 = vmax.f32 %v421, 0.0
      %v438 = vmax.f32 %v422, 0.0
      %v439 = vmax.f32 %v423, 0.0
      %v440 = vmax.f32 %v424, 0.0
      %v441 = vmax.f32 %v425, 0.0
      %v442 = vmax.f32 %v426, 0.0
      %v443 = vmax.f32 %v427, 0.0
      %v444 = vmax.f32 %v428, 0.0
      %v445 = vmax.f32 %v429, 0.0
      %v446 = vld [vmem:[%s331] sm:$0xf]
      %v447 = vld [vmem:[%s331 + $0x4] sm:$0xf]
      %v448 = vld [vmem:[%s331 + $0x8] sm:$0xf]
      %v449 = vld [vmem:[%s331 + $0xc] sm:$0xf]
      %v450 = vunpack.c.l.bf16 %v446
      %v451 = vunpack.c.l.bf16 %v447
      %v452 = vunpack.c.l.bf16 %v448
      %v453 = vunpack.c.l.bf16 %v449
      %v454 = vmul.f32 %v450, %v390
      %v455 = vmul.f32 %v451, %v390
      %v456 = vmul.f32 %v452, %v390
      %v457 = vmul.f32 %v453, %v390
      %v458 = vadd.f32 %v454, %v412
      %v459 = vadd.f32 %v455, %v412
      %v460 = vadd.f32 %v456, %v412
      %v461 = vadd.f32 %v457, %v412
      %p462 = scmp.gt.s32.totalorder %s23, 0
      %v463 = vmax.f32 %v458, 0.0
      %v464 = vmax.f32 %v459, 0.0
      %s465 = scalar_select %p462, 1, 0
      %v466 = vstv %s465
      %vm467 = vcmp.eq.s32.totalorder %v466, 1
      %v468 = vsel %vm467, %v463, 0.0
      %v469 = vsel %vm467, %v464, 0.0
      %p470 = scmp.lt.s32.totalorder %s23, 1
      %v471 = vmax.f32 %v460, 0.0
      %v472 = vmax.f32 %v461, 0.0
      %s473 = scalar_select %p470, 1, 0
      %v474 = vstv %s473
      %vm475 = vcmp.eq.s32.totalorder %v474, 1
      %v476 = vsel %vm475, %v471, 0.0
      %v477 = vsel %vm475, %v472, 0.0
      %v478 = vpack.c.bf16 %v431, %v430
      %v479 = vpack.c.bf16 %v433, %v432
      %v480 = vpack.c.bf16 %v435, %v434
      %v481 = vpack.c.bf16 %v437, %v436
      %v482 = vpack.c.bf16 %v439, %v438
      %v483 = vpack.c.bf16 %v441, %v440
      %v484 = vpack.c.bf16 %v443, %v442
      %v485 = vpack.c.bf16 %v445, %v444
      %v486 = vpack.c.bf16 %v469, %v468
      %v487 = vpack.c.bf16 %v477, %v476
      %vm488 = vcmask 1043459
      %vm489 = vsmask.f32 7950
      %vm490 = vmand %vm488, %vm489
      %v491 = vld [vmem:[#allocation2 + $0x4] sm:$0x8]
      %v492 = vsel %vm490, 0, %v491
      %493 = vst [vmem:[#allocation2 + $0x4] sm:$0x8] %v492
      %v494 = vld [vmem:[#allocation2 + $0x18] sm:$0x8]
      %v495 = vsel %vm490, 0, %v494
      %496 = vst [vmem:[#allocation2 + $0x18] sm:$0x8] %v495
      %v497 = vld [vmem:[#allocation2 + $0x2c] sm:$0x8]
      %v498 = vsel %vm490, 0, %v497
      %499 = vst [vmem:[#allocation2 + $0x2c] sm:$0x8] %v498
      %v500 = vld [vmem:[#allocation2 + $0x40] sm:$0x8]
      %v501 = vsel %vm490, 0, %v500
      %502 = vst [vmem:[#allocation2 + $0x40] sm:$0x8] %v501
      %v503 = vld [vmem:[#allocation2 + $0x54] sm:$0x8]
      %v504 = vsel %vm490, 0, %v503
      %505 = vst [vmem:[#allocation2 + $0x54] sm:$0x8] %v504
      %v506 = vld [vmem:[#allocation2 + $0x68] sm:$0x8]
      %v507 = vsel %vm490, 0, %v506
      %508 = vst [vmem:[#allocation2 + $0x68] sm:$0x8] %v507
      %v509 = vld [vmem:[#allocation2 + $0x7c] sm:$0x8]
      %v510 = vsel %vm490, 0, %v509
      %511 = vst [vmem:[#allocation2 + $0x7c] sm:$0x8] %v510
      %v512 = vld [vmem:[#allocation2 + $0x90] sm:$0x8]
      %v513 = vsel %vm490, 0, %v512
      %514 = vst [vmem:[#allocation2 + $0x90] sm:$0x8] %v513
      %v515 = vld [vmem:[#allocation2 + $0xa4] sm:$0x8]
      %v516 = vsel %vm490, 0, %v515
      %517 = vst [vmem:[#allocation2 + $0xa4] sm:$0x8] %v516
      %v518 = vld [vmem:[#allocation2 + $0xb8] sm:$0x8]
      %v519 = vsel %vm490, 0, %v518
      %520 = vst [vmem:[#allocation2 + $0xb8] sm:$0x8] %v519
      %vm521 = vcmask 1040384
      %vm522 = vsmask.f32 256
      %vm523 = vmand %vm521, %vm522
      %v524 = vld [vmem:[#allocation2 + $0x10] sm:$0x1]
      %v525 = vsel %vm523, 0, %v524
      %526 = vst [vmem:[#allocation2 + $0x10] sm:$0x1] %v525
      %v527 = vld [vmem:[#allocation2 + $0x24] sm:$0x1]
      %v528 = vsel %vm523, 0, %v527
      %529 = vst [vmem:[#allocation2 + $0x24] sm:$0x1] %v528
      %v530 = vld [vmem:[#allocation2 + $0x38] sm:$0x1]
      %v531 = vsel %vm523, 0, %v530
      %532 = vst [vmem:[#allocation2 + $0x38] sm:$0x1] %v531
      %v533 = vld [vmem:[#allocation2 + $0x4c] sm:$0x1]
      %v534 = vsel %vm523, 0, %v533
      %535 = vst [vmem:[#allocation2 + $0x4c] sm:$0x1] %v534
      %v536 = vld [vmem:[#allocation2 + $0x60] sm:$0x1]
      %v537 = vsel %vm523, 0, %v536
      %538 = vst [vmem:[#allocation2 + $0x60] sm:$0x1] %v537
      %v539 = vld [vmem:[#allocation2 + $0x74] sm:$0x1]
      %v540 = vsel %vm523, 0, %v539
      %541 = vst [vmem:[#allocation2 + $0x74] sm:$0x1] %v540
      %v542 = vld [vmem:[#allocation2 + $0x88] sm:$0x1]
      %v543 = vsel %vm523, 0, %v542
      %544 = vst [vmem:[#allocation2 + $0x88] sm:$0x1] %v543
      %v545 = vld [vmem:[#allocation2 + $0x9c] sm:$0x1]
      %v546 = vsel %vm523, 0, %v545
      %547 = vst [vmem:[#allocation2 + $0x9c] sm:$0x1] %v546
      %v548 = vld [vmem:[#allocation2 + $0xb0] sm:$0x1]
      %v549 = vsel %vm523, 0, %v548
      %550 = vst [vmem:[#allocation2 + $0xb0] sm:$0x1] %v549
      %v551 = vld [vmem:[#allocation2 + $0xc4] sm:$0x1]
      %v552 = vsel %vm523, 0, %v551
      %553 = vst [vmem:[#allocation2 + $0xc4] sm:$0x1] %v552
      %v555 = vunpack.c.l.b16 %v486
      %v556 = vunpack.c.h.b16 %v486
      %v557 = vpack.c.b16 %v555, %v555
      %v558 = vpack.c.b16 %v556, %v556
      %561 = vst [vmem:[#allocation2 + $0x8] sm:$0xf] %v557
      %562 = vst [vmem:[#allocation2 + $0xc] sm:$0xf] %v558
      %v564 = vunpack.c.l.b16 %v487
      %v565 = vunpack.c.h.b16 %v487
      %v566 = vpack.c.b16 %v564, %v564
      %v567 = vpack.c.b16 %v565, %v565
      %s570 = scalar_lea.vmem [#allocation2], 180
      %571 = vst [vmem:[%s570 + $0x8] sm:$0xf] %v566
      %572 = vst [vmem:[%s570 + $0xc] sm:$0xf] %v567
      %v581 = vunpack.c.l.b16 %v478
      %v582 = vunpack.c.h.b16 %v478
      %v583 = vunpack.c.l.b16 %v479
      %v584 = vunpack.c.h.b16 %v479
      %v585 = vunpack.c.l.b16 %v480
      %v586 = vunpack.c.h.b16 %v480
      %v587 = vunpack.c.l.b16 %v481
      %v588 = vunpack.c.h.b16 %v481
      %v589 = vunpack.c.l.b16 %v482
      %v590 = vunpack.c.h.b16 %v482
      %v591 = vunpack.c.l.b16 %v483
      %v592 = vunpack.c.h.b16 %v483
      %v593 = vunpack.c.l.b16 %v484
      %v594 = vunpack.c.h.b16 %v484
      %v595 = vunpack.c.l.b16 %v485
      %v596 = vunpack.c.h.b16 %v485
      %v597 = vpack.c.b16 %v581, %v581
      %v598 = vpack.c.b16 %v582, %v582
      %v599 = vpack.c.b16 %v583, %v583
      %v600 = vpack.c.b16 %v584, %v584
      %v601 = vpack.c.b16 %v585, %v585
      %v602 = vpack.c.b16 %v586, %v586
      %v603 = vpack.c.b16 %v587, %v587
      %v604 = vpack.c.b16 %v588, %v588
      %v605 = vpack.c.b16 %v589, %v589
      %v606 = vpack.c.b16 %v590, %v590
      %v607 = vpack.c.b16 %v591, %v591
      %v608 = vpack.c.b16 %v592, %v592
      %v609 = vpack.c.b16 %v593, %v593
      %v610 = vpack.c.b16 %v594, %v594
      %v611 = vpack.c.b16 %v595, %v595
      %v612 = vpack.c.b16 %v596, %v596
      %s629 = scalar_lea.vmem [#allocation2], 20
      %630 = vst [vmem:[%s629 + $0x8] sm:$0xf] %v597
      %631 = vst [vmem:[%s629 + $0xc] sm:$0xf] %v598
      %632 = vst [vmem:[%s629 + $0x1c] sm:$0xf] %v599
      %633 = vst [vmem:[%s629 + $0x20] sm:$0xf] %v600
      %634 = vst [vmem:[%s629 + $0x30] sm:$0xf] %v601
      %635 = vst [vmem:[%s629 + $0x34] sm:$0xf] %v602
      %636 = vst [vmem:[%s629 + $0x44] sm:$0xf] %v603
      %637 = vst [vmem:[%s629 + $0x48] sm:$0xf] %v604
      %638 = vst [vmem:[%s629 + $0x58] sm:$0xf] %v605
      %639 = vst [vmem:[%s629 + $0x5c] sm:$0xf] %v606
      %640 = vst [vmem:[%s629 + $0x6c] sm:$0xf] %v607
      %641 = vst [vmem:[%s629 + $0x70] sm:$0xf] %v608
      %642 = vst [vmem:[%s629 + $0x80] sm:$0xf] %v609
      %643 = vst [vmem:[%s629 + $0x84] sm:$0xf] %v610
      %644 = vst [vmem:[%s629 + $0x94] sm:$0xf] %v611
      %645 = vst [vmem:[%s629 + $0x98] sm:$0xf] %v612
      %v646 = vld [vmem:[#allocation2 + $0x4] sm:$0x8]
      %v647 = vld [vmem:[#allocation2 + $0x8] sm:$0xf]
      %v648 = vld [vmem:[#allocation2 + $0xc] sm:$0xf]
      %v649 = vld [vmem:[#allocation2 + $0x18] sm:$0x8]
      %v650 = vld [vmem:[#allocation2 + $0x1c] sm:$0xf]
      %v651 = vld [vmem:[#allocation2 + $0x20] sm:$0xf]
      %v652 = vld [vmem:[#allocation2 + $0x2c] sm:$0x8]
      %v653 = vld [vmem:[#allocation2 + $0x30] sm:$0xf]
      %v654 = vld [vmem:[#allocation2 + $0x34] sm:$0xf]
      %v655 = vld [vmem:[#allocation2 + $0x40] sm:$0x8]
      %v656 = vld [vmem:[#allocation2 + $0x44] sm:$0xf]
      %v657 = vld [vmem:[#allocation2 + $0x48] sm:$0xf]
      %v658 = vld [vmem:[#allocation2 + $0x54] sm:$0x8]
      %v659 = vld [vmem:[#allocation2 + $0x58] sm:$0xf]
      %v660 = vld [vmem:[#allocation2 + $0x5c] sm:$0xf]
      %v661 = vld [vmem:[#allocation2 + $0x68] sm:$0x8]
      %v662 = vld [vmem:[#allocation2 + $0x6c] sm:$0xf]
      %v663 = vld [vmem:[#allocation2 + $0x70] sm:$0xf]
      %v664 = vld [vmem:[#allocation2 + $0x7c] sm:$0x8]
      %v665 = vld [vmem:[#allocation2 + $0x80] sm:$0xf]
      %v666 = vld [vmem:[#allocation2 + $0x84] sm:$0xf]
      %v667 = vld [vmem:[#allocation2 + $0x90] sm:$0x8]
      %v668 = vld [vmem:[#allocation2 + $0x94] sm:$0xf]
      %v669 = vld [vmem:[#allocation2 + $0x98] sm:$0xf]
      %v694 = vunpack.c.l.b16 %v646
      %v695 = vunpack.c.l.b16 %v647
      %v696 = vunpack.c.l.b16 %v648
      %v697 = vunpack.c.l.b16 %v649
      %v698 = vunpack.c.l.b16 %v650
      %v699 = vunpack.c.l.b16 %v651
      %v700 = vunpack.c.l.b16 %v652
      %v701 = vunpack.c.l.b16 %v653
      %v702 = vunpack.c.l.b16 %v654
      %v703 = vunpack.c.l.b16 %v655
      %v704 = vunpack.c.l.b16 %v656
      %v705 = vunpack.c.l.b16 %v657
      %v706 = vunpack.c.l.b16 %v658
      %v707 = vunpack.c.l.b16 %v659
      %v708 = vunpack.c.l.b16 %v660
      %v709 = vunpack.c.l.b16 %v661
      %v710 = vunpack.c.l.b16 %v662
      %v711 = vunpack.c.l.b16 %v663
      %v712 = vunpack.c.l.b16 %v664
      %v713 = vunpack.c.l.b16 %v665
      %v714 = vunpack.c.l.b16 %v666
      %v715 = vunpack.c.l.b16 %v667
      %v716 = vunpack.c.l.b16 %v668
      %v717 = vunpack.c.l.b16 %v669
      %v718 = vpack.c.b16 %v695, %v694
      %v719 = vpack.c.b16 %v696, %v696
      %v720 = vpack.c.b16 %v698, %v697
      %v721 = vpack.c.b16 %v699, %v699
      %v722 = vpack.c.b16 %v701, %v700
      %v723 = vpack.c.b16 %v702, %v702
      %v724 = vpack.c.b16 %v704, %v703
      %v725 = vpack.c.b16 %v705, %v705
      %v726 = vpack.c.b16 %v707, %v706
      %v727 = vpack.c.b16 %v708, %v708
      %v728 = vpack.c.b16 %v710, %v709
      %v729 = vpack.c.b16 %v711, %v711
      %v730 = vpack.c.b16 %v713, %v712
      %v731 = vpack.c.b16 %v714, %v714
      %v732 = vpack.c.b16 %v716, %v715
      %v733 = vpack.c.b16 %v717, %v717
      %vm734 = vsmask.f32 4352
      %v736 = vshrl.u32 %v718, 16
      %v738 = vrot.slane %v736, 3
      %v739 = vshll.u32 %v718, 16
      %v741 = vrot.slane %v739, 4
      %v742 = vor.u32 %v738, %v741
      %v744 = vshrl.u32 %v719, 16
      %v746 = vrot.slane %v744, 3
      %v747 = vshll.u32 %v719, 16
      %v749 = vrot.slane %v747, 4
      %v750 = vor.u32 %v746, %v749
      %v751 = vsel %vm734, %v742, %v750
      %v753 = vshrl.u32 %v720, 16
      %v755 = vrot.slane %v753, 3
      %v756 = vshll.u32 %v720, 16
      %v758 = vrot.slane %v756, 4
      %v759 = vor.u32 %v755, %v758
      %v761 = vshrl.u32 %v721, 16
      %v763 = vrot.slane %v761, 3
      %v764 = vshll.u32 %v721, 16
      %v766 = vrot.slane %v764, 4
      %v767 = vor.u32 %v763, %v766
      %v768 = vsel %vm734, %v759, %v767
      %v770 = vshrl.u32 %v722, 16
      %v772 = vrot.slane %v770, 3
      %v773 = vshll.u32 %v722, 16
      %v775 = vrot.slane %v773, 4
      %v776 = vor.u32 %v772, %v775
      %v778 = vshrl.u32 %v723, 16
      %v780 = vrot.slane %v778, 3
      %v781 = vshll.u32 %v723, 16
      %v783 = vrot.slane %v781, 4
      %v784 = vor.u32 %v780, %v783
      %v785 = vsel %vm734, %v776, %v784
      %v787 = vshrl.u32 %v724, 16
      %v789 = vrot.slane %v787, 3
      %v790 = vshll.u32 %v724, 16
      %v792 = vrot.slane %v790, 4
      %v793 = vor.u32 %v789, %v792
      %v795 = vshrl.u32 %v725, 16
      %v797 = vrot.slane %v795, 3
      %v798 = vshll.u32 %v725, 16
      %v800 = vrot.slane %v798, 4
      %v801 = vor.u32 %v797, %v800
      %v802 = vsel %vm734, %v793, %v801
      %v804 = vshrl.u32 %v726, 16
      %v806 = vrot.slane %v804, 3
      %v807 = vshll.u32 %v726, 16
      %v809 = vrot.slane %v807, 4
      %v810 = vor.u32 %v806, %v809
      %v812 = vshrl.u32 %v727, 16
      %v814 = vrot.slane %v812, 3
      %v815 = vshll.u32 %v727, 16
      %v817 = vrot.slane %v815, 4
      %v818 = vor.u32 %v814, %v817
      %v819 = vsel %vm734, %v810, %v818
      %v821 = vshrl.u32 %v728, 16
      %v823 = vrot.slane %v821, 3
      %v824 = vshll.u32 %v728, 16
      %v826 = vrot.slane %v824, 4
      %v827 = vor.u32 %v823, %v826
      %v829 = vshrl.u32 %v729, 16
      %v831 = vrot.slane %v829, 3
      %v832 = vshll.u32 %v729, 16
      %v834 = vrot.slane %v832, 4
      %v835 = vor.u32 %v831, %v834
      %v836 = vsel %vm734, %v827, %v835
      %v838 = vshrl.u32 %v730, 16
      %v840 = vrot.slane %v838, 3
      %v841 = vshll.u32 %v730, 16
      %v843 = vrot.slane %v841, 4
      %v844 = vor.u32 %v840, %v843
      %v846 = vshrl.u32 %v731, 16
      %v848 = vrot.slane %v846, 3
      %v849 = vshll.u32 %v731, 16
      %v851 = vrot.slane %v849, 4
      %v852 = vor.u32 %v848, %v851
      %v853 = vsel %vm734, %v844, %v852
      %v855 = vshrl.u32 %v732, 16
      %v857 = vrot.slane %v855, 3
      %v858 = vshll.u32 %v732, 16
      %v860 = vrot.slane %v858, 4
      %v861 = vor.u32 %v857, %v860
      %v863 = vshrl.u32 %v733, 16
      %v865 = vrot.slane %v863, 3
      %v866 = vshll.u32 %v733, 16
      %v868 = vrot.slane %v866, 4
      %v869 = vor.u32 %v865, %v868
      %v870 = vsel %vm734, %v861, %v869
      %879 = vst [vmem:[#allocation3] sm:$0xff] %v751
      %880 = vst [vmem:[#allocation3 + $0x48] sm:$0xff] %v768
      %881 = vst [vmem:[#allocation3 + $0x90] sm:$0xff] %v785
      %882 = vst [vmem:[#allocation3 + $0xd8] sm:$0xff] %v802
      %883 = vst [vmem:[#allocation3 + $0x120] sm:$0xff] %v819
      %884 = vst [vmem:[#allocation3 + $0x168] sm:$0xff] %v836
      %885 = vst [vmem:[#allocation3 + $0x1b0] sm:$0xff] %v853
      %886 = vst [vmem:[#allocation3 + $0x1f8] sm:$0xff] %v870
      %v887 = vld [vmem:[#allocation2 + $0x8] sm:$0xf]
      %v888 = vld [vmem:[#allocation2 + $0xc] sm:$0xf]
      %v889 = vld [vmem:[#allocation2 + $0x1c] sm:$0xf]
      %v890 = vld [vmem:[#allocation2 + $0x20] sm:$0xf]
      %v891 = vld [vmem:[#allocation2 + $0x30] sm:$0xf]
      %v892 = vld [vmem:[#allocation2 + $0x34] sm:$0xf]
      %v893 = vld [vmem:[#allocation2 + $0x44] sm:$0xf]
      %v894 = vld [vmem:[#allocation2 + $0x48] sm:$0xf]
      %v895 = vld [vmem:[#allocation2 + $0x58] sm:$0xf]
      %v896 = vld [vmem:[#allocation2 + $0x5c] sm:$0xf]
      %v897 = vld [vmem:[#allocation2 + $0x6c] sm:$0xf]
      %v898 = vld [vmem:[#allocation2 + $0x70] sm:$0xf]
      %v899 = vld [vmem:[#allocation2 + $0x80] sm:$0xf]
      %v900 = vld [vmem:[#allocation2 + $0x84] sm:$0xf]
      %v901 = vld [vmem:[#allocation2 + $0x94] sm:$0xf]
      %v902 = vld [vmem:[#allocation2 + $0x98] sm:$0xf]
      %v919 = vunpack.c.l.b16 %v887
      %v920 = vunpack.c.l.b16 %v888
      %v921 = vunpack.c.l.b16 %v889
      %v922 = vunpack.c.l.b16 %v890
      %v923 = vunpack.c.l.b16 %v891
      %v924 = vunpack.c.l.b16 %v892
      %v925 = vunpack.c.l.b16 %v893
      %v926 = vunpack.c.l.b16 %v894
      %v927 = vunpack.c.l.b16 %v895
      %v928 = vunpack.c.l.b16 %v896
      %v929 = vunpack.c.l.b16 %v897
      %v930 = vunpack.c.l.b16 %v898
      %v931 = vunpack.c.l.b16 %v899
      %v932 = vunpack.c.l.b16 %v900
      %v933 = vunpack.c.l.b16 %v901
      %v934 = vunpack.c.l.b16 %v902
      %v935 = vpack.c.b16 %v920, %v919
      %v936 = vpack.c.b16 %v922, %v921
      %v937 = vpack.c.b16 %v924, %v923
      %v938 = vpack.c.b16 %v926, %v925
      %v939 = vpack.c.b16 %v928, %v927
      %v940 = vpack.c.b16 %v930, %v929
      %v941 = vpack.c.b16 %v932, %v931
      %v942 = vpack.c.b16 %v934, %v933
      %951 = vst [vmem:[#allocation3 + $0x8] sm:$0xff] %v935
      %952 = vst [vmem:[#allocation3 + $0x50] sm:$0xff] %v936
      %953 = vst [vmem:[#allocation3 + $0x98] sm:$0xff] %v937
      %954 = vst [vmem:[#allocation3 + $0xe0] sm:$0xff] %v938
      %955 = vst [vmem:[#allocation3 + $0x128] sm:$0xff] %v939
      %956 = vst [vmem:[#allocation3 + $0x170] sm:$0xff] %v940
      %957 = vst [vmem:[#allocation3 + $0x1b8] sm:$0xff] %v941
      %958 = vst [vmem:[#allocation3 + $0x200] sm:$0xff] %v942
      %v959 = vld [vmem:[#allocation2 + $0x8] sm:$0xf]
      %v960 = vld [vmem:[#allocation2 + $0xc] sm:$0xf]
      %v961 = vld [vmem:[#allocation2 + $0x10] sm:$0x1]
      %v962 = vld [vmem:[#allocation2 + $0x1c] sm:$0xf]
      %v963 = vld [vmem:[#allocation2 + $0x20] sm:$0xf]
      %v964 = vld [vmem:[#allocation2 + $0x24] sm:$0x1]
      %v965 = vld [vmem:[#allocation2 + $0x30] sm:$0xf]
      %v966 = vld [vmem:[#allocation2 + $0x34] sm:$0xf]
      %v967 = vld [vmem:[#allocation2 + $0x38] sm:$0x1]
      %v968 = vld [vmem:[#allocation2 + $0x44] sm:$0xf]
      %v969 = vld [vmem:[#allocation2 + $0x48] sm:$0xf]
      %v970 = vld [vmem:[#allocation2 + $0x4c] sm:$0x1]
      %v971 = vld [vmem:[#allocation2 + $0x58] sm:$0xf]
      %v972 = vld [vmem:[#allocation2 + $0x5c] sm:$0xf]
      %v973 = vld [vmem:[#allocation2 + $0x60] sm:$0x1]
      %v974 = vld [vmem:[#allocation2 + $0x6c] sm:$0xf]
      %v975 = vld [vmem:[#allocation2 + $0x70] sm:$0xf]
      %v976 = vld [vmem:[#allocation2 + $0x74] sm:$0x1]
      %v977 = vld [vmem:[#allocation2 + $0x80] sm:$0xf]
      %v978 = vld [vmem:[#allocation2 + $0x84] sm:$0xf]
      %v979 = vld [vmem:[#allocation2 + $0x88] sm:$0x1]
      %v980 = vld [vmem:[#allocation2 + $0x94] sm:$0xf]
      %v981 = vld [vmem:[#allocation2 + $0x98] sm:$0xf]
      %v982 = vld [vmem:[#allocation2 + $0x9c] sm:$0x1]
      %v1007 = vunpack.c.l.b16 %v959
      %v1008 = vunpack.c.l.b16 %v960
      %v1009 = vunpack.c.l.b16 %v961
      %v1010 = vunpack.c.l.b16 %v962
      %v1011 = vunpack.c.l.b16 %v963
      %v1012 = vunpack.c.l.b16 %v964
      %v1013 = vunpack.c.l.b16 %v965
      %v1014 = vunpack.c.l.b16 %v966
      %v1015 = vunpack.c.l.b16 %v967
      %v1016 = vunpack.c.l.b16 %v968
      %v1017 = vunpack.c.l.b16 %v969
      %v1018 = vunpack.c.l.b16 %v970
      %v1019 = vunpack.c.l.b16 %v971
      %v1020 = vunpack.c.l.b16 %v972
      %v1021 = vunpack.c.l.b16 %v973
      %v1022 = vunpack.c.l.b16 %v974
      %v1023 = vunpack.c.l.b16 %v975
      %v1024 = vunpack.c.l.b16 %v976
      %v1025 = vunpack.c.l.b16 %v977
      %v1026 = vunpack.c.l.b16 %v978
      %v1027 = vunpack.c.l.b16 %v979
      %v1028 = vunpack.c.l.b16 %v980
      %v1029 = vunpack.c.l.b16 %v981
      %v1030 = vunpack.c.l.b16 %v982
      %v1031 = vpack.c.b16 %v1008, %v1007
      %v1032 = vpack.c.b16 %v1009, %v1009
      %v1033 = vpack.c.b16 %v1011, %v1010
      %v1034 = vpack.c.b16 %v1012, %v1012
      %v1035 = vpack.c.b16 %v1014, %v1013
      %v1036 = vpack.c.b16 %v1015, %v1015
      %v1037 = vpack.c.b16 %v1017, %v1016
      %v1038 = vpack.c.b16 %v1018, %v1018
      %v1039 = vpack.c.b16 %v1020, %v1019
      %v1040 = vpack.c.b16 %v1021, %v1021
      %v1041 = vpack.c.b16 %v1023, %v1022
      %v1042 = vpack.c.b16 %v1024, %v1024
      %v1043 = vpack.c.b16 %v1026, %v1025
      %v1044 = vpack.c.b16 %v1027, %v1027
      %v1045 = vpack.c.b16 %v1029, %v1028
      %v1046 = vpack.c.b16 %v1030, %v1030
      %vm1047 = vsmask.f32 7424
      %v1049 = vshrl.u32 %v1031, 16
      %v1051 = vshll.u32 %v1031, 16
      %v1053 = vrot.slane %v1051, 1
      %v1054 = vor.u32 %v1049, %v1053
      %v1056 = vshll.u32 %v1032, 16
      %v1058 = vrot.slane %v1056, 1
      %v1059 = vsel %vm1047, %v1054, %v1058
      %v1061 = vshrl.u32 %v1033, 16
      %v1063 = vshll.u32 %v1033, 16
      %v1065 = vrot.slane %v1063, 1
      %v1066 = vor.u32 %v1061, %v1065
      %v1068 = vshll.u32 %v1034, 16
      %v1070 = vrot.slane %v1068, 1
      %v1071 = vsel %vm1047, %v1066, %v1070
      %v1073 = vshrl.u32 %v1035, 16
      %v1075 = vshll.u32 %v1035, 16
      %v1077 = vrot.slane %v1075, 1
      %v1078 = vor.u32 %v1073, %v1077
      %v1080 = vshll.u32 %v1036, 16
      %v1082 = vrot.slane %v1080, 1
      %v1083 = vsel %vm1047, %v1078, %v1082
      %v1085 = vshrl.u32 %v1037, 16
      %v1087 = vshll.u32 %v1037, 16
      %v1089 = vrot.slane %v1087, 1
      %v1090 = vor.u32 %v1085, %v1089
      %v1092 = vshll.u32 %v1038, 16
      %v1094 = vrot.slane %v1092, 1
      %v1095 = vsel %vm1047, %v1090, %v1094
      %v1097 = vshrl.u32 %v1039, 16
      %v1099 = vshll.u32 %v1039, 16
      %v1101 = vrot.slane %v1099, 1
      %v1102 = vor.u32 %v1097, %v1101
      %v1104 = vshll.u32 %v1040, 16
      %v1106 = vrot.slane %v1104, 1
      %v1107 = vsel %vm1047, %v1102, %v1106
      %v1109 = vshrl.u32 %v1041, 16
      %v1111 = vshll.u32 %v1041, 16
      %v1113 = vrot.slane %v1111, 1
      %v1114 = vor.u32 %v1109, %v1113
      %v1116 = vshll.u32 %v1042, 16
      %v1118 = vrot.slane %v1116, 1
      %v1119 = vsel %vm1047, %v1114, %v1118
      %v1121 = vshrl.u32 %v1043, 16
      %v1123 = vshll.u32 %v1043, 16
      %v1125 = vrot.slane %v1123, 1
      %v1126 = vor.u32 %v1121, %v1125
      %v1128 = vshll.u32 %v1044, 16
      %v1130 = vrot.slane %v1128, 1
      %v1131 = vsel %vm1047, %v1126, %v1130
      %v1133 = vshrl.u32 %v1045, 16
      %v1135 = vshll.u32 %v1045, 16
      %v1137 = vrot.slane %v1135, 1
      %v1138 = vor.u32 %v1133, %v1137
      %v1140 = vshll.u32 %v1046, 16
      %v1142 = vrot.slane %v1140, 1
      %v1143 = vsel %vm1047, %v1138, %v1142
      %1152 = vst [vmem:[#allocation3 + $0x10] sm:$0xff] %v1059
      %1153 = vst [vmem:[#allocation3 + $0x58] sm:$0xff] %v1071
      %1154 = vst [vmem:[#allocation3 + $0xa0] sm:$0xff] %v1083
      %1155 = vst [vmem:[#allocation3 + $0xe8] sm:$0xff] %v1095
      %1156 = vst [vmem:[#allocation3 + $0x130] sm:$0xff] %v1107
      %1157 = vst [vmem:[#allocation3 + $0x178] sm:$0xff] %v1119
      %1158 = vst [vmem:[#allocation3 + $0x1c0] sm:$0xff] %v1131
      %1159 = vst [vmem:[#allocation3 + $0x208] sm:$0xff] %v1143
      %v1160 = vld [vmem:[%s629 + $0x4] sm:$0x8]
      %v1161 = vld [vmem:[%s629 + $0x8] sm:$0xf]
      %v1162 = vld [vmem:[%s629 + $0xc] sm:$0xf]
      %v1163 = vld [vmem:[%s629 + $0x18] sm:$0x8]
      %v1164 = vld [vmem:[%s629 + $0x1c] sm:$0xf]
      %v1165 = vld [vmem:[%s629 + $0x20] sm:$0xf]
      %v1166 = vld [vmem:[%s629 + $0x2c] sm:$0x8]
      %v1167 = vld [vmem:[%s629 + $0x30] sm:$0xf]
      %v1168 = vld [vmem:[%s629 + $0x34] sm:$0xf]
      %v1169 = vld [vmem:[%s629 + $0x40] sm:$0x8]
      %v1170 = vld [vmem:[%s629 + $0x44] sm:$0xf]
      %v1171 = vld [vmem:[%s629 + $0x48] sm:$0xf]
      %v1172 = vld [vmem:[%s629 + $0x54] sm:$0x8]
      %v1173 = vld [vmem:[%s629 + $0x58] sm:$0xf]
      %v1174 = vld [vmem:[%s629 + $0x5c] sm:$0xf]
      %v1175 = vld [vmem:[%s629 + $0x68] sm:$0x8]
      %v1176 = vld [vmem:[%s629 + $0x6c] sm:$0xf]
      %v1177 = vld [vmem:[%s629 + $0x70] sm:$0xf]
      %v1178 = vld [vmem:[%s629 + $0x7c] sm:$0x8]
      %v1179 = vld [vmem:[%s629 + $0x80] sm:$0xf]
      %v1180 = vld [vmem:[%s629 + $0x84] sm:$0xf]
      %v1181 = vld [vmem:[%s629 + $0x90] sm:$0x8]
      %v1182 = vld [vmem:[%s629 + $0x94] sm:$0xf]
      %v1183 = vld [vmem:[%s629 + $0x98] sm:$0xf]
      %v1208 = vunpack.c.l.b16 %v1160
      %v1209 = vunpack.c.l.b16 %v1161
      %v1210 = vunpack.c.l.b16 %v1162
      %v1211 = vunpack.c.l.b16 %v1163
      %v1212 = vunpack.c.l.b16 %v1164
      %v1213 = vunpack.c.l.b16 %v1165
      %v1214 = vunpack.c.l.b16 %v1166
      %v1215 = vunpack.c.l.b16 %v1167
      %v1216 = vunpack.c.l.b16 %v1168
      %v1217 = vunpack.c.l.b16 %v1169
      %v1218 = vunpack.c.l.b16 %v1170
      %v1219 = vunpack.c.l.b16 %v1171
      %v1220 = vunpack.c.l.b16 %v1172
      %v1221 = vunpack.c.l.b16 %v1173
      %v1222 = vunpack.c.l.b16 %v1174
      %v1223 = vunpack.c.l.b16 %v1175
      %v1224 = vunpack.c.l.b16 %v1176
      %v1225 = vunpack.c.l.b16 %v1177
      %v1226 = vunpack.c.l.b16 %v1178
      %v1227 = vunpack.c.l.b16 %v1179
      %v1228 = vunpack.c.l.b16 %v1180
      %v1229 = vunpack.c.l.b16 %v1181
      %v1230 = vunpack.c.l.b16 %v1182
      %v1231 = vunpack.c.l.b16 %v1183
      %v1232 = vpack.c.b16 %v1209, %v1208
      %v1233 = vpack.c.b16 %v1210, %v1210
      %v1234 = vpack.c.b16 %v1212, %v1211
      %v1235 = vpack.c.b16 %v1213, %v1213
      %v1236 = vpack.c.b16 %v1215, %v1214
      %v1237 = vpack.c.b16 %v1216, %v1216
      %v1238 = vpack.c.b16 %v1218, %v1217
      %v1239 = vpack.c.b16 %v1219, %v1219
      %v1240 = vpack.c.b16 %v1221, %v1220
      %v1241 = vpack.c.b16 %v1222, %v1222
      %v1242 = vpack.c.b16 %v1224, %v1223
      %v1243 = vpack.c.b16 %v1225, %v1225
      %v1244 = vpack.c.b16 %v1227, %v1226
      %v1245 = vpack.c.b16 %v1228, %v1228
      %v1246 = vpack.c.b16 %v1230, %v1229
      %v1247 = vpack.c.b16 %v1231, %v1231
      %v1249 = vshrl.u32 %v1232, 16
      %v1251 = vrot.slane %v1249, 3
      %v1252 = vshll.u32 %v1232, 16
      %v1254 = vrot.slane %v1252, 4
      %v1255 = vor.u32 %v1251, %v1254
      %v1257 = vshrl.u32 %v1233, 16
      %v1259 = vrot.slane %v1257, 3
      %v1260 = vshll.u32 %v1233, 16
      %v1262 = vrot.slane %v1260, 4
      %v1263 = vor.u32 %v1259, %v1262
      %v1264 = vsel %vm734, %v1255, %v1263
      %v1266 = vshrl.u32 %v1234, 16
      %v1268 = vrot.slane %v1266, 3
      %v1269 = vshll.u32 %v1234, 16
      %v1271 = vrot.slane %v1269, 4
      %v1272 = vor.u32 %v1268, %v1271
      %v1274 = vshrl.u32 %v1235, 16
      %v1276 = vrot.slane %v1274, 3
      %v1277 = vshll.u32 %v1235, 16
      %v1279 = vrot.slane %v1277, 4
      %v1280 = vor.u32 %v1276, %v1279
      %v1281 = vsel %vm734, %v1272, %v1280
      %v1283 = vshrl.u32 %v1236, 16
      %v1285 = vrot.slane %v1283, 3
      %v1286 = vshll.u32 %v1236, 16
      %v1288 = vrot.slane %v1286, 4
      %v1289 = vor.u32 %v1285, %v1288
      %v1291 = vshrl.u32 %v1237, 16
      %v1293 = vrot.slane %v1291, 3
      %v1294 = vshll.u32 %v1237, 16
      %v1296 = vrot.slane %v1294, 4
      %v1297 = vor.u32 %v1293, %v1296
      %v1298 = vsel %vm734, %v1289, %v1297
      %v1300 = vshrl.u32 %v1238, 16
      %v1302 = vrot.slane %v1300, 3
      %v1303 = vshll.u32 %v1238, 16
      %v1305 = vrot.slane %v1303, 4
      %v1306 = vor.u32 %v1302, %v1305
      %v1308 = vshrl.u32 %v1239, 16
      %v1310 = vrot.slane %v1308, 3
      %v1311 = vshll.u32 %v1239, 16
      %v1313 = vrot.slane %v1311, 4
      %v1314 = vor.u32 %v1310, %v1313
      %v1315 = vsel %vm734, %v1306, %v1314
      %v1317 = vshrl.u32 %v1240, 16
      %v1319 = vrot.slane %v1317, 3
      %v1320 = vshll.u32 %v1240, 16
      %v1322 = vrot.slane %v1320, 4
      %v1323 = vor.u32 %v1319, %v1322
      %v1325 = vshrl.u32 %v1241, 16
      %v1327 = vrot.slane %v1325, 3
      %v1328 = vshll.u32 %v1241, 16
      %v1330 = vrot.slane %v1328, 4
      %v1331 = vor.u32 %v1327, %v1330
      %v1332 = vsel %vm734, %v1323, %v1331
      %v1334 = vshrl.u32 %v1242, 16
      %v1336 = vrot.slane %v1334, 3
      %v1337 = vshll.u32 %v1242, 16
      %v1339 = vrot.slane %v1337, 4
      %v1340 = vor.u32 %v1336, %v1339
      %v1342 = vshrl.u32 %v1243, 16
      %v1344 = vrot.slane %v1342, 3
      %v1345 = vshll.u32 %v1243, 16
      %v1347 = vrot.slane %v1345, 4
      %v1348 = vor.u32 %v1344, %v1347
      %v1349 = vsel %vm734, %v1340, %v1348
      %v1351 = vshrl.u32 %v1244, 16
      %v1353 = vrot.slane %v1351, 3
      %v1354 = vshll.u32 %v1244, 16
      %v1356 = vrot.slane %v1354, 4
      %v1357 = vor.u32 %v1353, %v1356
      %v1359 = vshrl.u32 %v1245, 16
      %v1361 = vrot.slane %v1359, 3
      %v1362 = vshll.u32 %v1245, 16
      %v1364 = vrot.slane %v1362, 4
      %v1365 = vor.u32 %v1361, %v1364
      %v1366 = vsel %vm734, %v1357, %v1365
      %v1368 = vshrl.u32 %v1246, 16
      %v1370 = vrot.slane %v1368, 3
      %v1371 = vshll.u32 %v1246, 16
      %v1373 = vrot.slane %v1371, 4
      %v1374 = vor.u32 %v1370, %v1373
      %v1376 = vshrl.u32 %v1247, 16
      %v1378 = vrot.slane %v1376, 3
      %v1379 = vshll.u32 %v1247, 16
      %v1381 = vrot.slane %v1379, 4
      %v1382 = vor.u32 %v1378, %v1381
      %v1383 = vsel %vm734, %v1374, %v1382
      %1392 = vst [vmem:[#allocation3 + $0x18] sm:$0xff] %v1264
      %1393 = vst [vmem:[#allocation3 + $0x60] sm:$0xff] %v1281
      %1394 = vst [vmem:[#allocation3 + $0xa8] sm:$0xff] %v1298
      %1395 = vst [vmem:[#allocation3 + $0xf0] sm:$0xff] %v1315
      %1396 = vst [vmem:[#allocation3 + $0x138] sm:$0xff] %v1332
      %1397 = vst [vmem:[#allocation3 + $0x180] sm:$0xff] %v1349
      %1398 = vst [vmem:[#allocation3 + $0x1c8] sm:$0xff] %v1366
      %1399 = vst [vmem:[#allocation3 + $0x210] sm:$0xff] %v1383
      %v1400 = vld [vmem:[%s629 + $0x8] sm:$0xf]
      %v1401 = vld [vmem:[%s629 + $0xc] sm:$0xf]
      %v1402 = vld [vmem:[%s629 + $0x1c] sm:$0xf]
      %v1403 = vld [vmem:[%s629 + $0x20] sm:$0xf]
      %v1404 = vld [vmem:[%s629 + $0x30] sm:$0xf]
      %v1405 = vld [vmem:[%s629 + $0x34] sm:$0xf]
      %v1406 = vld [vmem:[%s629 + $0x44] sm:$0xf]
      %v1407 = vld [vmem:[%s629 + $0x48] sm:$0xf]
      %v1408 = vld [vmem:[%s629 + $0x58] sm:$0xf]
      %v1409 = vld [vmem:[%s629 + $0x5c] sm:$0xf]
      %v1410 = vld [vmem:[%s629 + $0x6c] sm:$0xf]
      %v1411 = vld [vmem:[%s629 + $0x70] sm:$0xf]
      %v1412 = vld [vmem:[%s629 + $0x80] sm:$0xf]
      %v1413 = vld [vmem:[%s629 + $0x84] sm:$0xf]
      %v1414 = vld [vmem:[%s629 + $0x94] sm:$0xf]
      %v1415 = vld [vmem:[%s629 + $0x98] sm:$0xf]
      %v1432 = vunpack.c.l.b16 %v1400
      %v1433 = vunpack.c.l.b16 %v1401
      %v1434 = vunpack.c.l.b16 %v1402
      %v1435 = vunpack.c.l.b16 %v1403
      %v1436 = vunpack.c.l.b16 %v1404
      %v1437 = vunpack.c.l.b16 %v1405
      %v1438 = vunpack.c.l.b16 %v1406
      %v1439 = vunpack.c.l.b16 %v1407
      %v1440 = vunpack.c.l.b16 %v1408
      %v1441 = vunpack.c.l.b16 %v1409
      %v1442 = vunpack.c.l.b16 %v1410
      %v1443 = vunpack.c.l.b16 %v1411
      %v1444 = vunpack.c.l.b16 %v1412
      %v1445 = vunpack.c.l.b16 %v1413
      %v1446 = vunpack.c.l.b16 %v1414
      %v1447 = vunpack.c.l.b16 %v1415
      %v1448 = vpack.c.b16 %v1433, %v1432
      %v1449 = vpack.c.b16 %v1435, %v1434
      %v1450 = vpack.c.b16 %v1437, %v1436
      %v1451 = vpack.c.b16 %v1439, %v1438
      %v1452 = vpack.c.b16 %v1441, %v1440
      %v1453 = vpack.c.b16 %v1443, %v1442
      %v1454 = vpack.c.b16 %v1445, %v1444
      %v1455 = vpack.c.b16 %v1447, %v1446
      %1464 = vst [vmem:[#allocation3 + $0x20] sm:$0xff] %v1448
      %1465 = vst [vmem:[#allocation3 + $0x68] sm:$0xff] %v1449
      %1466 = vst [vmem:[#allocation3 + $0xb0] sm:$0xff] %v1450
      %1467 = vst [vmem:[#allocation3 + $0xf8] sm:$0xff] %v1451
      %1468 = vst [vmem:[#allocation3 + $0x140] sm:$0xff] %v1452
      %1469 = vst [vmem:[#allocation3 + $0x188] sm:$0xff] %v1453
      %1470 = vst [vmem:[#allocation3 + $0x1d0] sm:$0xff] %v1454
      %1471 = vst [vmem:[#allocation3 + $0x218] sm:$0xff] %v1455
      %v1472 = vld [vmem:[%s629 + $0x8] sm:$0xf]
      %v1473 = vld [vmem:[%s629 + $0xc] sm:$0xf]
      %v1474 = vld [vmem:[%s629 + $0x10] sm:$0x1]
      %v1475 = vld [vmem:[%s629 + $0x1c] sm:$0xf]
      %v1476 = vld [vmem:[%s629 + $0x20] sm:$0xf]
      %v1477 = vld [vmem:[%s629 + $0x24] sm:$0x1]
      %v1478 = vld [vmem:[%s629 + $0x30] sm:$0xf]
      %v1479 = vld [vmem:[%s629 + $0x34] sm:$0xf]
      %v1480 = vld [vmem:[%s629 + $0x38] sm:$0x1]
      %v1481 = vld [vmem:[%s629 + $0x44] sm:$0xf]
      %v1482 = vld [vmem:[%s629 + $0x48] sm:$0xf]
      %v1483 = vld [vmem:[%s629 + $0x4c] sm:$0x1]
      %v1484 = vld [vmem:[%s629 + $0x58] sm:$0xf]
      %v1485 = vld [vmem:[%s629 + $0x5c] sm:$0xf]
      %v1486 = vld [vmem:[%s629 + $0x60] sm:$0x1]
      %v1487 = vld [vmem:[%s629 + $0x6c] sm:$0xf]
      %v1488 = vld [vmem:[%s629 + $0x70] sm:$0xf]
      %v1489 = vld [vmem:[%s629 + $0x74] sm:$0x1]
      %v1490 = vld [vmem:[%s629 + $0x80] sm:$0xf]
      %v1491 = vld [vmem:[%s629 + $0x84] sm:$0xf]
      %v1492 = vld [vmem:[%s629 + $0x88] sm:$0x1]
      %v1493 = vld [vmem:[%s629 + $0x94] sm:$0xf]
      %v1494 = vld [vmem:[%s629 + $0x98] sm:$0xf]
      %v1495 = vld [vmem:[%s629 + $0x9c] sm:$0x1]
      %v1520 = vunpack.c.l.b16 %v1472
      %v1521 = vunpack.c.l.b16 %v1473
      %v1522 = vunpack.c.l.b16 %v1474
      %v1523 = vunpack.c.l.b16 %v1475
      %v1524 = vunpack.c.l.b16 %v1476
      %v1525 = vunpack.c.l.b16 %v1477
      %v1526 = vunpack.c.l.b16 %v1478
      %v1527 = vunpack.c.l.b16 %v1479
      %v1528 = vunpack.c.l.b16 %v1480
      %v1529 = vunpack.c.l.b16 %v1481
      %v1530 = vunpack.c.l.b16 %v1482
      %v1531 = vunpack.c.l.b16 %v1483
      %v1532 = vunpack.c.l.b16 %v1484
      %v1533 = vunpack.c.l.b16 %v1485
      %v1534 = vunpack.c.l.b16 %v1486
      %v1535 = vunpack.c.l.b16 %v1487
      %v1536 = vunpack.c.l.b16 %v1488
      %v1537 = vunpack.c.l.b16 %v1489
      %v1538 = vunpack.c.l.b16 %v1490
      %v1539 = vunpack.c.l.b16 %v1491
      %v1540 = vunpack.c.l.b16 %v1492
      %v1541 = vunpack.c.l.b16 %v1493
      %v1542 = vunpack.c.l.b16 %v1494
      %v1543 = vunpack.c.l.b16 %v1495
      %v1544 = vpack.c.b16 %v1521, %v1520
      %v1545 = vpack.c.b16 %v1522, %v1522
      %v1546 = vpack.c.b16 %v1524, %v1523
      %v1547 = vpack.c.b16 %v1525, %v1525
      %v1548 = vpack.c.b16 %v1527, %v1526
      %v1549 = vpack.c.b16 %v1528, %v1528
      %v1550 = vpack.c.b16 %v1530, %v1529
      %v1551 = vpack.c.b16 %v1531, %v1531
      %v1552 = vpack.c.b16 %v1533, %v1532
      %v1553 = vpack.c.b16 %v1534, %v1534
      %v1554 = vpack.c.b16 %v1536, %v1535
      %v1555 = vpack.c.b16 %v1537, %v1537
      %v1556 = vpack.c.b16 %v1539, %v1538
      %v1557 = vpack.c.b16 %v1540, %v1540
      %v1558 = vpack.c.b16 %v1542, %v1541
      %v1559 = vpack.c.b16 %v1543, %v1543
      %v1561 = vshrl.u32 %v1544, 16
      %v1563 = vshll.u32 %v1544, 16
      %v1565 = vrot.slane %v1563, 1
      %v1566 = vor.u32 %v1561, %v1565
      %v1568 = vshll.u32 %v1545, 16
      %v1570 = vrot.slane %v1568, 1
      %v1571 = vsel %vm1047, %v1566, %v1570
      %v1573 = vshrl.u32 %v1546, 16
      %v1575 = vshll.u32 %v1546, 16
      %v1577 = vrot.slane %v1575, 1
      %v1578 = vor.u32 %v1573, %v1577
      %v1580 = vshll.u32 %v1547, 16
      %v1582 = vrot.slane %v1580, 1
      %v1583 = vsel %vm1047, %v1578, %v1582
      %v1585 = vshrl.u32 %v1548, 16
      %v1587 = vshll.u32 %v1548, 16
      %v1589 = vrot.slane %v1587, 1
      %v1590 = vor.u32 %v1585, %v1589
      %v1592 = vshll.u32 %v1549, 16
      %v1594 = vrot.slane %v1592, 1
      %v1595 = vsel %vm1047, %v1590, %v1594
      %v1597 = vshrl.u32 %v1550, 16
      %v1599 = vshll.u32 %v1550, 16
      %v1601 = vrot.slane %v1599, 1
      %v1602 = vor.u32 %v1597, %v1601
      %v1604 = vshll.u32 %v1551, 16
      %v1606 = vrot.slane %v1604, 1
      %v1607 = vsel %vm1047, %v1602, %v1606
      %v1609 = vshrl.u32 %v1552, 16
      %v1611 = vshll.u32 %v1552, 16
      %v1613 = vrot.slane %v1611, 1
      %v1614 = vor.u32 %v1609, %v1613
      %v1616 = vshll.u32 %v1553, 16
      %v1618 = vrot.slane %v1616, 1
      %v1619 = vsel %vm1047, %v1614, %v1618
      %v1621 = vshrl.u32 %v1554, 16
      %v1623 = vshll.u32 %v1554, 16
      %v1625 = vrot.slane %v1623, 1
      %v1626 = vor.u32 %v1621, %v1625
      %v1628 = vshll.u32 %v1555, 16
      %v1630 = vrot.slane %v1628, 1
      %v1631 = vsel %vm1047, %v1626, %v1630
      %v1633 = vshrl.u32 %v1556, 16
      %v1635 = vshll.u32 %v1556, 16
      %v1637 = vrot.slane %v1635, 1
      %v1638 = vor.u32 %v1633, %v1637
      %v1640 = vshll.u32 %v1557, 16
      %v1642 = vrot.slane %v1640, 1
      %v1643 = vsel %vm1047, %v1638, %v1642
      %v1645 = vshrl.u32 %v1558, 16
      %v1647 = vshll.u32 %v1558, 16
      %v1649 = vrot.slane %v1647, 1
      %v1650 = vor.u32 %v1645, %v1649
      %v1652 = vshll.u32 %v1559, 16
      %v1654 = vrot.slane %v1652, 1
      %v1655 = vsel %vm1047, %v1650, %v1654
      %1664 = vst [vmem:[#allocation3 + $0x28] sm:$0xff] %v1571
      %1665 = vst [vmem:[#allocation3 + $0x70] sm:$0xff] %v1583
      %1666 = vst [vmem:[#allocation3 + $0xb8] sm:$0xff] %v1595
      %1667 = vst [vmem:[#allocation3 + $0x100] sm:$0xff] %v1607
      %1668 = vst [vmem:[#allocation3 + $0x148] sm:$0xff] %v1619
      %1669 = vst [vmem:[#allocation3 + $0x190] sm:$0xff] %v1631
      %1670 = vst [vmem:[#allocation3 + $0x1d8] sm:$0xff] %v1643
      %1671 = vst [vmem:[#allocation3 + $0x220] sm:$0xff] %v1655
      %s1672 = scalar_lea.vmem [#allocation2], 40
      %v1673 = vld [vmem:[%s1672 + $0x4] sm:$0x8]
      %v1674 = vld [vmem:[%s1672 + $0x8] sm:$0xf]
      %v1675 = vld [vmem:[%s1672 + $0xc] sm:$0xf]
      %v1676 = vld [vmem:[%s1672 + $0x18] sm:$0x8]
      %v1677 = vld [vmem:[%s1672 + $0x1c] sm:$0xf]
      %v1678 = vld [vmem:[%s1672 + $0x20] sm:$0xf]
      %v1679 = vld [vmem:[%s1672 + $0x2c] sm:$0x8]
      %v1680 = vld [vmem:[%s1672 + $0x30] sm:$0xf]
      %v1681 = vld [vmem:[%s1672 + $0x34] sm:$0xf]
      %v1682 = vld [vmem:[%s1672 + $0x40] sm:$0x8]
      %v1683 = vld [vmem:[%s1672 + $0x44] sm:$0xf]
      %v1684 = vld [vmem:[%s1672 + $0x48] sm:$0xf]
      %v1685 = vld [vmem:[%s1672 + $0x54] sm:$0x8]
      %v1686 = vld [vmem:[%s1672 + $0x58] sm:$0xf]
      %v1687 = vld [vmem:[%s1672 + $0x5c] sm:$0xf]
      %v1688 = vld [vmem:[%s1672 + $0x68] sm:$0x8]
      %v1689 = vld [vmem:[%s1672 + $0x6c] sm:$0xf]
      %v1690 = vld [vmem:[%s1672 + $0x70] sm:$0xf]
      %v1691 = vld [vmem:[%s1672 + $0x7c] sm:$0x8]
      %v1692 = vld [vmem:[%s1672 + $0x80] sm:$0xf]
      %v1693 = vld [vmem:[%s1672 + $0x84] sm:$0xf]
      %v1694 = vld [vmem:[%s1672 + $0x90] sm:$0x8]
      %v1695 = vld [vmem:[%s1672 + $0x94] sm:$0xf]
      %v1696 = vld [vmem:[%s1672 + $0x98] sm:$0xf]
      %v1721 = vunpack.c.l.b16 %v1673
      %v1722 = vunpack.c.l.b16 %v1674
      %v1723 = vunpack.c.l.b16 %v1675
      %v1724 = vunpack.c.l.b16 %v1676
      %v1725 = vunpack.c.l.b16 %v1677
      %v1726 = vunpack.c.l.b16 %v1678
      %v1727 = vunpack.c.l.b16 %v1679
      %v1728 = vunpack.c.l.b16 %v1680
      %v1729 = vunpack.c.l.b16 %v1681
      %v1730 = vunpack.c.l.b16 %v1682
      %v1731 = vunpack.c.l.b16 %v1683
      %v1732 = vunpack.c.l.b16 %v1684
      %v1733 = vunpack.c.l.b16 %v1685
      %v1734 = vunpack.c.l.b16 %v1686
      %v1735 = vunpack.c.l.b16 %v1687
      %v1736 = vunpack.c.l.b16 %v1688
      %v1737 = vunpack.c.l.b16 %v1689
      %v1738 = vunpack.c.l.b16 %v1690
      %v1739 = vunpack.c.l.b16 %v1691
      %v1740 = vunpack.c.l.b16 %v1692
      %v1741 = vunpack.c.l.b16 %v1693
      %v1742 = vunpack.c.l.b16 %v1694
      %v1743 = vunpack.c.l.b16 %v1695
      %v1744 = vunpack.c.l.b16 %v1696
      %v1745 = vpack.c.b16 %v1722, %v1721
      %v1746 = vpack.c.b16 %v1723, %v1723
      %v1747 = vpack.c.b16 %v1725, %v1724
      %v1748 = vpack.c.b16 %v1726, %v1726
      %v1749 = vpack.c.b16 %v1728, %v1727
      %v1750 = vpack.c.b16 %v1729, %v1729
      %v1751 = vpack.c.b16 %v1731, %v1730
      %v1752 = vpack.c.b16 %v1732, %v1732
      %v1753 = vpack.c.b16 %v1734, %v1733
      %v1754 = vpack.c.b16 %v1735, %v1735
      %v1755 = vpack.c.b16 %v1737, %v1736
      %v1756 = vpack.c.b16 %v1738, %v1738
      %v1757 = vpack.c.b16 %v1740, %v1739
      %v1758 = vpack.c.b16 %v1741, %v1741
      %v1759 = vpack.c.b16 %v1743, %v1742
      %v1760 = vpack.c.b16 %v1744, %v1744
      %v1762 = vshrl.u32 %v1745, 16
      %v1764 = vrot.slane %v1762, 3
      %v1765 = vshll.u32 %v1745, 16
      %v1767 = vrot.slane %v1765, 4
      %v1768 = vor.u32 %v1764, %v1767
      %v1770 = vshrl.u32 %v1746, 16
      %v1772 = vrot.slane %v1770, 3
      %v1773 = vshll.u32 %v1746, 16
      %v1775 = vrot.slane %v1773, 4
      %v1776 = vor.u32 %v1772, %v1775
      %v1777 = vsel %vm734, %v1768, %v1776
      %v1779 = vshrl.u32 %v1747, 16
      %v1781 = vrot.slane %v1779, 3
      %v1782 = vshll.u32 %v1747, 16
      %v1784 = vrot.slane %v1782, 4
      %v1785 = vor.u32 %v1781, %v1784
      %v1787 = vshrl.u32 %v1748, 16
      %v1789 = vrot.slane %v1787, 3
      %v1790 = vshll.u32 %v1748, 16
      %v1792 = vrot.slane %v1790, 4
      %v1793 = vor.u32 %v1789, %v1792
      %v1794 = vsel %vm734, %v1785, %v1793
      %v1796 = vshrl.u32 %v1749, 16
      %v1798 = vrot.slane %v1796, 3
      %v1799 = vshll.u32 %v1749, 16
      %v1801 = vrot.slane %v1799, 4
      %v1802 = vor.u32 %v1798, %v1801
      %v1804 = vshrl.u32 %v1750, 16
      %v1806 = vrot.slane %v1804, 3
      %v1807 = vshll.u32 %v1750, 16
      %v1809 = vrot.slane %v1807, 4
      %v1810 = vor.u32 %v1806, %v1809
      %v1811 = vsel %vm734, %v1802, %v1810
      %v1813 = vshrl.u32 %v1751, 16
      %v1815 = vrot.slane %v1813, 3
      %v1816 = vshll.u32 %v1751, 16
      %v1818 = vrot.slane %v1816, 4
      %v1819 = vor.u32 %v1815, %v1818
      %v1821 = vshrl.u32 %v1752, 16
      %v1823 = vrot.slane %v1821, 3
      %v1824 = vshll.u32 %v1752, 16
      %v1826 = vrot.slane %v1824, 4
      %v1827 = vor.u32 %v1823, %v1826
      %v1828 = vsel %vm734, %v1819, %v1827
      %v1830 = vshrl.u32 %v1753, 16
      %v1832 = vrot.slane %v1830, 3
      %v1833 = vshll.u32 %v1753, 16
      %v1835 = vrot.slane %v1833, 4
      %v1836 = vor.u32 %v1832, %v1835
      %v1838 = vshrl.u32 %v1754, 16
      %v1840 = vrot.slane %v1838, 3
      %v1841 = vshll.u32 %v1754, 16
      %v1843 = vrot.slane %v1841, 4
      %v1844 = vor.u32 %v1840, %v1843
      %v1845 = vsel %vm734, %v1836, %v1844
      %v1847 = vshrl.u32 %v1755, 16
      %v1849 = vrot.slane %v1847, 3
      %v1850 = vshll.u32 %v1755, 16
      %v1852 = vrot.slane %v1850, 4
      %v1853 = vor.u32 %v1849, %v1852
      %v1855 = vshrl.u32 %v1756, 16
      %v1857 = vrot.slane %v1855, 3
      %v1858 = vshll.u32 %v1756, 16
      %v1860 = vrot.slane %v1858, 4
      %v1861 = vor.u32 %v1857, %v1860
      %v1862 = vsel %vm734, %v1853, %v1861
      %v1864 = vshrl.u32 %v1757, 16
      %v1866 = vrot.slane %v1864, 3
      %v1867 = vshll.u32 %v1757, 16
      %v1869 = vrot.slane %v1867, 4
      %v1870 = vor.u32 %v1866, %v1869
      %v1872 = vshrl.u32 %v1758, 16
      %v1874 = vrot.slane %v1872, 3
      %v1875 = vshll.u32 %v1758, 16
      %v1877 = vrot.slane %v1875, 4
      %v1878 = vor.u32 %v1874, %v1877
      %v1879 = vsel %vm734, %v1870, %v1878
      %v1881 = vshrl.u32 %v1759, 16
      %v1883 = vrot.slane %v1881, 3
      %v1884 = vshll.u32 %v1759, 16
      %v1886 = vrot.slane %v1884, 4
      %v1887 = vor.u32 %v1883, %v1886
      %v1889 = vshrl.u32 %v1760, 16
      %v1891 = vrot.slane %v1889, 3
      %v1892 = vshll.u32 %v1760, 16
      %v1894 = vrot.slane %v1892, 4
      %v1895 = vor.u32 %v1891, %v1894
      %v1896 = vsel %vm734, %v1887, %v1895
      %1905 = vst [vmem:[#allocation3 + $0x30] sm:$0xff] %v1777
      %1906 = vst [vmem:[#allocation3 + $0x78] sm:$0xff] %v1794
      %1907 = vst [vmem:[#allocation3 + $0xc0] sm:$0xff] %v1811
      %1908 = vst [vmem:[#allocation3 + $0x108] sm:$0xff] %v1828
      %1909 = vst [vmem:[#allocation3 + $0x150] sm:$0xff] %v1845
      %1910 = vst [vmem:[#allocation3 + $0x198] sm:$0xff] %v1862
      %1911 = vst [vmem:[#allocation3 + $0x1e0] sm:$0xff] %v1879
      %1912 = vst [vmem:[#allocation3 + $0x228] sm:$0xff] %v1896
      %v1913 = vld [vmem:[%s1672 + $0x8] sm:$0xf]
      %v1914 = vld [vmem:[%s1672 + $0xc] sm:$0xf]
      %v1915 = vld [vmem:[%s1672 + $0x1c] sm:$0xf]
      %v1916 = vld [vmem:[%s1672 + $0x20] sm:$0xf]
      %v1917 = vld [vmem:[%s1672 + $0x30] sm:$0xf]
      %v1918 = vld [vmem:[%s1672 + $0x34] sm:$0xf]
      %v1919 = vld [vmem:[%s1672 + $0x44] sm:$0xf]
      %v1920 = vld [vmem:[%s1672 + $0x48] sm:$0xf]
      %v1921 = vld [vmem:[%s1672 + $0x58] sm:$0xf]
      %v1922 = vld [vmem:[%s1672 + $0x5c] sm:$0xf]
      %v1923 = vld [vmem:[%s1672 + $0x6c] sm:$0xf]
      %v1924 = vld [vmem:[%s1672 + $0x70] sm:$0xf]
      %v1925 = vld [vmem:[%s1672 + $0x80] sm:$0xf]
      %v1926 = vld [vmem:[%s1672 + $0x84] sm:$0xf]
      %v1927 = vld [vmem:[%s1672 + $0x94] sm:$0xf]
      %v1928 = vld [vmem:[%s1672 + $0x98] sm:$0xf]
      %v1945 = vunpack.c.l.b16 %v1913
      %v1946 = vunpack.c.l.b16 %v1914
      %v1947 = vunpack.c.l.b16 %v1915
      %v1948 = vunpack.c.l.b16 %v1916
      %v1949 = vunpack.c.l.b16 %v1917
      %v1950 = vunpack.c.l.b16 %v1918
      %v1951 = vunpack.c.l.b16 %v1919
      %v1952 = vunpack.c.l.b16 %v1920
      %v1953 = vunpack.c.l.b16 %v1921
      %v1954 = vunpack.c.l.b16 %v1922
      %v1955 = vunpack.c.l.b16 %v1923
      %v1956 = vunpack.c.l.b16 %v1924
      %v1957 = vunpack.c.l.b16 %v1925
      %v1958 = vunpack.c.l.b16 %v1926
      %v1959 = vunpack.c.l.b16 %v1927
      %v1960 = vunpack.c.l.b16 %v1928
      %v1961 = vpack.c.b16 %v1946, %v1945
      %v1962 = vpack.c.b16 %v1948, %v1947
      %v1963 = vpack.c.b16 %v1950, %v1949
      %v1964 = vpack.c.b16 %v1952, %v1951
      %v1965 = vpack.c.b16 %v1954, %v1953
      %v1966 = vpack.c.b16 %v1956, %v1955
      %v1967 = vpack.c.b16 %v1958, %v1957
      %v1968 = vpack.c.b16 %v1960, %v1959
      %1977 = vst [vmem:[#allocation3 + $0x38] sm:$0xff] %v1961
      %1978 = vst [vmem:[#allocation3 + $0x80] sm:$0xff] %v1962
      %1979 = vst [vmem:[#allocation3 + $0xc8] sm:$0xff] %v1963
      %1980 = vst [vmem:[#allocation3 + $0x110] sm:$0xff] %v1964
      %1981 = vst [vmem:[#allocation3 + $0x158] sm:$0xff] %v1965
      %1982 = vst [vmem:[#allocation3 + $0x1a0] sm:$0xff] %v1966
      %1983 = vst [vmem:[#allocation3 + $0x1e8] sm:$0xff] %v1967
      %1984 = vst [vmem:[#allocation3 + $0x230] sm:$0xff] %v1968
      %v1985 = vld [vmem:[%s1672 + $0x8] sm:$0xf]
      %v1986 = vld [vmem:[%s1672 + $0xc] sm:$0xf]
      %v1987 = vld [vmem:[%s1672 + $0x10] sm:$0x1]
      %v1988 = vld [vmem:[%s1672 + $0x1c] sm:$0xf]
      %v1989 = vld [vmem:[%s1672 + $0x20] sm:$0xf]
      %v1990 = vld [vmem:[%s1672 + $0x24] sm:$0x1]
      %v1991 = vld [vmem:[%s1672 + $0x30] sm:$0xf]
      %v1992 = vld [vmem:[%s1672 + $0x34] sm:$0xf]
      %v1993 = vld [vmem:[%s1672 + $0x38] sm:$0x1]
      %v1994 = vld [vmem:[%s1672 + $0x44] sm:$0xf]
      %v1995 = vld [vmem:[%s1672 + $0x48] sm:$0xf]
      %v1996 = vld [vmem:[%s1672 + $0x4c] sm:$0x1]
      %v1997 = vld [vmem:[%s1672 + $0x58] sm:$0xf]
      %v1998 = vld [vmem:[%s1672 + $0x5c] sm:$0xf]
      %v1999 = vld [vmem:[%s1672 + $0x60] sm:$0x1]
      %v2000 = vld [vmem:[%s1672 + $0x6c] sm:$0xf]
      %v2001 = vld [vmem:[%s1672 + $0x70] sm:$0xf]
      %v2002 = vld [vmem:[%s1672 + $0x74] sm:$0x1]
      %v2003 = vld [vmem:[%s1672 + $0x80] sm:$0xf]
      %v2004 = vld [vmem:[%s1672 + $0x84] sm:$0xf]
      %v2005 = vld [vmem:[%s1672 + $0x88] sm:$0x1]
      %v2006 = vld [vmem:[%s1672 + $0x94] sm:$0xf]
      %v2007 = vld [vmem:[%s1672 + $0x98] sm:$0xf]
      %v2008 = vld [vmem:[%s1672 + $0x9c] sm:$0x1]
      %v2033 = vunpack.c.l.b16 %v1985
      %v2034 = vunpack.c.l.b16 %v1986
      %v2035 = vunpack.c.l.b16 %v1987
      %v2036 = vunpack.c.l.b16 %v1988
      %v2037 = vunpack.c.l.b16 %v1989
      %v2038 = vunpack.c.l.b16 %v1990
      %v2039 = vunpack.c.l.b16 %v1991
      %v2040 = vunpack.c.l.b16 %v1992
      %v2041 = vunpack.c.l.b16 %v1993
      %v2042 = vunpack.c.l.b16 %v1994
      %v2043 = vunpack.c.l.b16 %v1995
      %v2044 = vunpack.c.l.b16 %v1996
      %v2045 = vunpack.c.l.b16 %v1997
      %v2046 = vunpack.c.l.b16 %v1998
      %v2047 = vunpack.c.l.b16 %v1999
      %v2048 = vunpack.c.l.b16 %v2000
      %v2049 = vunpack.c.l.b16 %v2001
      %v2050 = vunpack.c.l.b16 %v2002
      %v2051 = vunpack.c.l.b16 %v2003
      %v2052 = vunpack.c.l.b16 %v2004
      %v2053 = vunpack.c.l.b16 %v2005
      %v2054 = vunpack.c.l.b16 %v2006
      %v2055 = vunpack.c.l.b16 %v2007
      %v2056 = vunpack.c.l.b16 %v2008
      %v2057 = vpack.c.b16 %v2034, %v2033
      %v2058 = vpack.c.b16 %v2035, %v2035
      %v2059 = vpack.c.b16 %v2037, %v2036
      %v2060 = vpack.c.b16 %v2038, %v2038
      %v2061 = vpack.c.b16 %v2040, %v2039
      %v2062 = vpack.c.b16 %v2041, %v2041
      %v2063 = vpack.c.b16 %v2043, %v2042
      %v2064 = vpack.c.b16 %v2044, %v2044
      %v2065 = vpack.c.b16 %v2046, %v2045
      %v2066 = vpack.c.b16 %v2047, %v2047
      %v2067 = vpack.c.b16 %v2049, %v2048
      %v2068 = vpack.c.b16 %v2050, %v2050
      %v2069 = vpack.c.b16 %v2052, %v2051
      %v2070 = vpack.c.b16 %v2053, %v2053
      %v2071 = vpack.c.b16 %v2055, %v2054
      %v2072 = vpack.c.b16 %v2056, %v2056
      %v2074 = vshrl.u32 %v2057, 16
      %v2076 = vshll.u32 %v2057, 16
      %v2078 = vrot.slane %v2076, 1
      %v2079 = vor.u32 %v2074, %v2078
      %v2081 = vshll.u32 %v2058, 16
      %v2083 = vrot.slane %v2081, 1
      %v2084 = vsel %vm1047, %v2079, %v2083
      %v2086 = vshrl.u32 %v2059, 16
      %v2088 = vshll.u32 %v2059, 16
      %v2090 = vrot.slane %v2088, 1
      %v2091 = vor.u32 %v2086, %v2090
      %v2093 = vshll.u32 %v2060, 16
      %v2095 = vrot.slane %v2093, 1
      %v2096 = vsel %vm1047, %v2091, %v2095
      %v2098 = vshrl.u32 %v2061, 16
      %v2100 = vshll.u32 %v2061, 16
      %v2102 = vrot.slane %v2100, 1
      %v2103 = vor.u32 %v2098, %v2102
      %v2105 = vshll.u32 %v2062, 16
      %v2107 = vrot.slane %v2105, 1
      %v2108 = vsel %vm1047, %v2103, %v2107
      %v2110 = vshrl.u32 %v2063, 16
      %v2112 = vshll.u32 %v2063, 16
      %v2114 = vrot.slane %v2112, 1
      %v2115 = vor.u32 %v2110, %v2114
      %v2117 = vshll.u32 %v2064, 16
      %v2119 = vrot.slane %v2117, 1
      %v2120 = vsel %vm1047, %v2115, %v2119
      %v2122 = vshrl.u32 %v2065, 16
      %v2124 = vshll.u32 %v2065, 16
      %v2126 = vrot.slane %v2124, 1
      %v2127 = vor.u32 %v2122, %v2126
      %v2129 = vshll.u32 %v2066, 16
      %v2131 = vrot.slane %v2129, 1
      %v2132 = vsel %vm1047, %v2127, %v2131
      %v2134 = vshrl.u32 %v2067, 16
      %v2136 = vshll.u32 %v2067, 16
      %v2138 = vrot.slane %v2136, 1
      %v2139 = vor.u32 %v2134, %v2138
      %v2141 = vshll.u32 %v2068, 16
      %v2143 = vrot.slane %v2141, 1
      %v2144 = vsel %vm1047, %v2139, %v2143
      %v2146 = vshrl.u32 %v2069, 16
      %v2148 = vshll.u32 %v2069, 16
      %v2150 = vrot.slane %v2148, 1
      %v2151 = vor.u32 %v2146, %v2150
      %v2153 = vshll.u32 %v2070, 16
      %v2155 = vrot.slane %v2153, 1
      %v2156 = vsel %vm1047, %v2151, %v2155
      %v2158 = vshrl.u32 %v2071, 16
      %v2160 = vshll.u32 %v2071, 16
      %v2162 = vrot.slane %v2160, 1
      %v2163 = vor.u32 %v2158, %v2162
      %v2165 = vshll.u32 %v2072, 16
      %v2167 = vrot.slane %v2165, 1
      %v2168 = vsel %vm1047, %v2163, %v2167
      %2177 = vst [vmem:[#allocation3 + $0x40] sm:$0xff] %v2084
      %2178 = vst [vmem:[#allocation3 + $0x88] sm:$0xff] %v2096
      %2179 = vst [vmem:[#allocation3 + $0xd0] sm:$0xff] %v2108
      %2180 = vst [vmem:[#allocation3 + $0x118] sm:$0xff] %v2120
      %2181 = vst [vmem:[#allocation3 + $0x160] sm:$0xff] %v2132
      %2182 = vst [vmem:[#allocation3 + $0x1a8] sm:$0xff] %v2144
      %2183 = vst [vmem:[#allocation3 + $0x1f0] sm:$0xff] %v2156
      %2184 = vst [vmem:[#allocation3 + $0x238] sm:$0xff] %v2168
      %v2185 = vld [vmem:[#allocation3] sm:$0xff]
      %v2186 = vld [vmem:[#allocation3 + $0x8] sm:$0xff]
      %v2187 = vld [vmem:[#allocation3 + $0x10] sm:$0xff]
      %v2188 = vld [vmem:[#allocation3 + $0x18] sm:$0xff]
      %v2189 = vld [vmem:[#allocation3 + $0x20] sm:$0xff]
      %v2190 = vld [vmem:[#allocation3 + $0x28] sm:$0xff]
      %v2191 = vld [vmem:[#allocation3 + $0x30] sm:$0xff]
      %v2192 = vld [vmem:[#allocation3 + $0x38] sm:$0xff]
      %v2193 = vld [vmem:[#allocation3 + $0x40] sm:$0xff]
      %v2194 = vld [vmem:[#allocation3 + $0x48] sm:$0xff]
      %v2195 = vld [vmem:[#allocation3 + $0x50] sm:$0xff]
      %v2196 = vld [vmem:[#allocation3 + $0x58] sm:$0xff]
      %v2197 = vld [vmem:[#allocation3 + $0x60] sm:$0xff]
      %v2198 = vld [vmem:[#allocation3 + $0x68] sm:$0xff]
      %v2199 = vld [vmem:[#allocation3 + $0x70] sm:$0xff]
      %v2200 = vld [vmem:[#allocation3 + $0x78] sm:$0xff]
      %v2201 = vld [vmem:[#allocation3 + $0x80] sm:$0xff]
      %v2202 = vld [vmem:[#allocation3 + $0x88] sm:$0xff]
      %v2203 = vld [vmem:[#allocation3 + $0x90] sm:$0xff]
      %v2204 = vld [vmem:[#allocation3 + $0x98] sm:$0xff]
      %v2205 = vld [vmem:[#allocation3 + $0xa0] sm:$0xff]
      %v2206 = vld [vmem:[#allocation3 + $0xa8] sm:$0xff]
      %v2207 = vld [vmem:[#allocation3 + $0xb0] sm:$0xff]
      %v2208 = vld [vmem:[#allocation3 + $0xb8] sm:$0xff]
      %v2209 = vld [vmem:[#allocation3 + $0xc0] sm:$0xff]
      %v2210 = vld [vmem:[#allocation3 + $0xc8] sm:$0xff]
      %v2211 = vld [vmem:[#allocation3 + $0xd0] sm:$0xff]
      %v2212 = vld [vmem:[#allocation3 + $0xd8] sm:$0xff]
      %v2213 = vld [vmem:[#allocation3 + $0xe0] sm:$0xff]
      %v2214 = vld [vmem:[#allocation3 + $0xe8] sm:$0xff]
      %v2215 = vld [vmem:[#allocation3 + $0xf0] sm:$0xff]
      %v2216 = vld [vmem:[#allocation3 + $0xf8] sm:$0xff]
      %v2217 = vld [vmem:[#allocation3 + $0x100] sm:$0xff]
      %v2218 = vld [vmem:[#allocation3 + $0x108] sm:$0xff]
      %v2219 = vld [vmem:[#allocation3 + $0x110] sm:$0xff]
      %v2220 = vld [vmem:[#allocation3 + $0x118] sm:$0xff]
      %v2221 = vld [vmem:[#allocation3 + $0x120] sm:$0xff]
      %v2222 = vld [vmem:[#allocation3 + $0x128] sm:$0xff]
      %v2223 = vld [vmem:[#allocation3 + $0x130] sm:$0xff]
      %v2224 = vld [vmem:[#allocation3 + $0x138] sm:$0xff]
      %v2225 = vld [vmem:[#allocation3 + $0x140] sm:$0xff]
      %v2226 = vld [vmem:[#allocation3 + $0x148] sm:$0xff]
      %v2227 = vld [vmem:[#allocation3 + $0x150] sm:$0xff]
      %v2228 = vld [vmem:[#allocation3 + $0x158] sm:$0xff]
      %v2229 = vld [vmem:[#allocation3 + $0x160] sm:$0xff]
      %v2230 = vld [vmem:[#allocation3 + $0x168] sm:$0xff]
      %v2231 = vld [vmem:[#allocation3 + $0x170] sm:$0xff]
      %v2232 = vld [vmem:[#allocation3 + $0x178] sm:$0xff]
      %v2233 = vld [vmem:[#allocation3 + $0x180] sm:$0xff]
      %v2234 = vld [vmem:[#allocation3 + $0x188] sm:$0xff]
      %v2235 = vld [vmem:[#allocation3 + $0x190] sm:$0xff]
      %v2236 = vld [vmem:[#allocation3 + $0x198] sm:$0xff]
      %v2237 = vld [vmem:[#allocation3 + $0x1a0] sm:$0xff]
      %v2238 = vld [vmem:[#allocation3 + $0x1a8] sm:$0xff]
      %v2239 = vld [vmem:[#allocation3 + $0x1b0] sm:$0xff]
      %v2240 = vld [vmem:[#allocation3 + $0x1b8] sm:$0xff]
      %v2241 = vld [vmem:[#allocation3 + $0x1c0] sm:$0xff]
      %v2242 = vld [vmem:[#allocation3 + $0x1c8] sm:$0xff]
      %v2243 = vld [vmem:[#allocation3 + $0x1d0] sm:$0xff]
      %v2244 = vld [vmem:[#allocation3 + $0x1d8] sm:$0xff]
      %v2245 = vld [vmem:[#allocation3 + $0x1e0] sm:$0xff]
      %v2246 = vld [vmem:[#allocation3 + $0x1e8] sm:$0xff]
      %v2247 = vld [vmem:[#allocation3 + $0x1f0] sm:$0xff]
      %v2248 = vld [vmem:[#allocation3 + $0x1f8] sm:$0xff]
      %v2249 = vld [vmem:[#allocation3 + $0x200] sm:$0xff]
      %v2250 = vld [vmem:[#allocation3 + $0x208] sm:$0xff]
      %v2251 = vld [vmem:[#allocation3 + $0x210] sm:$0xff]
      %v2252 = vld [vmem:[#allocation3 + $0x218] sm:$0xff]
      %v2253 = vld [vmem:[#allocation3 + $0x220] sm:$0xff]
      %v2254 = vld [vmem:[#allocation3 + $0x228] sm:$0xff]
      %v2255 = vld [vmem:[#allocation3 + $0x230] sm:$0xff]
      %v2256 = vld [vmem:[#allocation3 + $0x238] sm:$0xff]
      %v2257 = vld [vmem:[%s4] sm:$0xf]
      %v2258 = vld [vmem:[%s4 + $0x4] sm:$0xf]
      %v2259 = vld [vmem:[%s4 + $0x8] sm:$0xf]
      %v2260 = vld [vmem:[%s4 + $0xc] sm:$0xf]
      %v2261 = vld [vmem:[%s4 + $0x10] sm:$0xf]
      %v2262 = vld [vmem:[%s4 + $0x14] sm:$0xf]
      %v2263 = vld [vmem:[%s4 + $0x18] sm:$0xf]
      %v2264 = vld [vmem:[%s4 + $0x1c] sm:$0xf]
      %v2265 = vld [vmem:[%s4 + $0x20] sm:$0xf]
      %v2266 = vld [vmem:[%s4 + $0x24] sm:$0xf]
      %v2267 = vld [vmem:[%s4 + $0x28] sm:$0xf]
      %v2268 = vld [vmem:[%s4 + $0x2c] sm:$0xf]
      %v2269 = vld [vmem:[%s4 + $0x30] sm:$0xf]
      %v2270 = vld [vmem:[%s4 + $0x34] sm:$0xf]
      %v2271 = vld [vmem:[%s4 + $0x38] sm:$0xf]
      %v2272 = vld [vmem:[%s4 + $0x3c] sm:$0xf]
      %v2273 = vld [vmem:[%s4 + $0x40] sm:$0xf]
      %v2274 = vld [vmem:[%s4 + $0x44] sm:$0xf]
      %v2275 = vld [vmem:[%s4 + $0x48] sm:$0xf]
      %v2276 = vld [vmem:[%s4 + $0x4c] sm:$0xf]
      %v2277 = vld [vmem:[%s4 + $0x50] sm:$0xf]
      %v2278 = vld [vmem:[%s4 + $0x54] sm:$0xf]
      %v2279 = vld [vmem:[%s4 + $0x58] sm:$0xf]
      %v2280 = vld [vmem:[%s4 + $0x5c] sm:$0xf]
      %v2281 = vld [vmem:[%s4 + $0x60] sm:$0xf]
      %v2282 = vld [vmem:[%s4 + $0x64] sm:$0xf]
      %v2283 = vld [vmem:[%s4 + $0x68] sm:$0xf]
      %v2284 = vld [vmem:[%s4 + $0x6c] sm:$0xf]
      %v2285 = vld [vmem:[%s4 + $0x70] sm:$0xf]
      %v2286 = vld [vmem:[%s4 + $0x74] sm:$0xf]
      %v2287 = vld [vmem:[%s4 + $0x78] sm:$0xf]
      %v2288 = vld [vmem:[%s4 + $0x7c] sm:$0xf]
      %v2289 = vld [vmem:[%s4 + $0x80] sm:$0xf]
      %v2290 = vld [vmem:[%s4 + $0x84] sm:$0xf]
      %v2291 = vld [vmem:[%s4 + $0x88] sm:$0xf]
      %v2292 = vld [vmem:[%s4 + $0x8c] sm:$0xf]
      %v2293 = vld [vmem:[%s4 + $0x90] sm:$0xf]
      %v2294 = vld [vmem:[%s4 + $0x94] sm:$0xf]
      %v2295 = vld [vmem:[%s4 + $0x98] sm:$0xf]
      %v2296 = vld [vmem:[%s4 + $0x9c] sm:$0xf]
      %v2297 = vld [vmem:[%s4 + $0xa0] sm:$0xf]
      %v2298 = vld [vmem:[%s4 + $0xa4] sm:$0xf]
      %v2299 = vld [vmem:[%s4 + $0xa8] sm:$0xf]
      %v2300 = vld [vmem:[%s4 + $0xac] sm:$0xf]
      %v2301 = vld [vmem:[%s4 + $0xb0] sm:$0xf]
      %v2302 = vld [vmem:[%s4 + $0xb4] sm:$0xf]
      %v2303 = vld [vmem:[%s4 + $0xb8] sm:$0xf]
      %v2304 = vld [vmem:[%s4 + $0xbc] sm:$0xf]
      %v2305 = vld [vmem:[%s4 + $0xc0] sm:$0xf]
      %v2306 = vld [vmem:[%s4 + $0xc4] sm:$0xf]
      %v2307 = vld [vmem:[%s4 + $0xc8] sm:$0xf]
      %v2308 = vld [vmem:[%s4 + $0xcc] sm:$0xf]
      %v2309 = vld [vmem:[%s4 + $0xd0] sm:$0xf]
      %v2310 = vld [vmem:[%s4 + $0xd4] sm:$0xf]
      %v2311 = vld [vmem:[%s4 + $0xd8] sm:$0xf]
      %v2312 = vld [vmem:[%s4 + $0xdc] sm:$0xf]
      %v2313 = vld [vmem:[%s4 + $0xe0] sm:$0xf]
      %v2314 = vld [vmem:[%s4 + $0xe4] sm:$0xf]
      %v2315 = vld [vmem:[%s4 + $0xe8] sm:$0xf]
      %v2316 = vld [vmem:[%s4 + $0xec] sm:$0xf]
      %v2317 = vld [vmem:[%s4 + $0xf0] sm:$0xf]
      %v2318 = vld [vmem:[%s4 + $0xf4] sm:$0xf]
      %v2319 = vld [vmem:[%s4 + $0xf8] sm:$0xf]
      %v2320 = vld [vmem:[%s4 + $0xfc] sm:$0xf]
      %v2321 = vld [vmem:[%s4 + $0x100] sm:$0xf]
      %v2322 = vld [vmem:[%s4 + $0x104] sm:$0xf]
      %v2323 = vld [vmem:[%s4 + $0x108] sm:$0xf]
      %v2324 = vld [vmem:[%s4 + $0x10c] sm:$0xf]
      %v2325 = vld [vmem:[%s4 + $0x110] sm:$0xf]
      %v2326 = vld [vmem:[%s4 + $0x114] sm:$0xf]
      %v2327 = vld [vmem:[%s4 + $0x118] sm:$0xf]
      %v2328 = vld [vmem:[%s4 + $0x11c] sm:$0xf]
      %v2329 = vld [vmem:[%s4 + $0x120] sm:$0xf]
      %v2330 = vld [vmem:[%s4 + $0x124] sm:$0xf]
      %v2331 = vld [vmem:[%s4 + $0x128] sm:$0xf]
      %v2332 = vld [vmem:[%s4 + $0x12c] sm:$0xf]
      %v2333 = vld [vmem:[%s4 + $0x130] sm:$0xf]
      %v2334 = vld [vmem:[%s4 + $0x134] sm:$0xf]
      %v2335 = vld [vmem:[%s4 + $0x138] sm:$0xf]
      %v2336 = vld [vmem:[%s4 + $0x13c] sm:$0xf]
      %v2337 = vld [vmem:[%s4 + $0x140] sm:$0xf]
      %v2338 = vld [vmem:[%s4 + $0x144] sm:$0xf]
      %v2339 = vld [vmem:[%s4 + $0x148] sm:$0xf]
      %v2340 = vld [vmem:[%s4 + $0x14c] sm:$0xf]
      %v2341 = vld [vmem:[%s4 + $0x150] sm:$0xf]
      %v2342 = vld [vmem:[%s4 + $0x154] sm:$0xf]
      %v2343 = vld [vmem:[%s4 + $0x158] sm:$0xf]
      %v2344 = vld [vmem:[%s4 + $0x15c] sm:$0xf]
      %v2345 = vld [vmem:[%s4 + $0x160] sm:$0xf]
      %v2346 = vld [vmem:[%s4 + $0x164] sm:$0xf]
      %v2347 = vld [vmem:[%s4 + $0x168] sm:$0xf]
      %v2348 = vld [vmem:[%s4 + $0x16c] sm:$0xf]
      %v2349 = vld [vmem:[%s4 + $0x170] sm:$0xf]
      %v2350 = vld [vmem:[%s4 + $0x174] sm:$0xf]
      %v2351 = vld [vmem:[%s4 + $0x178] sm:$0xf]
      %v2352 = vld [vmem:[%s4 + $0x17c] sm:$0xf]
      %v2353 = vld [vmem:[%s4 + $0x180] sm:$0xf]
      %v2354 = vld [vmem:[%s4 + $0x184] sm:$0xf]
      %v2355 = vld [vmem:[%s4 + $0x188] sm:$0xf]
      %v2356 = vld [vmem:[%s4 + $0x18c] sm:$0xf]
      %v2357 = vld [vmem:[%s4 + $0x190] sm:$0xf]
      %v2358 = vld [vmem:[%s4 + $0x194] sm:$0xf]
      %v2359 = vld [vmem:[%s4 + $0x198] sm:$0xf]
      %v2360 = vld [vmem:[%s4 + $0x19c] sm:$0xf]
      %v2361 = vld [vmem:[%s4 + $0x1a0] sm:$0xf]
      %v2362 = vld [vmem:[%s4 + $0x1a4] sm:$0xf]
      %v2363 = vld [vmem:[%s4 + $0x1a8] sm:$0xf]
      %v2364 = vld [vmem:[%s4 + $0x1ac] sm:$0xf]
      %v2365 = vld [vmem:[%s4 + $0x1b0] sm:$0xf]
      %v2366 = vld [vmem:[%s4 + $0x1b4] sm:$0xf]
      %v2367 = vld [vmem:[%s4 + $0x1b8] sm:$0xf]
      %v2368 = vld [vmem:[%s4 + $0x1bc] sm:$0xf]
      %v2369 = vld [vmem:[%s4 + $0x1c0] sm:$0xf]
      %v2370 = vld [vmem:[%s4 + $0x1c4] sm:$0xf]
      %v2371 = vld [vmem:[%s4 + $0x1c8] sm:$0xf]
      %v2372 = vld [vmem:[%s4 + $0x1cc] sm:$0xf]
      %v2373 = vld [vmem:[%s4 + $0x1d0] sm:$0xf]
      %v2374 = vld [vmem:[%s4 + $0x1d4] sm:$0xf]
      %v2375 = vld [vmem:[%s4 + $0x1d8] sm:$0xf]
      %v2376 = vld [vmem:[%s4 + $0x1dc] sm:$0xf]
      %v2377 = vld [vmem:[%s4 + $0x1e0] sm:$0xf]
      %v2378 = vld [vmem:[%s4 + $0x1e4] sm:$0xf]
      %v2379 = vld [vmem:[%s4 + $0x1e8] sm:$0xf]
      %v2380 = vld [vmem:[%s4 + $0x1ec] sm:$0xf]
      %v2381 = vld [vmem:[%s4 + $0x1f0] sm:$0xf]
      %v2382 = vld [vmem:[%s4 + $0x1f4] sm:$0xf]
      %v2383 = vld [vmem:[%s4 + $0x1f8] sm:$0xf]
      %v2384 = vld [vmem:[%s4 + $0x1fc] sm:$0xf]
      %v2385 = vld [vmem:[%s4 + $0x200] sm:$0xf]
      %v2386 = vld [vmem:[%s4 + $0x204] sm:$0xf]
      %v2387 = vld [vmem:[%s4 + $0x208] sm:$0xf]
      %v2388 = vld [vmem:[%s4 + $0x20c] sm:$0xf]
      %v2389 = vld [vmem:[%s4 + $0x210] sm:$0xf]
      %v2390 = vld [vmem:[%s4 + $0x214] sm:$0xf]
      %v2391 = vld [vmem:[%s4 + $0x218] sm:$0xf]
      %v2392 = vld [vmem:[%s4 + $0x21c] sm:$0xf]
      %v2393 = vld [vmem:[%s4 + $0x220] sm:$0xf]
      %v2394 = vld [vmem:[%s4 + $0x224] sm:$0xf]
      %v2395 = vld [vmem:[%s4 + $0x228] sm:$0xf]
      %v2396 = vld [vmem:[%s4 + $0x22c] sm:$0xf]
      %v2397 = vld [vmem:[%s4 + $0x230] sm:$0xf]
      %v2398 = vld [vmem:[%s4 + $0x234] sm:$0xf]
      %v2399 = vld [vmem:[%s4 + $0x238] sm:$0xf]
      %v2400 = vld [vmem:[%s4 + $0x23c] sm:$0xf]
      %v2545 = vunpack.c.l.b16 %v2257
      %v2546 = vunpack.c.l.b16 %v2258
      %v2547 = vunpack.c.l.b16 %v2259
      %v2548 = vunpack.c.l.b16 %v2260
      %v2549 = vunpack.c.l.b16 %v2261
      %v2550 = vunpack.c.l.b16 %v2262
      %v2551 = vunpack.c.l.b16 %v2263
      %v2552 = vunpack.c.l.b16 %v2264
      %v2553 = vunpack.c.l.b16 %v2265
      %v2554 = vunpack.c.l.b16 %v2266
      %v2555 = vunpack.c.l.b16 %v2267
      %v2556 = vunpack.c.l.b16 %v2268
      %v2557 = vunpack.c.l.b16 %v2269
      %v2558 = vunpack.c.l.b16 %v2270
      %v2559 = vunpack.c.l.b16 %v2271
      %v2560 = vunpack.c.l.b16 %v2272
      %v2561 = vunpack.c.l.b16 %v2273
      %v2562 = vunpack.c.l.b16 %v2274
      %v2563 = vunpack.c.l.b16 %v2275
      %v2564 = vunpack.c.l.b16 %v2276
      %v2565 = vunpack.c.l.b16 %v2277
      %v2566 = vunpack.c.l.b16 %v2278
      %v2567 = vunpack.c.l.b16 %v2279
      %v2568 = vunpack.c.l.b16 %v2280
      %v2569 = vunpack.c.l.b16 %v2281
      %v2570 = vunpack.c.l.b16 %v2282
      %v2571 = vunpack.c.l.b16 %v2283
      %v2572 = vunpack.c.l.b16 %v2284
      %v2573 = vunpack.c.l.b16 %v2285
      %v2574 = vunpack.c.l.b16 %v2286
      %v2575 = vunpack.c.l.b16 %v2287
      %v2576 = vunpack.c.l.b16 %v2288
      %v2577 = vunpack.c.l.b16 %v2289
      %v2578 = vunpack.c.l.b16 %v2290
      %v2579 = vunpack.c.l.b16 %v2291
      %v2580 = vunpack.c.l.b16 %v2292
      %v2581 = vunpack.c.l.b16 %v2293
      %v2582 = vunpack.c.l.b16 %v2294
      %v2583 = vunpack.c.l.b16 %v2295
      %v2584 = vunpack.c.l.b16 %v2296
      %v2585 = vunpack.c.l.b16 %v2297
      %v2586 = vunpack.c.l.b16 %v2298
      %v2587 = vunpack.c.l.b16 %v2299
      %v2588 = vunpack.c.l.b16 %v2300
      %v2589 = vunpack.c.l.b16 %v2301
      %v2590 = vunpack.c.l.b16 %v2302
      %v2591 = vunpack.c.l.b16 %v2303
      %v2592 = vunpack.c.l.b16 %v2304
      %v2593 = vunpack.c.l.b16 %v2305
      %v2594 = vunpack.c.l.b16 %v2306
      %v2595 = vunpack.c.l.b16 %v2307
      %v2596 = vunpack.c.l.b16 %v2308
      %v2597 = vunpack.c.l.b16 %v2309
      %v2598 = vunpack.c.l.b16 %v2310
      %v2599 = vunpack.c.l.b16 %v2311
      %v2600 = vunpack.c.l.b16 %v2312
      %v2601 = vunpack.c.l.b16 %v2313
      %v2602 = vunpack.c.l.b16 %v2314
      %v2603 = vunpack.c.l.b16 %v2315
      %v2604 = vunpack.c.l.b16 %v2316
      %v2605 = vunpack.c.l.b16 %v2317
      %v2606 = vunpack.c.l.b16 %v2318
      %v2607 = vunpack.c.l.b16 %v2319
      %v2608 = vunpack.c.l.b16 %v2320
      %v2609 = vunpack.c.l.b16 %v2321
      %v2610 = vunpack.c.l.b16 %v2322
      %v2611 = vunpack.c.l.b16 %v2323
      %v2612 = vunpack.c.l.b16 %v2324
      %v2613 = vunpack.c.l.b16 %v2325
      %v2614 = vunpack.c.l.b16 %v2326
      %v2615 = vunpack.c.l.b16 %v2327
      %v2616 = vunpack.c.l.b16 %v2328
      %v2617 = vunpack.c.l.b16 %v2329
      %v2618 = vunpack.c.l.b16 %v2330
      %v2619 = vunpack.c.l.b16 %v2331
      %v2620 = vunpack.c.l.b16 %v2332
      %v2621 = vunpack.c.l.b16 %v2333
      %v2622 = vunpack.c.l.b16 %v2334
      %v2623 = vunpack.c.l.b16 %v2335
      %v2624 = vunpack.c.l.b16 %v2336
      %v2625 = vunpack.c.l.b16 %v2337
      %v2626 = vunpack.c.l.b16 %v2338
      %v2627 = vunpack.c.l.b16 %v2339
      %v2628 = vunpack.c.l.b16 %v2340
      %v2629 = vunpack.c.l.b16 %v2341
      %v2630 = vunpack.c.l.b16 %v2342
      %v2631 = vunpack.c.l.b16 %v2343
      %v2632 = vunpack.c.l.b16 %v2344
      %v2633 = vunpack.c.l.b16 %v2345
      %v2634 = vunpack.c.l.b16 %v2346
      %v2635 = vunpack.c.l.b16 %v2347
      %v2636 = vunpack.c.l.b16 %v2348
      %v2637 = vunpack.c.l.b16 %v2349
      %v2638 = vunpack.c.l.b16 %v2350
      %v2639 = vunpack.c.l.b16 %v2351
      %v2640 = vunpack.c.l.b16 %v2352
      %v2641 = vunpack.c.l.b16 %v2353
      %v2642 = vunpack.c.l.b16 %v2354
      %v2643 = vunpack.c.l.b16 %v2355
      %v2644 = vunpack.c.l.b16 %v2356
      %v2645 = vunpack.c.l.b16 %v2357
      %v2646 = vunpack.c.l.b16 %v2358
      %v2647 = vunpack.c.l.b16 %v2359
      %v2648 = vunpack.c.l.b16 %v2360
      %v2649 = vunpack.c.l.b16 %v2361
      %v2650 = vunpack.c.l.b16 %v2362
      %v2651 = vunpack.c.l.b16 %v2363
      %v2652 = vunpack.c.l.b16 %v2364
      %v2653 = vunpack.c.l.b16 %v2365
      %v2654 = vunpack.c.l.b16 %v2366
      %v2655 = vunpack.c.l.b16 %v2367
      %v2656 = vunpack.c.l.b16 %v2368
      %v2657 = vunpack.c.l.b16 %v2369
      %v2658 = vunpack.c.l.b16 %v2370
      %v2659 = vunpack.c.l.b16 %v2371
      %v2660 = vunpack.c.l.b16 %v2372
      %v2661 = vunpack.c.l.b16 %v2373
      %v2662 = vunpack.c.l.b16 %v2374
      %v2663 = vunpack.c.l.b16 %v2375
      %v2664 = vunpack.c.l.b16 %v2376
      %v2665 = vunpack.c.l.b16 %v2377
      %v2666 = vunpack.c.l.b16 %v2378
      %v2667 = vunpack.c.l.b16 %v2379
      %v2668 = vunpack.c.l.b16 %v2380
      %v2669 = vunpack.c.l.b16 %v2381
      %v2670 = vunpack.c.l.b16 %v2382
      %v2671 = vunpack.c.l.b16 %v2383
      %v2672 = vunpack.c.l.b16 %v2384
      %v2673 = vunpack.c.l.b16 %v2385
      %v2674 = vunpack.c.l.b16 %v2386
      %v2675 = vunpack.c.l.b16 %v2387
      %v2676 = vunpack.c.l.b16 %v2388
      %v2677 = vunpack.c.l.b16 %v2389
      %v2678 = vunpack.c.l.b16 %v2390
      %v2679 = vunpack.c.l.b16 %v2391
      %v2680 = vunpack.c.l.b16 %v2392
      %v2681 = vunpack.c.l.b16 %v2393
      %v2682 = vunpack.c.l.b16 %v2394
      %v2683 = vunpack.c.l.b16 %v2395
      %v2684 = vunpack.c.l.b16 %v2396
      %v2685 = vunpack.c.l.b16 %v2397
      %v2686 = vunpack.c.l.b16 %v2398
      %v2687 = vunpack.c.l.b16 %v2399
      %v2688 = vunpack.c.l.b16 %v2400
      %v2689 = vpack.c.b16 %v2546, %v2545
      %v2690 = vpack.c.b16 %v2548, %v2547
      %v2691 = vpack.c.b16 %v2550, %v2549
      %v2692 = vpack.c.b16 %v2552, %v2551
      %v2693 = vpack.c.b16 %v2554, %v2553
      %v2694 = vpack.c.b16 %v2556, %v2555
      %v2695 = vpack.c.b16 %v2558, %v2557
      %v2696 = vpack.c.b16 %v2560, %v2559
      %v2697 = vpack.c.b16 %v2562, %v2561
      %v2698 = vpack.c.b16 %v2564, %v2563
      %v2699 = vpack.c.b16 %v2566, %v2565
      %v2700 = vpack.c.b16 %v2568, %v2567
      %v2701 = vpack.c.b16 %v2570, %v2569
      %v2702 = vpack.c.b16 %v2572, %v2571
      %v2703 = vpack.c.b16 %v2574, %v2573
      %v2704 = vpack.c.b16 %v2576, %v2575
      %v2705 = vpack.c.b16 %v2578, %v2577
      %v2706 = vpack.c.b16 %v2580, %v2579
      %v2707 = vpack.c.b16 %v2582, %v2581
      %v2708 = vpack.c.b16 %v2584, %v2583
      %v2709 = vpack.c.b16 %v2586, %v2585
      %v2710 = vpack.c.b16 %v2588, %v2587
      %v2711 = vpack.c.b16 %v2590, %v2589
      %v2712 = vpack.c.b16 %v2592, %v2591
      %v2713 = vpack.c.b16 %v2594, %v2593
      %v2714 = vpack.c.b16 %v2596, %v2595
      %v2715 = vpack.c.b16 %v2598, %v2597
      %v2716 = vpack.c.b16 %v2600, %v2599
      %v2717 = vpack.c.b16 %v2602, %v2601
      %v2718 = vpack.c.b16 %v2604, %v2603
      %v2719 = vpack.c.b16 %v2606, %v2605
      %v2720 = vpack.c.b16 %v2608, %v2607
      %v2721 = vpack.c.b16 %v2610, %v2609
      %v2722 = vpack.c.b16 %v2612, %v2611
      %v2723 = vpack.c.b16 %v2614, %v2613
      %v2724 = vpack.c.b16 %v2616, %v2615
      %v2725 = vpack.c.b16 %v2618, %v2617
      %v2726 = vpack.c.b16 %v2620, %v2619
      %v2727 = vpack.c.b16 %v2622, %v2621
      %v2728 = vpack.c.b16 %v2624, %v2623
      %v2729 = vpack.c.b16 %v2626, %v2625
      %v2730 = vpack.c.b16 %v2628, %v2627
      %v2731 = vpack.c.b16 %v2630, %v2629
      %v2732 = vpack.c.b16 %v2632, %v2631
      %v2733 = vpack.c.b16 %v2634, %v2633
      %v2734 = vpack.c.b16 %v2636, %v2635
      %v2735 = vpack.c.b16 %v2638, %v2637
      %v2736 = vpack.c.b16 %v2640, %v2639
      %v2737 = vpack.c.b16 %v2642, %v2641
      %v2738 = vpack.c.b16 %v2644, %v2643
      %v2739 = vpack.c.b16 %v2646, %v2645
      %v2740 = vpack.c.b16 %v2648, %v2647
      %v2741 = vpack.c.b16 %v2650, %v2649
      %v2742 = vpack.c.b16 %v2652, %v2651
      %v2743 = vpack.c.b16 %v2654, %v2653
      %v2744 = vpack.c.b16 %v2656, %v2655
      %v2745 = vpack.c.b16 %v2658, %v2657
      %v2746 = vpack.c.b16 %v2660, %v2659
      %v2747 = vpack.c.b16 %v2662, %v2661
      %v2748 = vpack.c.b16 %v2664, %v2663
      %v2749 = vpack.c.b16 %v2666, %v2665
      %v2750 = vpack.c.b16 %v2668, %v2667
      %v2751 = vpack.c.b16 %v2670, %v2669
      %v2752 = vpack.c.b16 %v2672, %v2671
      %v2753 = vpack.c.b16 %v2674, %v2673
      %v2754 = vpack.c.b16 %v2676, %v2675
      %v2755 = vpack.c.b16 %v2678, %v2677
      %v2756 = vpack.c.b16 %v2680, %v2679
      %v2757 = vpack.c.b16 %v2682, %v2681
      %v2758 = vpack.c.b16 %v2684, %v2683
      %v2759 = vpack.c.b16 %v2686, %v2685
      %v2760 = vpack.c.b16 %v2688, %v2687
      %2833 = vmatprep.subr.bf16.mxu0 0
      %2834 = vmatpush1.bf16.msra.mxu0 %v2689
      %2835 = vmatprep.subr.bf16.mxu0 0
      %2836 = vmatpush1.bf16.msra.mxu0 %v2690
      %2837 = vmatprep.subr.bf16.mxu0 0
      %2838 = vmatpush1.bf16.msra.mxu0 %v2691
      %2839 = vmatprep.subr.bf16.mxu0 0
      %2840 = vmatpush1.bf16.msra.mxu0 %v2692
      %2841 = vmatprep.subr.bf16.mxu0 0
      %2842 = vmatpush1.bf16.msra.mxu0 %v2693
      %2843 = vmatprep.subr.bf16.mxu0 0
      %2844 = vmatpush1.bf16.msra.mxu0 %v2694
      %2845 = vmatprep.subr.bf16.mxu0 0
      %2846 = vmatpush1.bf16.msra.mxu0 %v2695
      %2847 = vmatprep.subr.bf16.mxu0 0
      %2848 = vmatpush1.bf16.msra.mxu0 %v2696
      %2849 = vmatprep.subr.bf16.mxu0 0
      %2850 = vmatpush1.bf16.msra.mxu0 %v2697
      %2851 = vmatprep.subr.bf16.mxu0 0
      %2852 = vmatpush1.bf16.msra.mxu0 %v2698
      %2853 = vmatprep.subr.bf16.mxu0 0
      %2854 = vmatpush1.bf16.msra.mxu0 %v2699
      %2855 = vmatprep.subr.bf16.mxu0 0
      %2856 = vmatpush1.bf16.msra.mxu0 %v2700
      %2857 = vmatprep.subr.bf16.mxu0 0
      %2858 = vmatpush1.bf16.msra.mxu0 %v2701
      %2859 = vmatprep.subr.bf16.mxu0 0
      %2860 = vmatpush1.bf16.msra.mxu0 %v2702
      %2861 = vmatprep.subr.bf16.mxu0 0
      %2862 = vmatpush1.bf16.msra.mxu0 %v2703
      %2863 = vmatprep.subr.bf16.mxu0 0
      %2864 = vmatpush1.bf16.msra.mxu0 %v2704
      %2865 = vmatprep.mubr.bf16.mxu0 %v2186
      %2866 = vmatmul.mubr.bf16.gmra.mrb[0].mxu0 %v2185
      %v2867 = vpop.f32.mrb[0].mxu0
      %v2868 = vadd.f32 0.0, %v2867
      %v2869 = vpop.f32.mrb[0].mxu0
      %v2870 = vpop.f32.mrb[0].mxu0
      %v2871 = vadd.f32 0.0, %v2870
      %v2872 = vpop.f32.mrb[0].mxu0
      %2873 = vmatprep.mubr.bf16.mxu0 %v2195
      %2874 = vmatmul.mubr.bf16.gmra.mrb[0].mxu0 %v2194
      %v2875 = vpop.f32.mrb[0].mxu0
      %v2876 = vadd.f32 0.0, %v2875
      %v2877 = vpop.f32.mrb[0].mxu0
      %v2878 = vpop.f32.mrb[0].mxu0
      %v2879 = vadd.f32 0.0, %v2878
      %v2880 = vpop.f32.mrb[0].mxu0
      %2881 = vmatprep.mubr.bf16.mxu0 %v2204
      %2882 = vmatmul.mubr.bf16.gmra.mrb[0].mxu0 %v2203
      %v2883 = vpop.f32.mrb[0].mxu0
      %v2884 = vadd.f32 0.0, %v2883
      %v2885 = vpop.f32.mrb[0].mxu0
      %v2886 = vpop.f32.mrb[0].mxu0
      %v2887 = vadd.f32 0.0, %v2886
      %v2888 = vpop.f32.mrb[0].mxu0
      %2889 = vmatprep.mubr.bf16.mxu0 %v2213
      %2890 = vmatmul.mubr.bf16.gmra.mrb[0].mxu0 %v2212
      %v2891 = vpop.f32.mrb[0].mxu0
      %v2892 = vadd.f32 0.0, %v2891
      %v2893 = vpop.f32.mrb[0].mxu0
      %v2894 = vpop.f32.mrb[0].mxu0
      %v2895 = vadd.f32 0.0, %v2894
      %v2896 = vpop.f32.mrb[0].mxu0
      %2897 = vmatprep.mubr.bf16.mxu0 %v2222
      %2898 = vmatmul.mubr.bf16.gmra.mrb[0].mxu0 %v2221
      %v2899 = vpop.f32.mrb[0].mxu0
      %v2900 = vadd.f32 0.0, %v2899
      %v2901 = vpop.f32.mrb[0].mxu0
      %v2902 = vpop.f32.mrb[0].mxu0
      %v2903 = vadd.f32 0.0, %v2902
      %v2904 = vpop.f32.mrb[0].mxu0
      %2905 = vmatprep.mubr.bf16.mxu0 %v2231
      %2906 = vmatmul.mubr.bf16.gmra.mrb[0].mxu0 %v2230
      %v2907 = vpop.f32.mrb[0].mxu0
      %v2908 = vadd.f32 0.0, %v2907
      %v2909 = vpop.f32.mrb[0].mxu0
      %v2910 = vpop.f32.mrb[0].mxu0
      %v2911 = vadd.f32 0.0, %v2910
      %v2912 = vpop.f32.mrb[0].mxu0
      %2913 = vmatprep.mubr.bf16.mxu0 %v2240
      %2914 = vmatmul.mubr.bf16.gmra.mrb[0].mxu0 %v2239
      %v2915 = vpop.f32.mrb[0].mxu0
      %v2916 = vadd.f32 0.0, %v2915
      %v2917 = vpop.f32.mrb[0].mxu0
      %v2918 = vpop.f32.mrb[0].mxu0
      %v2919 = vadd.f32 0.0, %v2918
      %v2920 = vpop.f32.mrb[0].mxu0
      %2921 = vmatprep.mubr.bf16.mxu0 %v2249
      %2922 = vmatmul.mubr.bf16.gmra.mrb[0].mxu0 %v2248
      %v2923 = vpop.f32.mrb[0].mxu0
      %v2924 = vadd.f32 0.0, %v2923
      %v2925 = vpop.f32.mrb[0].mxu0
      %v2926 = vpop.f32.mrb[0].mxu0
      %v2927 = vadd.f32 0.0, %v2926
      %v2928 = vpop.f32.mrb[0].mxu0
      %2929 = vdwg.mxu0
      %2930 = vmatprep.subr.bf16.mxu0 0
      %2931 = vmatpush1.bf16.msra.mxu0 %v2705
      %2932 = vmatprep.subr.bf16.mxu0 0
      %2933 = vmatpush1.bf16.msra.mxu0 %v2706
      %2934 = vmatprep.subr.bf16.mxu0 0
      %2935 = vmatpush1.bf16.msra.mxu0 %v2707
      %2936 = vmatprep.subr.bf16.mxu0 0
      %2937 = vmatpush1.bf16.msra.mxu0 %v2708
      %2938 = vmatprep.subr.bf16.mxu0 0
      %2939 = vmatpush1.bf16.msra.mxu0 %v2709
      %2940 = vmatprep.subr.bf16.mxu0 0
      %2941 = vmatpush1.bf16.msra.mxu0 %v2710
      %2942 = vmatprep.subr.bf16.mxu0 0
      %2943 = vmatpush1.bf16.msra.mxu0 %v2711
      %2944 = vmatprep.subr.bf16.mxu0 0
      %2945 = vmatpush1.bf16.msra.mxu0 %v2712
      %2946 = vmatprep.subr.bf16.mxu0 0
      %2947 = vmatpush1.bf16.msra.mxu0 %v2713
      %2948 = vmatprep.subr.bf16.mxu0 0
      %2949 = vmatpush1.bf16.msra.mxu0 %v2714
      %2950 = vmatprep.subr.bf16.mxu0 0
      %2951 = vmatpush1.bf16.msra.mxu0 %v2715
      %2952 = vmatprep.subr.bf16.mxu0 0
      %2953 = vmatpush1.bf16.msra.mxu0 %v2716
      %2954 = vmatprep.subr.bf16.mxu0 0
      %2955 = vmatpush1.bf16.msra.mxu0 %v2717
      %2956 = vmatprep.subr.bf16.mxu0 0
      %2957 = vmatpush1.bf16.msra.mxu0 %v2718
      %2958 = vmatprep.subr.bf16.mxu0 0
      %2959 = vmatpush1.bf16.msra.mxu0 %v2719
      %2960 = vmatprep.subr.bf16.mxu0 0
      %2961 = vmatpush1.bf16.msra.mxu0 %v2720
      %2962 = vmatprep.mubr.bf16.mxu0 %v2188
      %2963 = vmatmul.mubr.bf16.gmra.mrb[0].mxu0 %v2187
      %v2964 = vpop.f32.mrb[0].mxu0
      %v2965 = vadd.f32 %v2868, %v2964
      %v2966 = vpop.f32.mrb[0].mxu0
      %v2967 = vpop.f32.mrb[0].mxu0
      %v2968 = vadd.f32 %v2871, %v2967
      %v2969 = vpop.f32.mrb[0].mxu0
      %2970 = vmatprep.mubr.bf16.mxu0 %v2197
      %2971 = vmatmul.mubr.bf16.gmra.mrb[0].mxu0 %v2196
      %v2972 = vpop.f32.mrb[0].mxu0
      %v2973 = vadd.f32 %v2876, %v2972
      %v2974 = vpop.f32.mrb[0].mxu0
      %v2975 = vpop.f32.mrb[0].mxu0
      %v2976 = vadd.f32 %v2879, %v2975
      %v2977 = vpop.f32.mrb[0].mxu0
      %2978 = vmatprep.mubr.bf16.mxu0 %v2206
      %2979 = vmatmul.mubr.bf16.gmra.mrb[0].mxu0 %v2205
      %v2980 = vpop.f32.mrb[0].mxu0
      %v2981 = vadd.f32 %v2884, %v2980
      %v2982 = vpop.f32.mrb[0].mxu0
      %v2983 = vpop.f32.mrb[0].mxu0
      %v2984 = vadd.f32 %v2887, %v2983
      %v2985 = vpop.f32.mrb[0].mxu0
      %2986 = vmatprep.mubr.bf16.mxu0 %v2215
      %2987 = vmatmul.mubr.bf16.gmra.mrb[0].mxu0 %v2214
      %v2988 = vpop.f32.mrb[0].mxu0
      %v2989 = vadd.f32 %v2892, %v2988
      %v2990 = vpop.f32.mrb[0].mxu0
      %v2991 = vpop.f32.mrb[0].mxu0
      %v2992 = vadd.f32 %v2895, %v2991
      %v2993 = vpop.f32.mrb[0].mxu0
      %2994 = vmatprep.mubr.bf16.mxu0 %v2224
      %2995 = vmatmul.mubr.bf16.gmra.mrb[0].mxu0 %v2223
      %v2996 = vpop.f32.mrb[0].mxu0
      %v2997 = vadd.f32 %v2900, %v2996
      %v2998 = vpop.f32.mrb[0].mxu0
      %v2999 = vpop.f32.mrb[0].mxu0
      %v3000 = vadd.f32 %v2903, %v2999
      %v3001 = vpop.f32.mrb[0].mxu0
      %3002 = vmatprep.mubr.bf16.mxu0 %v2233
      %3003 = vmatmul.mubr.bf16.gmra.mrb[0].mxu0 %v2232
      %v3004 = vpop.f32.mrb[0].mxu0
      %v3005 = vadd.f32 %v2908, %v3004
      %v3006 = vpop.f32.mrb[0].mxu0
      %v3007 = vpop.f32.mrb[0].mxu0
      %v3008 = vadd.f32 %v2911, %v3007
      %v3009 = vpop.f32.mrb[0].mxu0
      %3010 = vmatprep.mubr.bf16.mxu0 %v2242
      %3011 = vmatmul.mubr.bf16.gmra.mrb[0].mxu0 %v2241
      %v3012 = vpop.f32.mrb[0].mxu0
      %v3013 = vadd.f32 %v2916, %v3012
      %v3014 = vpop.f32.mrb[0].mxu0
      %v3015 = vpop.f32.mrb[0].mxu0
      %v3016 = vadd.f32 %v2919, %v3015
      %v3017 = vpop.f32.mrb[0].mxu0
      %3018 = vmatprep.mubr.bf16.mxu0 %v2251
      %3019 = vmatmul.mubr.bf16.gmra.mrb[0].mxu0 %v2250
      %v3020 = vpop.f32.mrb[0].mxu0
      %v3021 = vadd.f32 %v2924, %v3020
      %v3022 = vpop.f32.mrb[0].mxu0
      %v3023 = vpop.f32.mrb[0].mxu0
      %v3024 = vadd.f32 %v2927, %v3023
      %v3025 = vpop.f32.mrb[0].mxu0
      %3026 = vdwg.mxu0
      %3027 = vmatprep.subr.bf16.mxu0 0
      %3028 = vmatpush1.bf16.msra.mxu0 %v2721
      %3029 = vmatprep.subr.bf16.mxu0 0
      %3030 = vmatpush1.bf16.msra.mxu0 %v2722
      %3031 = vmatprep.subr.bf16.mxu0 0
      %3032 = vmatpush1.bf16.msra.mxu0 %v2723
      %3033 = vmatprep.subr.bf16.mxu0 0
      %3034 = vmatpush1.bf16.msra.mxu0 %v2724
      %3035 = vmatprep.subr.bf16.mxu0 0
      %3036 = vmatpush1.bf16.msra.mxu0 %v2725
      %3037 = vmatprep.subr.bf16.mxu0 0
      %3038 = vmatpush1.bf16.msra.mxu0 %v2726
      %3039 = vmatprep.subr.bf16.mxu0 0
      %3040 = vmatpush1.bf16.msra.mxu0 %v2727
      %3041 = vmatprep.subr.bf16.mxu0 0
      %3042 = vmatpush1.bf16.msra.mxu0 %v2728
      %3043 = vmatprep.subr.bf16.mxu0 0
      %3044 = vmatpush1.bf16.msra.mxu0 %v2729
      %3045 = vmatprep.subr.bf16.mxu0 0
      %3046 = vmatpush1.bf16.msra.mxu0 %v2730
      %3047 = vmatprep.subr.bf16.mxu0 0
      %3048 = vmatpush1.bf16.msra.mxu0 %v2731
      %3049 = vmatprep.subr.bf16.mxu0 0
      %3050 = vmatpush1.bf16.msra.mxu0 %v2732
      %3051 = vmatprep.subr.bf16.mxu0 0
      %3052 = vmatpush1.bf16.msra.mxu0 %v2733
      %3053 = vmatprep.subr.bf16.mxu0 0
      %3054 = vmatpush1.bf16.msra.mxu0 %v2734
      %3055 = vmatprep.subr.bf16.mxu0 0
      %3056 = vmatpush1.bf16.msra.mxu0 %v2735
      %3057 = vmatprep.subr.bf16.mxu0 0
      %3058 = vmatpush1.bf16.msra.mxu0 %v2736
      %3059 = vmatprep.mubr.bf16.mxu0 %v2190
      %3060 = vmatmul.mubr.bf16.gmra.mrb[0].mxu0 %v2189
      %v3061 = vpop.f32.mrb[0].mxu0
      %v3062 = vadd.f32 %v2965, %v3061
      %v3063 = vpop.f32.mrb[0].mxu0
      %v3064 = vpop.f32.mrb[0].mxu0
      %v3065 = vadd.f32 %v2968, %v3064
      %v3066 = vpop.f32.mrb[0].mxu0
      %3067 = vmatprep.mubr.bf16.mxu0 %v2199
      %3068 = vmatmul.mubr.bf16.gmra.mrb[0].mxu0 %v2198
      %v3069 = vpop.f32.mrb[0].mxu0
      %v3070 = vadd.f32 %v2973, %v3069
      %v3071 = vpop.f32.mrb[0].mxu0
      %v3072 = vpop.f32.mrb[0].mxu0
      %v3073 = vadd.f32 %v2976, %v3072
      %v3074 = vpop.f32.mrb[0].mxu0
      %3075 = vmatprep.mubr.bf16.mxu0 %v2208
      %3076 = vmatmul.mubr.bf16.gmra.mrb[0].mxu0 %v2207
      %v3077 = vpop.f32.mrb[0].mxu0
      %v3078 = vadd.f32 %v2981, %v3077
      %v3079 = vpop.f32.mrb[0].mxu0
      %v3080 = vpop.f32.mrb[0].mxu0
      %v3081 = vadd.f32 %v2984, %v3080
      %v3082 = vpop.f32.mrb[0].mxu0
      %3083 = vmatprep.mubr.bf16.mxu0 %v2217
      %3084 = vmatmul.mubr.bf16.gmra.mrb[0].mxu0 %v2216
      %v3085 = vpop.f32.mrb[0].mxu0
      %v3086 = vadd.f32 %v2989, %v3085
      %v3087 = vpop.f32.mrb[0].mxu0
      %v3088 = vpop.f32.mrb[0].mxu0
      %v3089 = vadd.f32 %v2992, %v3088
      %v3090 = vpop.f32.mrb[0].mxu0
      %3091 = vmatprep.mubr.bf16.mxu0 %v2226
      %3092 = vmatmul.mubr.bf16.gmra.mrb[0].mxu0 %v2225
      %v3093 = vpop.f32.mrb[0].mxu0
      %v3094 = vadd.f32 %v2997, %v3093
      %v3095 = vpop.f32.mrb[0].mxu0
      %v3096 = vpop.f32.mrb[0].mxu0
      %v3097 = vadd.f32 %v3000, %v3096
      %v3098 = vpop.f32.mrb[0].mxu0
      %3099 = vmatprep.mubr.bf16.mxu0 %v2235
      %3100 = vmatmul.mubr.bf16.gmra.mrb[0].mxu0 %v2234
      %v3101 = vpop.f32.mrb[0].mxu0
      %v3102 = vadd.f32 %v3005, %v3101
      %v3103 = vpop.f32.mrb[0].mxu0
      %v3104 = vpop.f32.mrb[0].mxu0
      %v3105 = vadd.f32 %v3008, %v3104
      %v3106 = vpop.f32.mrb[0].mxu0
      %3107 = vmatprep.mubr.bf16.mxu0 %v2244
      %3108 = vmatmul.mubr.bf16.gmra.mrb[0].mxu0 %v2243
      %v3109 = vpop.f32.mrb[0].mxu0
      %v3110 = vadd.f32 %v3013, %v3109
      %v3111 = vpop.f32.mrb[0].mxu0
      %v3112 = vpop.f32.mrb[0].mxu0
      %v3113 = vadd.f32 %v3016, %v3112
      %v3114 = vpop.f32.mrb[0].mxu0
      %3115 = vmatprep.mubr.bf16.mxu0 %v2253
      %3116 = vmatmul.mubr.bf16.gmra.mrb[0].mxu0 %v2252
      %v3117 = vpop.f32.mrb[0].mxu0
      %v3118 = vadd.f32 %v3021, %v3117
      %v3119 = vpop.f32.mrb[0].mxu0
      %v3120 = vpop.f32.mrb[0].mxu0
      %v3121 = vadd.f32 %v3024, %v3120
      %v3122 = vpop.f32.mrb[0].mxu0
      %3123 = vdwg.mxu0
      %3124 = vmatprep.subr.bf16.mxu0 0
      %3125 = vmatpush1.bf16.msra.mxu0 %v2737
      %3126 = vmatprep.subr.bf16.mxu0 0
      %3127 = vmatpush1.bf16.msra.mxu0 %v2738
      %3128 = vmatprep.subr.bf16.mxu0 0
      %3129 = vmatpush1.bf16.msra.mxu0 %v2739
      %3130 = vmatprep.subr.bf16.mxu0 0
      %3131 = vmatpush1.bf16.msra.mxu0 %v2740
      %3132 = vmatprep.subr.bf16.mxu0 0
      %3133 = vmatpush1.bf16.msra.mxu0 %v2741
      %3134 = vmatprep.subr.bf16.mxu0 0
      %3135 = vmatpush1.bf16.msra.mxu0 %v2742
      %3136 = vmatprep.subr.bf16.mxu0 0
      %3137 = vmatpush1.bf16.msra.mxu0 %v2743
      %3138 = vmatprep.subr.bf16.mxu0 0
      %3139 = vmatpush1.bf16.msra.mxu0 %v2744
      %3140 = vmatprep.subr.bf16.mxu0 0
      %3141 = vmatpush1.bf16.msra.mxu0 %v2745
      %3142 = vmatprep.subr.bf16.mxu0 0
      %3143 = vmatpush1.bf16.msra.mxu0 %v2746
      %3144 = vmatprep.subr.bf16.mxu0 0
      %3145 = vmatpush1.bf16.msra.mxu0 %v2747
      %3146 = vmatprep.subr.bf16.mxu0 0
      %3147 = vmatpush1.bf16.msra.mxu0 %v2748
      %3148 = vmatprep.subr.bf16.mxu0 0
      %3149 = vmatpush1.bf16.msra.mxu0 %v2749
      %3150 = vmatprep.subr.bf16.mxu0 0
      %3151 = vmatpush1.bf16.msra.mxu0 %v2750
      %3152 = vmatprep.subr.bf16.mxu0 0
      %3153 = vmatpush1.bf16.msra.mxu0 %v2751
      %3154 = vmatprep.subr.bf16.mxu0 0
      %3155 = vmatpush1.bf16.msra.mxu0 %v2752
      %3156 = vmatprep.mubr.bf16.mxu0 %v2192
      %3157 = vmatmul.mubr.bf16.gmra.mrb[0].mxu0 %v2191
      %v3158 = vpop.f32.mrb[0].mxu0
      %v3159 = vadd.f32 %v3062, %v3158
      %v3160 = vpop.f32.mrb[0].mxu0
      %v3161 = vpop.f32.mrb[0].mxu0
      %v3162 = vadd.f32 %v3065, %v3161
      %v3163 = vpop.f32.mrb[0].mxu0
      %3164 = vmatprep.mubr.bf16.mxu0 %v2201
      %3165 = vmatmul.mubr.bf16.gmra.mrb[0].mxu0 %v2200
      %v3166 = vpop.f32.mrb[0].mxu0
      %v3167 = vadd.f32 %v3070, %v3166
      %v3168 = vpop.f32.mrb[0].mxu0
      %v3169 = vpop.f32.mrb[0].mxu0
      %v3170 = vadd.f32 %v3073, %v3169
      %v3171 = vpop.f32.mrb[0].mxu0
      %3172 = vmatprep.mubr.bf16.mxu0 %v2210
      %3173 = vmatmul.mubr.bf16.gmra.mrb[0].mxu0 %v2209
      %v3174 = vpop.f32.mrb[0].mxu0
      %v3175 = vadd.f32 %v3078, %v3174
      %v3176 = vpop.f32.mrb[0].mxu0
      %v3177 = vpop.f32.mrb[0].mxu0
      %v3178 = vadd.f32 %v3081, %v3177
      %v3179 = vpop.f32.mrb[0].mxu0
      %3180 = vmatprep.mubr.bf16.mxu0 %v2219
      %3181 = vmatmul.mubr.bf16.gmra.mrb[0].mxu0 %v2218
      %v3182 = vpop.f32.mrb[0].mxu0
      %v3183 = vadd.f32 %v3086, %v3182
      %v3184 = vpop.f32.mrb[0].mxu0
      %v3185 = vpop.f32.mrb[0].mxu0
      %v3186 = vadd.f32 %v3089, %v3185
      %v3187 = vpop.f32.mrb[0].mxu0
      %3188 = vmatprep.mubr.bf16.mxu0 %v2228
      %3189 = vmatmul.mubr.bf16.gmra.mrb[0].mxu0 %v2227
      %v3190 = vpop.f32.mrb[0].mxu0
      %v3191 = vadd.f32 %v3094, %v3190
      %v3192 = vpop.f32.mrb[0].mxu0
      %v3193 = vpop.f32.mrb[0].mxu0
      %v3194 = vadd.f32 %v3097, %v3193
      %v3195 = vpop.f32.mrb[0].mxu0
      %3196 = vmatprep.mubr.bf16.mxu0 %v2237
      %3197 = vmatmul.mubr.bf16.gmra.mrb[0].mxu0 %v2236
      %v3198 = vpop.f32.mrb[0].mxu0
      %v3199 = vadd.f32 %v3102, %v3198
      %v3200 = vpop.f32.mrb[0].mxu0
      %v3201 = vpop.f32.mrb[0].mxu0
      %v3202 = vadd.f32 %v3105, %v3201
      %v3203 = vpop.f32.mrb[0].mxu0
      %3204 = vmatprep.mubr.bf16.mxu0 %v2246
      %3205 = vmatmul.mubr.bf16.gmra.mrb[0].mxu0 %v2245
      %v3206 = vpop.f32.mrb[0].mxu0
      %v3207 = vadd.f32 %v3110, %v3206
      %v3208 = vpop.f32.mrb[0].mxu0
      %v3209 = vpop.f32.mrb[0].mxu0
      %v3210 = vadd.f32 %v3113, %v3209
      %v3211 = vpop.f32.mrb[0].mxu0
      %3212 = vmatprep.mubr.bf16.mxu0 %v2255
      %3213 = vmatmul.mubr.bf16.gmra.mrb[0].mxu0 %v2254
      %v3214 = vpop.f32.mrb[0].mxu0
      %v3215 = vadd.f32 %v3118, %v3214
      %v3216 = vpop.f32.mrb[0].mxu0
      %v3217 = vpop.f32.mrb[0].mxu0
      %v3218 = vadd.f32 %v3121, %v3217
      %v3219 = vpop.f32.mrb[0].mxu0
      %3220 = vdwg.mxu0
      %3221 = vmatprep.subr.bf16.mxu0 0
      %3222 = vmatpush1.bf16.msra.mxu0 %v2753
      %3223 = vmatprep.subr.bf16.mxu0 0
      %3224 = vmatpush1.bf16.msra.mxu0 %v2754
      %3225 = vmatprep.subr.bf16.mxu0 0
      %3226 = vmatpush1.bf16.msra.mxu0 %v2755
      %3227 = vmatprep.subr.bf16.mxu0 0
      %3228 = vmatpush1.bf16.msra.mxu0 %v2756
      %3229 = vmatprep.subr.bf16.mxu0 0
      %3230 = vmatpush1.bf16.msra.mxu0 %v2757
      %3231 = vmatprep.subr.bf16.mxu0 0
      %3232 = vmatpush1.bf16.msra.mxu0 %v2758
      %3233 = vmatprep.subr.bf16.mxu0 0
      %3234 = vmatpush1.bf16.msra.mxu0 %v2759
      %3235 = vmatprep.subr.bf16.mxu0 0
      %3236 = vmatpush1.bf16.msra.mxu0 %v2760
      %3237 = vmatprep.subr.bf16.mxu0 0
      %3238 = vmatpush1.bf16.msra.mxu0 0
      %3239 = vmatprep.subr.bf16.mxu0 0
      %3240 = vmatpush1.bf16.msra.mxu0 0
      %3241 = vmatprep.subr.bf16.mxu0 0
      %3242 = vmatpush1.bf16.msra.mxu0 0
      %3243 = vmatprep.subr.bf16.mxu0 0
      %3244 = vmatpush1.bf16.msra.mxu0 0
      %3245 = vmatprep.subr.bf16.mxu0 0
      %3246 = vmatpush1.bf16.msra.mxu0 0
      %3247 = vmatprep.subr.bf16.mxu0 0
      %3248 = vmatpush1.bf16.msra.mxu0 0
      %3249 = vmatprep.subr.bf16.mxu0 0
      %3250 = vmatpush1.bf16.msra.mxu0 0
      %3251 = vmatprep.subr.bf16.mxu0 0
      %3252 = vmatpush1.bf16.msra.mxu0 0
      %3253 = vmatprep.mubr.bf16.mxu0 0
      %3254 = vmatmul.mubr.bf16.gmra.mrb[0].mxu0 %v2193
      %v3255 = vpop.f32.mrb[0].mxu0
      %v3256 = vadd.f32 %v3159, %v3255
      %v3257 = vpop.f32.mrb[0].mxu0
      %v3258 = vpop.f32.mrb[0].mxu0
      %v3259 = vadd.f32 %v3162, %v3258
      %v3260 = vpop.f32.mrb[0].mxu0
      %3261 = vmatprep.mubr.bf16.mxu0 0
      %3262 = vmatmul.mubr.bf16.gmra.mrb[0].mxu0 %v2202
      %v3263 = vpop.f32.mrb[0].mxu0
      %v3264 = vadd.f32 %v3167, %v3263
      %v3265 = vpop.f32.mrb[0].mxu0
      %v3266 = vpop.f32.mrb[0].mxu0
      %v3267 = vadd.f32 %v3170, %v3266
      %v3268 = vpop.f32.mrb[0].mxu0
      %3269 = vmatprep.mubr.bf16.mxu0 0
      %3270 = vmatmul.mubr.bf16.gmra.mrb[0].mxu0 %v2211
      %v3271 = vpop.f32.mrb[0].mxu0
      %v3272 = vadd.f32 %v3175, %v3271
      %v3273 = vpop.f32.mrb[0].mxu0
      %v3274 = vpop.f32.mrb[0].mxu0
      %v3275 = vadd.f32 %v3178, %v3274
      %v3276 = vpop.f32.mrb[0].mxu0
      %3277 = vmatprep.mubr.bf16.mxu0 0
      %3278 = vmatmul.mubr.bf16.gmra.mrb[0].mxu0 %v2220
      %v3279 = vpop.f32.mrb[0].mxu0
      %v3280 = vadd.f32 %v3183, %v3279
      %v3281 = vpop.f32.mrb[0].mxu0
      %v3282 = vpop.f32.mrb[0].mxu0
      %v3283 = vadd.f32 %v3186, %v3282
      %v3284 = vpop.f32.mrb[0].mxu0
      %3285 = vmatprep.mubr.bf16.mxu0 0
      %3286 = vmatmul.mubr.bf16.gmra.mrb[0].mxu0 %v2229
      %v3287 = vpop.f32.mrb[0].mxu0
      %v3288 = vadd.f32 %v3191, %v3287
      %v3289 = vpop.f32.mrb[0].mxu0
      %v3290 = vpop.f32.mrb[0].mxu0
      %v3291 = vadd.f32 %v3194, %v3290
      %v3292 = vpop.f32.mrb[0].mxu0
      %3293 = vmatprep.mubr.bf16.mxu0 0
      %3294 = vmatmul.mubr.bf16.gmra.mrb[0].mxu0 %v2238
      %v3295 = vpop.f32.mrb[0].mxu0
      %v3296 = vadd.f32 %v3199, %v3295
      %v3297 = vpop.f32.mrb[0].mxu0
      %v3298 = vpop.f32.mrb[0].mxu0
      %v3299 = vadd.f32 %v3202, %v3298
      %v3300 = vpop.f32.mrb[0].mxu0
      %3301 = vmatprep.mubr.bf16.mxu0 0
      %3302 = vmatmul.mubr.bf16.gmra.mrb[0].mxu0 %v2247
      %v3303 = vpop.f32.mrb[0].mxu0
      %v3304 = vadd.f32 %v3207, %v3303
      %v3305 = vpop.f32.mrb[0].mxu0
      %v3306 = vpop.f32.mrb[0].mxu0
      %v3307 = vadd.f32 %v3210, %v3306
      %v3308 = vpop.f32.mrb[0].mxu0
      %3309 = vmatprep.mubr.bf16.mxu0 0
      %3310 = vmatmul.mubr.bf16.gmra.mrb[0].mxu0 %v2256
      %v3311 = vpop.f32.mrb[0].mxu0
      %v3312 = vadd.f32 %v3215, %v3311
      %v3313 = vpop.f32.mrb[0].mxu0
      %v3314 = vpop.f32.mrb[0].mxu0
      %v3315 = vadd.f32 %v3218, %v3314
      %v3316 = vpop.f32.mrb[0].mxu0
      %3317 = vdwg.mxu0
      %v3318 = vpack.c.bf16 %v3259, %v3256
      %v3319 = vpack.c.bf16 %v3267, %v3264
      %v3320 = vpack.c.bf16 %v3275, %v3272
      %v3321 = vpack.c.bf16 %v3283, %v3280
      %v3322 = vpack.c.bf16 %v3291, %v3288
      %v3323 = vpack.c.bf16 %v3299, %v3296
      %v3324 = vpack.c.bf16 %v3307, %v3304
      %v3325 = vpack.c.bf16 %v3315, %v3312
      %v3334 = vunpack.c.l.b16 %v3318
      %v3335 = vunpack.c.h.b16 %v3318
      %v3336 = vunpack.c.l.b16 %v3319
      %v3337 = vunpack.c.h.b16 %v3319
      %v3338 = vunpack.c.l.b16 %v3320
      %v3339 = vunpack.c.h.b16 %v3320
      %v3340 = vunpack.c.l.b16 %v3321
      %v3341 = vunpack.c.h.b16 %v3321
      %v3342 = vunpack.c.l.b16 %v3322
      %v3343 = vunpack.c.h.b16 %v3322
      %v3344 = vunpack.c.l.b16 %v3323
      %v3345 = vunpack.c.h.b16 %v3323
      %v3346 = vunpack.c.l.b16 %v3324
      %v3347 = vunpack.c.h.b16 %v3324
      %v3348 = vunpack.c.l.b16 %v3325
      %v3349 = vunpack.c.h.b16 %v3325
      %v3350 = vpack.c.b16 %v3334, %v3334
      %v3351 = vpack.c.b16 %v3335, %v3335
      %v3352 = vpack.c.b16 %v3336, %v3336
      %v3353 = vpack.c.b16 %v3337, %v3337
      %v3354 = vpack.c.b16 %v3338, %v3338
      %v3355 = vpack.c.b16 %v3339, %v3339
      %v3356 = vpack.c.b16 %v3340, %v3340
      %v3357 = vpack.c.b16 %v3341, %v3341
      %v3358 = vpack.c.b16 %v3342, %v3342
      %v3359 = vpack.c.b16 %v3343, %v3343
      %v3360 = vpack.c.b16 %v3344, %v3344
      %v3361 = vpack.c.b16 %v3345, %v3345
      %v3362 = vpack.c.b16 %v3346, %v3346
      %v3363 = vpack.c.b16 %v3347, %v3347
      %v3364 = vpack.c.b16 %v3348, %v3348
      %v3365 = vpack.c.b16 %v3349, %v3349
      %3382 = vst [vmem:[%s341] sm:$0xf] %v3350
      %3383 = vst [vmem:[%s341 + $0x4] sm:$0xf] %v3351
      %3384 = vst [vmem:[%s341 + $0x8] sm:$0xf] %v3352
      %3385 = vst [vmem:[%s341 + $0xc] sm:$0xf] %v3353
      %3386 = vst [vmem:[%s341 + $0x10] sm:$0xf] %v3354
      %3387 = vst [vmem:[%s341 + $0x14] sm:$0xf] %v3355
      %3388 = vst [vmem:[%s341 + $0x18] sm:$0xf] %v3356
      %3389 = vst [vmem:[%s341 + $0x1c] sm:$0xf] %v3357
      %3390 = vst [vmem:[%s341 + $0x20] sm:$0xf] %v3358
      %3391 = vst [vmem:[%s341 + $0x24] sm:$0xf] %v3359
      %3392 = vst [vmem:[%s341 + $0x28] sm:$0xf] %v3360
      %3393 = vst [vmem:[%s341 + $0x2c] sm:$0xf] %v3361
      %3394 = vst [vmem:[%s341 + $0x30] sm:$0xf] %v3362
      %3395 = vst [vmem:[%s341 + $0x34] sm:$0xf] %v3363
      %3396 = vst [vmem:[%s341 + $0x38] sm:$0xf] %v3364
      %3397 = vst [vmem:[%s341 + $0x3c] sm:$0xf] %v3365
      %v3398 = vadd.f32 %v3256, %v3259
      %v3399 = vadd.f32 %v3398, %v3264
      %v3400 = vadd.f32 %v3399, %v3267
      %v3401 = vadd.f32 %v3400, %v3272
      %v3402 = vadd.f32 %v3401, %v3275
      %v3403 = vadd.f32 %v3402, %v3280
      %v3404 = vadd.f32 %v3403, %v3283
      %v3405 = vadd.f32 %v3404, %v3288
      %v3406 = vadd.f32 %v3405, %v3291
      %v3407 = vadd.f32 %v3406, %v3296
      %v3408 = vadd.f32 %v3407, %v3299
      %v3409 = vadd.f32 %v3408, %v3304
      %v3410 = vadd.f32 %v3409, %v3307
      %v3411 = vadd.f32 %v3410, %v3312
      %v3412 = vadd.f32 %v3411, %v3315
      %v3413 = vrot.slane %v3412, 4
      %v3414 = vadd.f32 %v3412, %v3413
      %v3415 = vrot.slane %v3414, 2
      %v3416 = vadd.f32 %v3414, %v3415
      %v3417 = vrot.slane %v3416, 1
      %v3418 = vadd.f32 %v3416, %v3417
      %3419 = vst [vmem:[%s350] sm:$0x1] %v3418
      %v3420 = vmul.f32 %v3256, %v3256
      %v3421 = vmul.f32 %v3259, %v3259
      %v3422 = vmul.f32 %v3264, %v3264
      %v3423 = vmul.f32 %v3267, %v3267
      %v3424 = vmul.f32 %v3272, %v3272
      %v3425 = vmul.f32 %v3275, %v3275
      %v3426 = vmul.f32 %v3280, %v3280
      %v3427 = vmul.f32 %v3283, %v3283
      %v3428 = vmul.f32 %v3288, %v3288
      %v3429 = vmul.f32 %v3291, %v3291
      %v3430 = vmul.f32 %v3296, %v3296
      %v3431 = vmul.f32 %v3299, %v3299
      %v3432 = vmul.f32 %v3304, %v3304
      %v3433 = vmul.f32 %v3307, %v3307
      %v3434 = vmul.f32 %v3312, %v3312
      %v3435 = vmul.f32 %v3315, %v3315
      %v3436 = vadd.f32 %v3420, %v3421
      %v3437 = vadd.f32 %v3436, %v3422
      %v3438 = vadd.f32 %v3437, %v3423
      %v3439 = vadd.f32 %v3438, %v3424
      %v3440 = vadd.f32 %v3439, %v3425
      %v3441 = vadd.f32 %v3440, %v3426
      %v3442 = vadd.f32 %v3441, %v3427
      %v3443 = vadd.f32 %v3442, %v3428
      %v3444 = vadd.f32 %v3443, %v3429
      %v3445 = vadd.f32 %v3444, %v3430
      %v3446 = vadd.f32 %v3445, %v3431
      %v3447 = vadd.f32 %v3446, %v3432
      %v3448 = vadd.f32 %v3447, %v3433
      %v3449 = vadd.f32 %v3448, %v3434
      %v3450 = vadd.f32 %v3449, %v3435
      %v3451 = vrot.slane %v3450, 4
      %v3452 = vadd.f32 %v3450, %v3451
      %v3453 = vrot.slane %v3452, 2
      %v3454 = vadd.f32 %v3452, %v3453
      %v3455 = vrot.slane %v3454, 1
      %v3456 = vadd.f32 %v3454, %v3455
      %3457 = vst [vmem:[%s350 + $0x1] sm:$0x1] %v3456
      %s3458 = smul.u32 8, %s23
      %p3459 = scmp.lt.s32.totalorder %s22, 1
      %s3460 = scalar_select %p3459, %s22, 1
      %p3461 = scmp.lt.s32.totalorder %s3458, 15
      %s3462 = scalar_select %p3461, %s3458, 15
      %s3463 = smul.addr %s3462, 2
      %s3464 = smul.addr %s3460, 32
      %s3465 = sadd.s32 %s3463, %s3464
      %s3466 = smul.addr %s3465, 4
      %s3467 = scalar_lea.vmem %s5, %s3466
      %p3468 = scmp.lt.s32.totalorder %s22, 1
      %s3469 = scalar_select %p3468, %s22, 1
      %p3470 = scmp.lt.s32.totalorder %s23, 1
      %s3471 = scalar_select %p3470, %s23, 1
      %s3472 = smul.addr %s3469, 2
      %s3473 = sadd.s32 %s3471, %s3472
      %s3474 = smul.addr %s3473, 2
      %s3475 = scalar_lea.vmem %s6, %s3474
      // Predicated region
      $region41: #{double_conv.4} parent=39 // pred_check
        %p3476 = pneg %p169
      $region42: #{double_conv.4} parent=39 // pred_check_branch
        %3478 = sbr.rel (%p3476) target = $region44
      $region43: #{double_conv.4} parent=39 // pred_region
        %s3479 = smul.u32 8, %s23
      $region44: #{double_conv.4} parent=39 // pred_fallthru
        _
      // Predicated region
      $region45: #{double_conv.4} parent=39 // pred_check
        %p3480 = pneg %p197
      $region46: #{double_conv.4} parent=39 // pred_check_branch
        %3482 = sbr.rel (%p3480) target = $region48
      $region47: #{double_conv.4} parent=39 // pred_region
        _
      $region48: #{double_conv.4} parent=39 // pred_fallthru
        _
    $region40: #{double_conv.4} parent=5 // pred_fallthru
      _
    %p3483 = scmp.le.s32.totalorder 2, %s13
    // Predicated region
    $region49: #{double_conv.4} parent=5 // pred_check
      %p3484 = pneg %p3483
    $region50: #{double_conv.4} parent=5 // pred_check_branch
      %3486 = sbr.rel (%p3484) target = $region52
    $region51: #{double_conv.4} parent=5 // pred_region
      %s3487 = ssub.s32 %s13, 2
      // Predicated region
      $region53: #{double_conv.4} parent=51 // pred_check
        %p3488 = pneg %p175
      $region54: #{double_conv.4} parent=51 // pred_check_branch
        %3490 = sbr.rel (%p3488) target = $region56
      $region55: #{double_conv.4} parent=51 // pred_region
        %s3491 = smul.u32 8, %s25
        %p3492 = scmp.lt.s32.totalorder %s24, 1
        %s3493 = scalar_select %p3492, %s24, 1
        %p3494 = scmp.lt.s32.totalorder %s3491, 15
        %s3495 = scalar_select %p3494, %s3491, 15
        %s3496 = smul.addr %s3495, 2
        %s3497 = smul.addr %s3493, 32
        %s3498 = sadd.s32 %s3496, %s3497
        %s3499 = smul.addr %s3498, 4
        %s3500 = scalar_lea.vmem %s5, %s3499
      $region56: #{double_conv.4} parent=51 // pred_fallthru
        _
      // Predicated region
      $region57: #{double_conv.4} parent=51 // pred_check
        %p3501 = pneg %p203
      $region58: #{double_conv.4} parent=51 // pred_check_branch
        %3503 = sbr.rel (%p3501) target = $region60
      $region59: #{double_conv.4} parent=51 // pred_region
        %p3504 = scmp.lt.s32.totalorder %s24, 1
        %s3505 = scalar_select %p3504, %s24, 1
        %p3506 = scmp.lt.s32.totalorder %s25, 1
        %s3507 = scalar_select %p3506, %s25, 1
        %s3508 = smul.addr %s3505, 2
        %s3509 = sadd.s32 %s3507, %s3508
        %s3510 = smul.addr %s3509, 2
        %s3511 = scalar_lea.vmem %s6, %s3510
      $region60: #{double_conv.4} parent=51 // pred_fallthru
        _
    $region52: #{double_conv.4} parent=5 // pred_fallthru
      _
  $region6: #{double_conv.4} parent=0 // loop_footer
    %s17 = sadd.s32 1, %s13
  $region7: #{double_conv.4} parent=0 // loop_footer_branch
    %12 = sbr.rel target = $region3
  $region8: #{double_conv.4} parent=0 // loop_exit
    _

</llo_original>
